<compile_context>
chip_gen: v6e
topology: v6e:2x2x1
jax: 0.10.0
libtpu: 0.0.40
codegen_flags: <defaults>
</compile_context>

<pallas_src>
import functools

import jax
import jax.numpy as jnp
import numpy as np
from jax import lax
from jax.experimental import pallas as pl
from jax.experimental.pallas import tpu as pltpu

H = 51       # hidden size fixed by the module (n_hidden=51, hard-coded zeros(., 51))
HP = 128     # padded hidden / per-gate width (one vreg lane group)
GW = 4 * HP  # total gate width per layer

MXU_DTYPE = jnp.float32     # set to jnp.bfloat16 only if the tolerance budget allows
_UNROLL_LIMIT = 128         # fully unroll the time loop below this many total steps

# Kernel gate order is [i | f | o | g]; PyTorch LSTMCell order is [i | f | g | o].
GATE_PERM = (0, 1, 3, 2)


def _seq_kernel(T, T_total, unrolled,
                x_ref, w1ih_ref, w1hh_ref, b1_ref, w2_ref, b2_ref,
                wlin_ref, blin_ref, out_ref):
    B = out_ref.shape[1]

    w1ih = w1ih_ref[...]                       # (1, GW)   rank-1 input row, layer 1
    w1hh = w1hh_ref[...].astype(MXU_DTYPE)     # (HP, GW)  recurrent weight, layer 1
    b1 = b1_ref[...]                           # (1, GW)
    w2 = w2_ref[...].astype(MXU_DTYPE)         # (HP, GW)  co-packed [h1 | h2] weight
    b2 = b2_ref[...]                           # (1, GW)
    wlin = wlin_ref[...]                       # (1, HP)   zero beyond H
    blin = blin_ref[...]                       # (1, 1)

    def gates_to_hc(g, c):
        # Gates are 128-lane blocks: [i | f | o | g]; padded lanes stay exactly zero.
        sig = jax.nn.sigmoid(g[:, :3 * HP])
        i = sig[:, 0 * HP:1 * HP]
        f = sig[:, 1 * HP:2 * HP]
        o = sig[:, 2 * HP:3 * HP]
        gg = jnp.tanh(g[:, 3 * HP:4 * HP])
        c_new = f * c + i * gg
        h_new = o * jnp.tanh(c_new)
        return h_new, c_new

    def step(x_col, h1, c1, h2, c2):
        # Layer 1: rank-1 input contribution (VPU broadcast) + K=128 recurrent matmul.
        g1 = (jnp.dot(h1.astype(MXU_DTYPE), w1hh, preferred_element_type=jnp.float32)
              + x_col * w1ih + b1)
        h1, c1 = gates_to_hc(g1, c1)
        # Layer 2: co-pack h1 (lanes 0..50) and h2 (rolled to lanes 64..114) -> K=128.
        # shift=64 with a 128-lane period is direction-agnostic; XLU slot, off the
        # MXU/VALU critical path.
        z2 = h1 + pltpu.roll(h2, shift=64, axis=1)
        g2 = (jnp.dot(z2.astype(MXU_DTYPE), w2, preferred_element_type=jnp.float32)
              + b2)
        h2, c2 = gates_to_hc(g2, c2)
        return h1, c1, h2, c2

    def project(h2):
        # Output linear on VPU (mul) + XLU (lane reduce) -> stays off the MXU chain.
        return jnp.sum(h2 * wlin, axis=1, keepdims=True) + blin   # (B, 1)

    def obs_body(t, carry):
        h1, c1, h2, c2 = carry
        h1, c1, h2, c2 = step(x_ref[t], h1, c1, h2, c2)
        # Not loop-carried: projection + masked column store are off the serial chain.
        out_ref[t] = project(h2)
        return h1, c1, h2, c2

    def fut_body(t, carry):
        h1, c1, h2, c2, out_col = carry
        h1, c1, h2, c2 = step(out_col, h1, c1, h2, c2)
        out_col = project(h2)
        out_ref[t] = out_col
        return h1, c1, h2, c2, out_col

    z = jnp.zeros((B, HP), jnp.float32)
    carry = (z, z, z, z)

    if unrolled:
        for t in range(T):
            carry = obs_body(t, carry)
        carry = carry + (project(carry[3]),)      # seed the future phase
        for t in range(T, T_total):
            carry = fut_body(t, carry)
    else:
        carry = lax.fori_loop(0, T, obs_body, carry, unroll=4)
        carry = carry + (project(carry[3]),)
        carry = lax.fori_loop(T, T_total, fut_body, carry, unroll=4)


def _pack_rec_weight(w, row_offset=0):
    """w: (4H, in_dim) PyTorch gate weight -> (HP, GW), gate-blocked [i|f|o|g] columns,
    input rows placed at [row_offset, row_offset+in_dim)."""
    in_dim = w.shape[1]
    w4 = w.astype(jnp.float32).reshape(4, H, in_dim)[jnp.asarray(GATE_PERM)]  # (k,j,in)
    w4 = jnp.transpose(w4, (2, 0, 1))                                         # (in,k,j)
    out = jnp.zeros((HP, 4, HP), jnp.float32)
    out = out.at[row_offset:row_offset + in_dim, :, :H].set(w4)
    return out.reshape(HP, GW)


def _pack_input_row(wih1):
    """wih1: (4H, 1) -> (1, GW) rank-1 row (input dim is 1)."""
    v = wih1.astype(jnp.float32).reshape(4, H)[jnp.asarray(GATE_PERM)]
    return jnp.zeros((1, 4, HP), jnp.float32).at[0, :, :H].set(v).reshape(1, GW)


def _pack_bias(bih, bhh):
    b = (bih + bhh).astype(jnp.float32).reshape(4, H)[jnp.asarray(GATE_PERM)]
    return jnp.zeros((1, 4, HP), jnp.float32).at[0, :, :H].set(b).reshape(1, GW)


def sequence_forward(params, x, future=0):
    """x: (B, T) float32, returns (B, T + future) like the PyTorch module."""
    B, T = x.shape
    T_total = T + future
    x = x.astype(jnp.float32)

    # Time-major scalar input, no 128x lane inflation.
    x_tb = jnp.transpose(x).reshape(T, B, 1)

    w1ih = _pack_input_row(params["wih1"])                       # (1, GW)
    w1hh = _pack_rec_weight(params["whh1"], 0)                   # (HP, GW)
    b1 = _pack_bias(params["bih1"], params["bhh1"])              # (1, GW)
    # Layer 2: wih2 rows at lanes 0..50 (h1), whh2 rows at lanes 64..114 (rolled h2).
    w2 = _pack_rec_weight(params["wih2"], 0) + _pack_rec_weight(params["whh2"], 64)
    b2 = _pack_bias(params["bih2"], params["bhh2"])              # (1, GW)

    wlin = jnp.zeros((1, HP), jnp.float32).at[:, :H].set(
        params["wlin"].astype(jnp.float32))                      # (1, HP)
    blin = params["blin"].astype(jnp.float32).reshape(1, 1)      # (1, 1)

    def full(shape):
        nd = len(shape)
        return pl.BlockSpec(shape, lambda i, _nd=nd: (0,) * _nd)

    kernel = functools.partial(_seq_kernel, T, T_total, T_total <= _UNROLL_LIMIT)

    out_tb = pl.pallas_call(
        kernel,
        out_shape=jax.ShapeDtypeStruct((T_total, B, 1), jnp.float32),
        grid_spec=pltpu.PrefetchScalarGridSpec(
            num_scalar_prefetch=0,
            grid=(1,),
            in_specs=[
                full((T, B, 1)),                      # x (time-major)
                full((1, GW)), full((HP, GW)), full((1, GW)),   # w1ih, w1hh, b1
                full((HP, GW)), full((1, GW)),                  # w2, b2
                full((1, HP)), full((1, 1)),                    # wlin, blin
            ],
            out_specs=full((T_total, B, 1)),
        ),
        compiler_params=pltpu.CompilerParams(
            dimension_semantics=("arbitrary",)),
    )(x_tb, w1ih, w1hh, b1, w2, b2, wlin, blin)

    return out_tb[:, :, 0].T   # (B, T + future)


def init_params(key):
    """Deterministic init mimicking PyTorch's default U(-1/sqrt(H), 1/sqrt(H))."""
    bound = 1.0 / np.sqrt(H)
    keys = jax.random.split(key, 10)

    def u(k, shape):
        return jax.random.uniform(k, shape, jnp.float32, -bound, bound)

    return dict(
        wih1=u(keys[0], (4 * H, 1)), whh1=u(keys[1], (4 * H, H)),
        bih1=u(keys[2], (4 * H,)),   bhh1=u(keys[3], (4 * H,)),
        wih2=u(keys[4], (4 * H, H)), whh2=u(keys[5], (4 * H, H)),
        bih2=u(keys[6], (4 * H,)),   bhh2=u(keys[7], (4 * H,)),
        wlin=u(keys[8], (1, H)),     blin=u(keys[9], (1,)),
    )


def reference_forward(params, x, future=0):
    """Pure-JAX reference matching the PyTorch forward, for correctness check."""
    B, T = x.shape

    def cell(x_t, h, c, wih, whh, bih, bhh):
        gates = x_t @ wih.T + bih + h @ whh.T + bhh
        i, f, g, o = jnp.split(gates, 4, axis=1)
        c = jax.nn.sigmoid(f) * c + jax.nn.sigmoid(i) * jnp.tanh(g)
        h = jax.nn.sigmoid(o) * jnp.tanh(c)
        return h, c

    h1 = c1 = h2 = c2 = jnp.zeros((B, H), jnp.float32)
    outs = []
    out = jnp.zeros((B, 1), jnp.float32)
    for t in range(T):
        h1, c1 = cell(x[:, t:t + 1], h1, c1, params["wih1"], params["whh1"],
                      params["bih1"], params["bhh1"])
        h2, c2 = cell(h1, h2, c2, params["wih2"], params["whh2"],
                      params["bih2"], params["bhh2"])
        out = h2 @ params["wlin"].T + params["blin"]
        outs.append(out)
    for _ in range(future):
        h1, c1 = cell(out, h1, c1, params["wih1"], params["whh1"],
                      params["bih1"], params["bhh1"])
        h2, c2 = cell(h1, h2, c2, params["wih2"], params["whh2"],
                      params["bih2"], params["bhh2"])
        out = h2 @ params["wlin"].T + params["blin"]
        outs.append(out)
    return jnp.concatenate(outs, axis=1)


if __name__ == "__main__":
    key = jax.random.PRNGKey(0)
    pkey, xkey = jax.random.split(key)
    params = init_params(pkey)

    B, T, FUTURE = 4, 8, 4
    x = jax.random.normal(xkey, (B, T), jnp.float32)

    out = sequence_forward(params, x, future=FUTURE)
    out = jax.block_until_ready(out)
    assert out.shape == (B, T + FUTURE)

    ref = reference_forward(params, x, future=FUTURE)
    np.testing.assert_allclose(np.asarray(out), np.asarray(ref),
                               rtol=1e-4, atol=1e-4)
    print("KERNEL_OK")
</pallas_src>

<mosaic_0001>
module attributes {stable_mosaic.version = 11 : i64} {
  func.func @_seq_kernel(%arg0: i32, %arg1: memref<8x4x1xf32, #tpu.memory_space<vmem>>, %arg2: memref<1x512xf32, #tpu.memory_space<vmem>>, %arg3: memref<128x512xf32, #tpu.memory_space<vmem>>, %arg4: memref<1x512xf32, #tpu.memory_space<vmem>>, %arg5: memref<128x512xf32, #tpu.memory_space<vmem>>, %arg6: memref<1x512xf32, #tpu.memory_space<vmem>>, %arg7: memref<1x128xf32, #tpu.memory_space<vmem>>, %arg8: memref<1x1xf32, #tpu.memory_space<vmem>>, %arg9: memref<12x4x1xf32, #tpu.memory_space<vmem>>) attributes {dimension_semantics = [#tpu.dimension_semantics<arbitrary>], iteration_bounds = array<i64: 1>, scalar_prefetch = 0 : i64, scratch_operands = 0 : i64, tpu.core_type = #tpu.core_type<tc>, window_params = [{pipeline_mode = #tpu.pipeline_mode<synchronous>, transform_indices = @transform_0, window_bounds = array<i64: 8, 4, 1>}, {pipeline_mode = #tpu.pipeline_mode<synchronous>, transform_indices = @transform_1, window_bounds = array<i64: 1, 512>}, {pipeline_mode = #tpu.pipeline_mode<synchronous>, transform_indices = @transform_2, window_bounds = array<i64: 128, 512>}, {pipeline_mode = #tpu.pipeline_mode<synchronous>, transform_indices = @transform_3, window_bounds = array<i64: 1, 512>}, {pipeline_mode = #tpu.pipeline_mode<synchronous>, transform_indices = @transform_4, window_bounds = array<i64: 128, 512>}, {pipeline_mode = #tpu.pipeline_mode<synchronous>, transform_indices = @transform_5, window_bounds = array<i64: 1, 512>}, {pipeline_mode = #tpu.pipeline_mode<synchronous>, transform_indices = @transform_6, window_bounds = array<i64: 1, 128>}, {pipeline_mode = #tpu.pipeline_mode<synchronous>, transform_indices = @transform_7, window_bounds = array<i64: 1, 1>}, {pipeline_mode = #tpu.pipeline_mode<synchronous>, transform_indices = @transform_8, window_bounds = array<i64: 12, 4, 1>}]} {
    %c0 = arith.constant 0 : index
    %c0_0 = arith.constant 0 : index
    %0 = vector.load %arg2[%c0, %c0_0] : memref<1x512xf32, #tpu.memory_space<vmem>>, vector<1x512xf32>
    %c0_1 = arith.constant 0 : index
    %c0_2 = arith.constant 0 : index
    %1 = vector.load %arg3[%c0_1, %c0_2] : memref<128x512xf32, #tpu.memory_space<vmem>>, vector<128x512xf32>
    %c0_3 = arith.constant 0 : index
    %c0_4 = arith.constant 0 : index
    %2 = vector.load %arg4[%c0_3, %c0_4] : memref<1x512xf32, #tpu.memory_space<vmem>>, vector<1x512xf32>
    %c0_5 = arith.constant 0 : index
    %c0_6 = arith.constant 0 : index
    %3 = vector.load %arg5[%c0_5, %c0_6] : memref<128x512xf32, #tpu.memory_space<vmem>>, vector<128x512xf32>
    %c0_7 = arith.constant 0 : index
    %c0_8 = arith.constant 0 : index
    %4 = vector.load %arg6[%c0_7, %c0_8] : memref<1x512xf32, #tpu.memory_space<vmem>>, vector<1x512xf32>
    %c0_9 = arith.constant 0 : index
    %c0_10 = arith.constant 0 : index
    %5 = vector.load %arg7[%c0_9, %c0_10] : memref<1x128xf32, #tpu.memory_space<vmem>>, vector<1x128xf32>
    %c0_11 = arith.constant 0 : index
    %c0_12 = arith.constant 0 : index
    %6 = vector.load %arg8[%c0_11, %c0_12] : memref<1x1xf32, #tpu.memory_space<vmem>>, vector<1x1xf32>
    %cst = arith.constant 0.000000e+00 : f32
    %7 = vector.broadcast %cst : f32 to vector<4x128xf32>
    %c0_13 = arith.constant 0 : index
    %c0_14 = arith.constant 0 : index
    %c0_15 = arith.constant 0 : index
    %8 = vector.load %arg1[%c0_13, %c0_14, %c0_15] : memref<8x4x1xf32, #tpu.memory_space<vmem>>, vector<1x4x1xf32>
    %9 = vector.shape_cast %8 : vector<1x4x1xf32> to vector<4x1xf32>
    %cst_16 = arith.constant dense<0.000000e+00> : vector<4x512xf32>
    %10 = tpu.matmul %7, %1, %cst_16 {dimension_numbers = #tpu.dot_dimension_numbers<[1], [0], [0], [1], [0, 0, 1, 1], [], []>} : vector<4x128xf32>, vector<128x512xf32>, vector<4x512xf32> -> vector<4x512xf32>
    %11 = vector.broadcast %9 : vector<4x1xf32> to vector<4x512xf32>
    %12 = vector.broadcast %0 : vector<1x512xf32> to vector<4x512xf32>
    %13 = arith.mulf %11, %12 : vector<4x512xf32>
    %14 = arith.addf %10, %13 : vector<4x512xf32>
    %15 = vector.broadcast %2 : vector<1x512xf32> to vector<4x512xf32>
    %16 = arith.addf %14, %15 : vector<4x512xf32>
    %17 = vector.extract_strided_slice %16 {offsets = [0, 0], sizes = [4, 384], strides = [1, 1]} : vector<4x512xf32> to vector<4x384xf32>
    %18 = arith.negf %17 : vector<4x384xf32>
    %19 = math.exp %18 : vector<4x384xf32>
    %cst_17 = arith.constant 1.000000e+00 : f32
    %20 = vector.broadcast %cst_17 : f32 to vector<4x384xf32>
    %21 = arith.addf %20, %19 : vector<4x384xf32>
    %22 = arith.divf %20, %21 : vector<4x384xf32>
    %23 = vector.extract_strided_slice %22 {offsets = [0, 0], sizes = [4, 128], strides = [1, 1]} : vector<4x384xf32> to vector<4x128xf32>
    %24 = vector.extract_strided_slice %22 {offsets = [0, 128], sizes = [4, 128], strides = [1, 1]} : vector<4x384xf32> to vector<4x128xf32>
    %25 = vector.extract_strided_slice %22 {offsets = [0, 256], sizes = [4, 128], strides = [1, 1]} : vector<4x384xf32> to vector<4x128xf32>
    %26 = vector.extract_strided_slice %16 {offsets = [0, 384], sizes = [4, 128], strides = [1, 1]} : vector<4x512xf32> to vector<4x128xf32>
    %27 = math.tanh %26 : vector<4x128xf32>
    %28 = arith.mulf %24, %7 : vector<4x128xf32>
    %29 = arith.mulf %23, %27 : vector<4x128xf32>
    %30 = arith.addf %28, %29 : vector<4x128xf32>
    %31 = math.tanh %30 : vector<4x128xf32>
    %32 = arith.mulf %25, %31 : vector<4x128xf32>
    %c64_i32 = arith.constant 64 : i32
    %33 = tpu.dynamic_rotate %7 by %c64_i32 dim 1 : vector<4x128xf32>, i32 -> vector<4x128xf32>
    %34 = arith.addf %32, %33 : vector<4x128xf32>
    %cst_18 = arith.constant dense<0.000000e+00> : vector<4x512xf32>
    %35 = tpu.matmul %34, %3, %cst_18 {dimension_numbers = #tpu.dot_dimension_numbers<[1], [0], [0], [1], [0, 0, 1, 1], [], []>} : vector<4x128xf32>, vector<128x512xf32>, vector<4x512xf32> -> vector<4x512xf32>
    %36 = vector.broadcast %4 : vector<1x512xf32> to vector<4x512xf32>
    %37 = arith.addf %35, %36 : vector<4x512xf32>
    %38 = vector.extract_strided_slice %37 {offsets = [0, 0], sizes = [4, 384], strides = [1, 1]} : vector<4x512xf32> to vector<4x384xf32>
    %39 = arith.negf %38 : vector<4x384xf32>
    %40 = math.exp %39 : vector<4x384xf32>
    %cst_19 = arith.constant 1.000000e+00 : f32
    %41 = vector.broadcast %cst_19 : f32 to vector<4x384xf32>
    %42 = arith.addf %41, %40 : vector<4x384xf32>
    %43 = arith.divf %41, %42 : vector<4x384xf32>
    %44 = vector.extract_strided_slice %43 {offsets = [0, 0], sizes = [4, 128], strides = [1, 1]} : vector<4x384xf32> to vector<4x128xf32>
    %45 = vector.extract_strided_slice %43 {offsets = [0, 128], sizes = [4, 128], strides = [1, 1]} : vector<4x384xf32> to vector<4x128xf32>
    %46 = vector.extract_strided_slice %43 {offsets = [0, 256], sizes = [4, 128], strides = [1, 1]} : vector<4x384xf32> to vector<4x128xf32>
    %47 = vector.extract_strided_slice %37 {offsets = [0, 384], sizes = [4, 128], strides = [1, 1]} : vector<4x512xf32> to vector<4x128xf32>
    %48 = math.tanh %47 : vector<4x128xf32>
    %49 = arith.mulf %45, %7 : vector<4x128xf32>
    %50 = arith.mulf %44, %48 : vector<4x128xf32>
    %51 = arith.addf %49, %50 : vector<4x128xf32>
    %52 = math.tanh %51 : vector<4x128xf32>
    %53 = arith.mulf %46, %52 : vector<4x128xf32>
    %54 = vector.broadcast %5 : vector<1x128xf32> to vector<4x128xf32>
    %55 = arith.mulf %53, %54 : vector<4x128xf32>
    %cst_20 = arith.constant dense<0.000000e+00> : vector<4xf32>
    %56 = vector.multi_reduction <add>, %55, %cst_20 [1] : vector<4x128xf32> to vector<4xf32>
    %57 = vector.shape_cast %56 : vector<4xf32> to vector<4x1xf32>
    %58 = vector.broadcast %6 : vector<1x1xf32> to vector<4x1xf32>
    %59 = arith.addf %57, %58 : vector<4x1xf32>
    %c0_21 = arith.constant 0 : index
    %c0_22 = arith.constant 0 : index
    %c0_23 = arith.constant 0 : index
    %60 = vector.load %arg9[%c0_21, %c0_22, %c0_23] : memref<12x4x1xf32, #tpu.memory_space<vmem>>, vector<1x4x1xf32>
    %61 = vector.shape_cast %60 : vector<1x4x1xf32> to vector<4x1xf32>
    %62 = vector.shape_cast %59 : vector<4x1xf32> to vector<1x4x1xf32>
    tpu.vector_store %arg9[%c0_21, %c0_22, %c0_23], %62 {strides = array<i32>} : memref<12x4x1xf32, #tpu.memory_space<vmem>>, vector<1x4x1xf32>,
    %c1 = arith.constant 1 : index
    %c0_24 = arith.constant 0 : index
    %c0_25 = arith.constant 0 : index
    %63 = vector.load %arg1[%c1, %c0_24, %c0_25] : memref<8x4x1xf32, #tpu.memory_space<vmem>>, vector<1x4x1xf32>
    %64 = vector.shape_cast %63 : vector<1x4x1xf32> to vector<4x1xf32>
    %cst_26 = arith.constant dense<0.000000e+00> : vector<4x512xf32>
    %65 = tpu.matmul %32, %1, %cst_26 {dimension_numbers = #tpu.dot_dimension_numbers<[1], [0], [0], [1], [0, 0, 1, 1], [], []>} : vector<4x128xf32>, vector<128x512xf32>, vector<4x512xf32> -> vector<4x512xf32>
    %66 = vector.broadcast %64 : vector<4x1xf32> to vector<4x512xf32>
    %67 = vector.broadcast %0 : vector<1x512xf32> to vector<4x512xf32>
    %68 = arith.mulf %66, %67 : vector<4x512xf32>
    %69 = arith.addf %65, %68 : vector<4x512xf32>
    %70 = vector.broadcast %2 : vector<1x512xf32> to vector<4x512xf32>
    %71 = arith.addf %69, %70 : vector<4x512xf32>
    %72 = vector.extract_strided_slice %71 {offsets = [0, 0], sizes = [4, 384], strides = [1, 1]} : vector<4x512xf32> to vector<4x384xf32>
    %73 = arith.negf %72 : vector<4x384xf32>
    %74 = math.exp %73 : vector<4x384xf32>
    %cst_27 = arith.constant 1.000000e+00 : f32
    %75 = vector.broadcast %cst_27 : f32 to vector<4x384xf32>
    %76 = arith.addf %75, %74 : vector<4x384xf32>
    %77 = arith.divf %75, %76 : vector<4x384xf32>
    %78 = vector.extract_strided_slice %77 {offsets = [0, 0], sizes = [4, 128], strides = [1, 1]} : vector<4x384xf32> to vector<4x128xf32>
    %79 = vector.extract_strided_slice %77 {offsets = [0, 128], sizes = [4, 128], strides = [1, 1]} : vector<4x384xf32> to vector<4x128xf32>
    %80 = vector.extract_strided_slice %77 {offsets = [0, 256], sizes = [4, 128], strides = [1, 1]} : vector<4x384xf32> to vector<4x128xf32>
    %81 = vector.extract_strided_slice %71 {offsets = [0, 384], sizes = [4, 128], strides = [1, 1]} : vector<4x512xf32> to vector<4x128xf32>
    %82 = math.tanh %81 : vector<4x128xf32>
    %83 = arith.mulf %79, %30 : vector<4x128xf32>
    %84 = arith.mulf %78, %82 : vector<4x128xf32>
    %85 = arith.addf %83, %84 : vector<4x128xf32>
    %86 = math.tanh %85 : vector<4x128xf32>
    %87 = arith.mulf %80, %86 : vector<4x128xf32>
    %c64_i32_28 = arith.constant 64 : i32
    %88 = tpu.dynamic_rotate %53 by %c64_i32_28 dim 1 : vector<4x128xf32>, i32 -> vector<4x128xf32>
    %89 = arith.addf %87, %88 : vector<4x128xf32>
    %cst_29 = arith.constant dense<0.000000e+00> : vector<4x512xf32>
    %90 = tpu.matmul %89, %3, %cst_29 {dimension_numbers = #tpu.dot_dimension_numbers<[1], [0], [0], [1], [0, 0, 1, 1], [], []>} : vector<4x128xf32>, vector<128x512xf32>, vector<4x512xf32> -> vector<4x512xf32>
    %91 = vector.broadcast %4 : vector<1x512xf32> to vector<4x512xf32>
    %92 = arith.addf %90, %91 : vector<4x512xf32>
    %93 = vector.extract_strided_slice %92 {offsets = [0, 0], sizes = [4, 384], strides = [1, 1]} : vector<4x512xf32> to vector<4x384xf32>
    %94 = arith.negf %93 : vector<4x384xf32>
    %95 = math.exp %94 : vector<4x384xf32>
    %cst_30 = arith.constant 1.000000e+00 : f32
    %96 = vector.broadcast %cst_30 : f32 to vector<4x384xf32>
    %97 = arith.addf %96, %95 : vector<4x384xf32>
    %98 = arith.divf %96, %97 : vector<4x384xf32>
    %99 = vector.extract_strided_slice %98 {offsets = [0, 0], sizes = [4, 128], strides = [1, 1]} : vector<4x384xf32> to vector<4x128xf32>
    %100 = vector.extract_strided_slice %98 {offsets = [0, 128], sizes = [4, 128], strides = [1, 1]} : vector<4x384xf32> to vector<4x128xf32>
    %101 = vector.extract_strided_slice %98 {offsets = [0, 256], sizes = [4, 128], strides = [1, 1]} : vector<4x384xf32> to vector<4x128xf32>
    %102 = vector.extract_strided_slice %92 {offsets = [0, 384], sizes = [4, 128], strides = [1, 1]} : vector<4x512xf32> to vector<4x128xf32>
    %103 = math.tanh %102 : vector<4x128xf32>
    %104 = arith.mulf %100, %51 : vector<4x128xf32>
    %105 = arith.mulf %99, %103 : vector<4x128xf32>
    %106 = arith.addf %104, %105 : vector<4x128xf32>
    %107 = math.tanh %106 : vector<4x128xf32>
    %108 = arith.mulf %101, %107 : vector<4x128xf32>
    %109 = vector.broadcast %5 : vector<1x128xf32> to vector<4x128xf32>
    %110 = arith.mulf %108, %109 : vector<4x128xf32>
    %cst_31 = arith.constant dense<0.000000e+00> : vector<4xf32>
    %111 = vector.multi_reduction <add>, %110, %cst_31 [1] : vector<4x128xf32> to vector<4xf32>
    %112 = vector.shape_cast %111 : vector<4xf32> to vector<4x1xf32>
    %113 = vector.broadcast %6 : vector<1x1xf32> to vector<4x1xf32>
    %114 = arith.addf %112, %113 : vector<4x1xf32>
    %c1_32 = arith.constant 1 : index
    %c0_33 = arith.constant 0 : index
    %c0_34 = arith.constant 0 : index
    %115 = vector.load %arg9[%c1_32, %c0_33, %c0_34] : memref<12x4x1xf32, #tpu.memory_space<vmem>>, vector<1x4x1xf32>
    %116 = vector.shape_cast %115 : vector<1x4x1xf32> to vector<4x1xf32>
    %117 = vector.shape_cast %114 : vector<4x1xf32> to vector<1x4x1xf32>
    tpu.vector_store %arg9[%c1_32, %c0_33, %c0_34], %117 {strides = array<i32>} : memref<12x4x1xf32, #tpu.memory_space<vmem>>, vector<1x4x1xf32>,
    %c2 = arith.constant 2 : index
    %c0_35 = arith.constant 0 : index
    %c0_36 = arith.constant 0 : index
    %118 = vector.load %arg1[%c2, %c0_35, %c0_36] : memref<8x4x1xf32, #tpu.memory_space<vmem>>, vector<1x4x1xf32>
    %119 = vector.shape_cast %118 : vector<1x4x1xf32> to vector<4x1xf32>
    %cst_37 = arith.constant dense<0.000000e+00> : vector<4x512xf32>
    %120 = tpu.matmul %87, %1, %cst_37 {dimension_numbers = #tpu.dot_dimension_numbers<[1], [0], [0], [1], [0, 0, 1, 1], [], []>} : vector<4x128xf32>, vector<128x512xf32>, vector<4x512xf32> -> vector<4x512xf32>
    %121 = vector.broadcast %119 : vector<4x1xf32> to vector<4x512xf32>
    %122 = vector.broadcast %0 : vector<1x512xf32> to vector<4x512xf32>
    %123 = arith.mulf %121, %122 : vector<4x512xf32>
    %124 = arith.addf %120, %123 : vector<4x512xf32>
    %125 = vector.broadcast %2 : vector<1x512xf32> to vector<4x512xf32>
    %126 = arith.addf %124, %125 : vector<4x512xf32>
    %127 = vector.extract_strided_slice %126 {offsets = [0, 0], sizes = [4, 384], strides = [1, 1]} : vector<4x512xf32> to vector<4x384xf32>
    %128 = arith.negf %127 : vector<4x384xf32>
    %129 = math.exp %128 : vector<4x384xf32>
    %cst_38 = arith.constant 1.000000e+00 : f32
    %130 = vector.broadcast %cst_38 : f32 to vector<4x384xf32>
    %131 = arith.addf %130, %129 : vector<4x384xf32>
    %132 = arith.divf %130, %131 : vector<4x384xf32>
    %133 = vector.extract_strided_slice %132 {offsets = [0, 0], sizes = [4, 128], strides = [1, 1]} : vector<4x384xf32> to vector<4x128xf32>
    %134 = vector.extract_strided_slice %132 {offsets = [0, 128], sizes = [4, 128], strides = [1, 1]} : vector<4x384xf32> to vector<4x128xf32>
    %135 = vector.extract_strided_slice %132 {offsets = [0, 256], sizes = [4, 128], strides = [1, 1]} : vector<4x384xf32> to vector<4x128xf32>
    %136 = vector.extract_strided_slice %126 {offsets = [0, 384], sizes = [4, 128], strides = [1, 1]} : vector<4x512xf32> to vector<4x128xf32>
    %137 = math.tanh %136 : vector<4x128xf32>
    %138 = arith.mulf %134, %85 : vector<4x128xf32>
    %139 = arith.mulf %133, %137 : vector<4x128xf32>
    %140 = arith.addf %138, %139 : vector<4x128xf32>
    %141 = math.tanh %140 : vector<4x128xf32>
    %142 = arith.mulf %135, %141 : vector<4x128xf32>
    %c64_i32_39 = arith.constant 64 : i32
    %143 = tpu.dynamic_rotate %108 by %c64_i32_39 dim 1 : vector<4x128xf32>, i32 -> vector<4x128xf32>
    %144 = arith.addf %142, %143 : vector<4x128xf32>
    %cst_40 = arith.constant dense<0.000000e+00> : vector<4x512xf32>
    %145 = tpu.matmul %144, %3, %cst_40 {dimension_numbers = #tpu.dot_dimension_numbers<[1], [0], [0], [1], [0, 0, 1, 1], [], []>} : vector<4x128xf32>, vector<128x512xf32>, vector<4x512xf32> -> vector<4x512xf32>
    %146 = vector.broadcast %4 : vector<1x512xf32> to vector<4x512xf32>
    %147 = arith.addf %145, %146 : vector<4x512xf32>
    %148 = vector.extract_strided_slice %147 {offsets = [0, 0], sizes = [4, 384], strides = [1, 1]} : vector<4x512xf32> to vector<4x384xf32>
    %149 = arith.negf %148 : vector<4x384xf32>
    %150 = math.exp %149 : vector<4x384xf32>
    %cst_41 = arith.constant 1.000000e+00 : f32
    %151 = vector.broadcast %cst_41 : f32 to vector<4x384xf32>
    %152 = arith.addf %151, %150 : vector<4x384xf32>
    %153 = arith.divf %151, %152 : vector<4x384xf32>
    %154 = vector.extract_strided_slice %153 {offsets = [0, 0], sizes = [4, 128], strides = [1, 1]} : vector<4x384xf32> to vector<4x128xf32>
    %155 = vector.extract_strided_slice %153 {offsets = [0, 128], sizes = [4, 128], strides = [1, 1]} : vector<4x384xf32> to vector<4x128xf32>
    %156 = vector.extract_strided_slice %153 {offsets = [0, 256], sizes = [4, 128], strides = [1, 1]} : vector<4x384xf32> to vector<4x128xf32>
    %157 = vector.extract_strided_slice %147 {offsets = [0, 384], sizes = [4, 128], strides = [1, 1]} : vector<4x512xf32> to vector<4x128xf32>
    %158 = math.tanh %157 : vector<4x128xf32>
    %159 = arith.mulf %155, %106 : vector<4x128xf32>
    %160 = arith.mulf %154, %158 : vector<4x128xf32>
    %161 = arith.addf %159, %160 : vector<4x128xf32>
    %162 = math.tanh %161 : vector<4x128xf32>
    %163 = arith.mulf %156, %162 : vector<4x128xf32>
    %164 = vector.broadcast %5 : vector<1x128xf32> to vector<4x128xf32>
    %165 = arith.mulf %163, %164 : vector<4x128xf32>
    %cst_42 = arith.constant dense<0.000000e+00> : vector<4xf32>
    %166 = vector.multi_reduction <add>, %165, %cst_42 [1] : vector<4x128xf32> to vector<4xf32>
    %167 = vector.shape_cast %166 : vector<4xf32> to vector<4x1xf32>
    %168 = vector.broadcast %6 : vector<1x1xf32> to vector<4x1xf32>
    %169 = arith.addf %167, %168 : vector<4x1xf32>
    %c2_43 = arith.constant 2 : index
    %c0_44 = arith.constant 0 : index
    %c0_45 = arith.constant 0 : index
    %170 = vector.load %arg9[%c2_43, %c0_44, %c0_45] : memref<12x4x1xf32, #tpu.memory_space<vmem>>, vector<1x4x1xf32>
    %171 = vector.shape_cast %170 : vector<1x4x1xf32> to vector<4x1xf32>
    %172 = vector.shape_cast %169 : vector<4x1xf32> to vector<1x4x1xf32>
    tpu.vector_store %arg9[%c2_43, %c0_44, %c0_45], %172 {strides = array<i32>} : memref<12x4x1xf32, #tpu.memory_space<vmem>>, vector<1x4x1xf32>,
    %c3 = arith.constant 3 : index
    %c0_46 = arith.constant 0 : index
    %c0_47 = arith.constant 0 : index
    %173 = vector.load %arg1[%c3, %c0_46, %c0_47] : memref<8x4x1xf32, #tpu.memory_space<vmem>>, vector<1x4x1xf32>
    %174 = vector.shape_cast %173 : vector<1x4x1xf32> to vector<4x1xf32>
    %cst_48 = arith.constant dense<0.000000e+00> : vector<4x512xf32>
    %175 = tpu.matmul %142, %1, %cst_48 {dimension_numbers = #tpu.dot_dimension_numbers<[1], [0], [0], [1], [0, 0, 1, 1], [], []>} : vector<4x128xf32>, vector<128x512xf32>, vector<4x512xf32> -> vector<4x512xf32>
    %176 = vector.broadcast %174 : vector<4x1xf32> to vector<4x512xf32>
    %177 = vector.broadcast %0 : vector<1x512xf32> to vector<4x512xf32>
    %178 = arith.mulf %176, %177 : vector<4x512xf32>
    %179 = arith.addf %175, %178 : vector<4x512xf32>
    %180 = vector.broadcast %2 : vector<1x512xf32> to vector<4x512xf32>
    %181 = arith.addf %179, %180 : vector<4x512xf32>
    %182 = vector.extract_strided_slice %181 {offsets = [0, 0], sizes = [4, 384], strides = [1, 1]} : vector<4x512xf32> to vector<4x384xf32>
    %183 = arith.negf %182 : vector<4x384xf32>
    %184 = math.exp %183 : vector<4x384xf32>
    %cst_49 = arith.constant 1.000000e+00 : f32
    %185 = vector.broadcast %cst_49 : f32 to vector<4x384xf32>
    %186 = arith.addf %185, %184 : vector<4x384xf32>
    %187 = arith.divf %185, %186 : vector<4x384xf32>
    %188 = vector.extract_strided_slice %187 {offsets = [0, 0], sizes = [4, 128], strides = [1, 1]} : vector<4x384xf32> to vector<4x128xf32>
    %189 = vector.extract_strided_slice %187 {offsets = [0, 128], sizes = [4, 128], strides = [1, 1]} : vector<4x384xf32> to vector<4x128xf32>
    %190 = vector.extract_strided_slice %187 {offsets = [0, 256], sizes = [4, 128], strides = [1, 1]} : vector<4x384xf32> to vector<4x128xf32>
    %191 = vector.extract_strided_slice %181 {offsets = [0, 384], sizes = [4, 128], strides = [1, 1]} : vector<4x512xf32> to vector<4x128xf32>
    %192 = math.tanh %191 : vector<4x128xf32>
    %193 = arith.mulf %189, %140 : vector<4x128xf32>
    %194 = arith.mulf %188, %192 : vector<4x128xf32>
    %195 = arith.addf %193, %194 : vector<4x128xf32>
    %196 = math.tanh %195 : vector<4x128xf32>
    %197 = arith.mulf %190, %196 : vector<4x128xf32>
    %c64_i32_50 = arith.constant 64 : i32
    %198 = tpu.dynamic_rotate %163 by %c64_i32_50 dim 1 : vector<4x128xf32>, i32 -> vector<4x128xf32>
    %199 = arith.addf %197, %198 : vector<4x128xf32>
    %cst_51 = arith.constant dense<0.000000e+00> : vector<4x512xf32>
    %200 = tpu.matmul %199, %3, %cst_51 {dimension_numbers = #tpu.dot_dimension_numbers<[1], [0], [0], [1], [0, 0, 1, 1], [], []>} : vector<4x128xf32>, vector<128x512xf32>, vector<4x512xf32> -> vector<4x512xf32>
    %201 = vector.broadcast %4 : vector<1x512xf32> to vector<4x512xf32>
    %202 = arith.addf %200, %201 : vector<4x512xf32>
    %203 = vector.extract_strided_slice %202 {offsets = [0, 0], sizes = [4, 384], strides = [1, 1]} : vector<4x512xf32> to vector<4x384xf32>
    %204 = arith.negf %203 : vector<4x384xf32>
    %205 = math.exp %204 : vector<4x384xf32>
    %cst_52 = arith.constant 1.000000e+00 : f32
    %206 = vector.broadcast %cst_52 : f32 to vector<4x384xf32>
    %207 = arith.addf %206, %205 : vector<4x384xf32>
    %208 = arith.divf %206, %207 : vector<4x384xf32>
    %209 = vector.extract_strided_slice %208 {offsets = [0, 0], sizes = [4, 128], strides = [1, 1]} : vector<4x384xf32> to vector<4x128xf32>
    %210 = vector.extract_strided_slice %208 {offsets = [0, 128], sizes = [4, 128], strides = [1, 1]} : vector<4x384xf32> to vector<4x128xf32>
    %211 = vector.extract_strided_slice %208 {offsets = [0, 256], sizes = [4, 128], strides = [1, 1]} : vector<4x384xf32> to vector<4x128xf32>
    %212 = vector.extract_strided_slice %202 {offsets = [0, 384], sizes = [4, 128], strides = [1, 1]} : vector<4x512xf32> to vector<4x128xf32>
    %213 = math.tanh %212 : vector<4x128xf32>
    %214 = arith.mulf %210, %161 : vector<4x128xf32>
    %215 = arith.mulf %209, %213 : vector<4x128xf32>
    %216 = arith.addf %214, %215 : vector<4x128xf32>
    %217 = math.tanh %216 : vector<4x128xf32>
    %218 = arith.mulf %211, %217 : vector<4x128xf32>
    %219 = vector.broadcast %5 : vector<1x128xf32> to vector<4x128xf32>
    %220 = arith.mulf %218, %219 : vector<4x128xf32>
    %cst_53 = arith.constant dense<0.000000e+00> : vector<4xf32>
    %221 = vector.multi_reduction <add>, %220, %cst_53 [1] : vector<4x128xf32> to vector<4xf32>
    %222 = vector.shape_cast %221 : vector<4xf32> to vector<4x1xf32>
    %223 = vector.broadcast %6 : vector<1x1xf32> to vector<4x1xf32>
    %224 = arith.addf %222, %223 : vector<4x1xf32>
    %c3_54 = arith.constant 3 : index
    %c0_55 = arith.constant 0 : index
    %c0_56 = arith.constant 0 : index
    %225 = vector.load %arg9[%c3_54, %c0_55, %c0_56] : memref<12x4x1xf32, #tpu.memory_space<vmem>>, vector<1x4x1xf32>
    %226 = vector.shape_cast %225 : vector<1x4x1xf32> to vector<4x1xf32>
    %227 = vector.shape_cast %224 : vector<4x1xf32> to vector<1x4x1xf32>
    tpu.vector_store %arg9[%c3_54, %c0_55, %c0_56], %227 {strides = array<i32>} : memref<12x4x1xf32, #tpu.memory_space<vmem>>, vector<1x4x1xf32>,
    %c4 = arith.constant 4 : index
    %c0_57 = arith.constant 0 : index
    %c0_58 = arith.constant 0 : index
    %228 = vector.load %arg1[%c4, %c0_57, %c0_58] : memref<8x4x1xf32, #tpu.memory_space<vmem>>, vector<1x4x1xf32>
    %229 = vector.shape_cast %228 : vector<1x4x1xf32> to vector<4x1xf32>
    %cst_59 = arith.constant dense<0.000000e+00> : vector<4x512xf32>
    %230 = tpu.matmul %197, %1, %cst_59 {dimension_numbers = #tpu.dot_dimension_numbers<[1], [0], [0], [1], [0, 0, 1, 1], [], []>} : vector<4x128xf32>, vector<128x512xf32>, vector<4x512xf32> -> vector<4x512xf32>
    %231 = vector.broadcast %229 : vector<4x1xf32> to vector<4x512xf32>
    %232 = vector.broadcast %0 : vector<1x512xf32> to vector<4x512xf32>
    %233 = arith.mulf %231, %232 : vector<4x512xf32>
    %234 = arith.addf %230, %233 : vector<4x512xf32>
    %235 = vector.broadcast %2 : vector<1x512xf32> to vector<4x512xf32>
    %236 = arith.addf %234, %235 : vector<4x512xf32>
    %237 = vector.extract_strided_slice %236 {offsets = [0, 0], sizes = [4, 384], strides = [1, 1]} : vector<4x512xf32> to vector<4x384xf32>
    %238 = arith.negf %237 : vector<4x384xf32>
    %239 = math.exp %238 : vector<4x384xf32>
    %cst_60 = arith.constant 1.000000e+00 : f32
    %240 = vector.broadcast %cst_60 : f32 to vector<4x384xf32>
    %241 = arith.addf %240, %239 : vector<4x384xf32>
    %242 = arith.divf %240, %241 : vector<4x384xf32>
    %243 = vector.extract_strided_slice %242 {offsets = [0, 0], sizes = [4, 128], strides = [1, 1]} : vector<4x384xf32> to vector<4x128xf32>
    %244 = vector.extract_strided_slice %242 {offsets = [0, 128], sizes = [4, 128], strides = [1, 1]} : vector<4x384xf32> to vector<4x128xf32>
    %245 = vector.extract_strided_slice %242 {offsets = [0, 256], sizes = [4, 128], strides = [1, 1]} : vector<4x384xf32> to vector<4x128xf32>
    %246 = vector.extract_strided_slice %236 {offsets = [0, 384], sizes = [4, 128], strides = [1, 1]} : vector<4x512xf32> to vector<4x128xf32>
    %247 = math.tanh %246 : vector<4x128xf32>
    %248 = arith.mulf %244, %195 : vector<4x128xf32>
    %249 = arith.mulf %243, %247 : vector<4x128xf32>
    %250 = arith.addf %248, %249 : vector<4x128xf32>
    %251 = math.tanh %250 : vector<4x128xf32>
    %252 = arith.mulf %245, %251 : vector<4x128xf32>
    %c64_i32_61 = arith.constant 64 : i32
    %253 = tpu.dynamic_rotate %218 by %c64_i32_61 dim 1 : vector<4x128xf32>, i32 -> vector<4x128xf32>
    %254 = arith.addf %252, %253 : vector<4x128xf32>
    %cst_62 = arith.constant dense<0.000000e+00> : vector<4x512xf32>
    %255 = tpu.matmul %254, %3, %cst_62 {dimension_numbers = #tpu.dot_dimension_numbers<[1], [0], [0], [1], [0, 0, 1, 1], [], []>} : vector<4x128xf32>, vector<128x512xf32>, vector<4x512xf32> -> vector<4x512xf32>
    %256 = vector.broadcast %4 : vector<1x512xf32> to vector<4x512xf32>
    %257 = arith.addf %255, %256 : vector<4x512xf32>
    %258 = vector.extract_strided_slice %257 {offsets = [0, 0], sizes = [4, 384], strides = [1, 1]} : vector<4x512xf32> to vector<4x384xf32>
    %259 = arith.negf %258 : vector<4x384xf32>
    %260 = math.exp %259 : vector<4x384xf32>
    %cst_63 = arith.constant 1.000000e+00 : f32
    %261 = vector.broadcast %cst_63 : f32 to vector<4x384xf32>
    %262 = arith.addf %261, %260 : vector<4x384xf32>
    %263 = arith.divf %261, %262 : vector<4x384xf32>
    %264 = vector.extract_strided_slice %263 {offsets = [0, 0], sizes = [4, 128], strides = [1, 1]} : vector<4x384xf32> to vector<4x128xf32>
    %265 = vector.extract_strided_slice %263 {offsets = [0, 128], sizes = [4, 128], strides = [1, 1]} : vector<4x384xf32> to vector<4x128xf32>
    %266 = vector.extract_strided_slice %263 {offsets = [0, 256], sizes = [4, 128], strides = [1, 1]} : vector<4x384xf32> to vector<4x128xf32>
    %267 = vector.extract_strided_slice %257 {offsets = [0, 384], sizes = [4, 128], strides = [1, 1]} : vector<4x512xf32> to vector<4x128xf32>
    %268 = math.tanh %267 : vector<4x128xf32>
    %269 = arith.mulf %265, %216 : vector<4x128xf32>
    %270 = arith.mulf %264, %268 : vector<4x128xf32>
    %271 = arith.addf %269, %270 : vector<4x128xf32>
    %272 = math.tanh %271 : vector<4x128xf32>
    %273 = arith.mulf %266, %272 : vector<4x128xf32>
    %274 = vector.broadcast %5 : vector<1x128xf32> to vector<4x128xf32>
    %275 = arith.mulf %273, %274 : vector<4x128xf32>
    %cst_64 = arith.constant dense<0.000000e+00> : vector<4xf32>
    %276 = vector.multi_reduction <add>, %275, %cst_64 [1] : vector<4x128xf32> to vector<4xf32>
    %277 = vector.shape_cast %276 : vector<4xf32> to vector<4x1xf32>
    %278 = vector.broadcast %6 : vector<1x1xf32> to vector<4x1xf32>
    %279 = arith.addf %277, %278 : vector<4x1xf32>
    %c4_65 = arith.constant 4 : index
    %c0_66 = arith.constant 0 : index
    %c0_67 = arith.constant 0 : index
    %280 = vector.load %arg9[%c4_65, %c0_66, %c0_67] : memref<12x4x1xf32, #tpu.memory_space<vmem>>, vector<1x4x1xf32>
    %281 = vector.shape_cast %280 : vector<1x4x1xf32> to vector<4x1xf32>
    %282 = vector.shape_cast %279 : vector<4x1xf32> to vector<1x4x1xf32>
    tpu.vector_store %arg9[%c4_65, %c0_66, %c0_67], %282 {strides = array<i32>} : memref<12x4x1xf32, #tpu.memory_space<vmem>>, vector<1x4x1xf32>,
    %c5 = arith.constant 5 : index
    %c0_68 = arith.constant 0 : index
    %c0_69 = arith.constant 0 : index
    %283 = vector.load %arg1[%c5, %c0_68, %c0_69] : memref<8x4x1xf32, #tpu.memory_space<vmem>>, vector<1x4x1xf32>
    %284 = vector.shape_cast %283 : vector<1x4x1xf32> to vector<4x1xf32>
    %cst_70 = arith.constant dense<0.000000e+00> : vector<4x512xf32>
    %285 = tpu.matmul %252, %1, %cst_70 {dimension_numbers = #tpu.dot_dimension_numbers<[1], [0], [0], [1], [0, 0, 1, 1], [], []>} : vector<4x128xf32>, vector<128x512xf32>, vector<4x512xf32> -> vector<4x512xf32>
    %286 = vector.broadcast %284 : vector<4x1xf32> to vector<4x512xf32>
    %287 = vector.broadcast %0 : vector<1x512xf32> to vector<4x512xf32>
    %288 = arith.mulf %286, %287 : vector<4x512xf32>
    %289 = arith.addf %285, %288 : vector<4x512xf32>
    %290 = vector.broadcast %2 : vector<1x512xf32> to vector<4x512xf32>
    %291 = arith.addf %289, %290 : vector<4x512xf32>
    %292 = vector.extract_strided_slice %291 {offsets = [0, 0], sizes = [4, 384], strides = [1, 1]} : vector<4x512xf32> to vector<4x384xf32>
    %293 = arith.negf %292 : vector<4x384xf32>
    %294 = math.exp %293 : vector<4x384xf32>
    %cst_71 = arith.constant 1.000000e+00 : f32
    %295 = vector.broadcast %cst_71 : f32 to vector<4x384xf32>
    %296 = arith.addf %295, %294 : vector<4x384xf32>
    %297 = arith.divf %295, %296 : vector<4x384xf32>
    %298 = vector.extract_strided_slice %297 {offsets = [0, 0], sizes = [4, 128], strides = [1, 1]} : vector<4x384xf32> to vector<4x128xf32>
    %299 = vector.extract_strided_slice %297 {offsets = [0, 128], sizes = [4, 128], strides = [1, 1]} : vector<4x384xf32> to vector<4x128xf32>
    %300 = vector.extract_strided_slice %297 {offsets = [0, 256], sizes = [4, 128], strides = [1, 1]} : vector<4x384xf32> to vector<4x128xf32>
    %301 = vector.extract_strided_slice %291 {offsets = [0, 384], sizes = [4, 128], strides = [1, 1]} : vector<4x512xf32> to vector<4x128xf32>
    %302 = math.tanh %301 : vector<4x128xf32>
    %303 = arith.mulf %299, %250 : vector<4x128xf32>
    %304 = arith.mulf %298, %302 : vector<4x128xf32>
    %305 = arith.addf %303, %304 : vector<4x128xf32>
    %306 = math.tanh %305 : vector<4x128xf32>
    %307 = arith.mulf %300, %306 : vector<4x128xf32>
    %c64_i32_72 = arith.constant 64 : i32
    %308 = tpu.dynamic_rotate %273 by %c64_i32_72 dim 1 : vector<4x128xf32>, i32 -> vector<4x128xf32>
    %309 = arith.addf %307, %308 : vector<4x128xf32>
    %cst_73 = arith.constant dense<0.000000e+00> : vector<4x512xf32>
    %310 = tpu.matmul %309, %3, %cst_73 {dimension_numbers = #tpu.dot_dimension_numbers<[1], [0], [0], [1], [0, 0, 1, 1], [], []>} : vector<4x128xf32>, vector<128x512xf32>, vector<4x512xf32> -> vector<4x512xf32>
    %311 = vector.broadcast %4 : vector<1x512xf32> to vector<4x512xf32>
    %312 = arith.addf %310, %311 : vector<4x512xf32>
    %313 = vector.extract_strided_slice %312 {offsets = [0, 0], sizes = [4, 384], strides = [1, 1]} : vector<4x512xf32> to vector<4x384xf32>
    %314 = arith.negf %313 : vector<4x384xf32>
    %315 = math.exp %314 : vector<4x384xf32>
    %cst_74 = arith.constant 1.000000e+00 : f32
    %316 = vector.broadcast %cst_74 : f32 to vector<4x384xf32>
    %317 = arith.addf %316, %315 : vector<4x384xf32>
    %318 = arith.divf %316, %317 : vector<4x384xf32>
    %319 = vector.extract_strided_slice %318 {offsets = [0, 0], sizes = [4, 128], strides = [1, 1]} : vector<4x384xf32> to vector<4x128xf32>
    %320 = vector.extract_strided_slice %318 {offsets = [0, 128], sizes = [4, 128], strides = [1, 1]} : vector<4x384xf32> to vector<4x128xf32>
    %321 = vector.extract_strided_slice %318 {offsets = [0, 256], sizes = [4, 128], strides = [1, 1]} : vector<4x384xf32> to vector<4x128xf32>
    %322 = vector.extract_strided_slice %312 {offsets = [0, 384], sizes = [4, 128], strides = [1, 1]} : vector<4x512xf32> to vector<4x128xf32>
    %323 = math.tanh %322 : vector<4x128xf32>
    %324 = arith.mulf %320, %271 : vector<4x128xf32>
    %325 = arith.mulf %319, %323 : vector<4x128xf32>
    %326 = arith.addf %324, %325 : vector<4x128xf32>
    %327 = math.tanh %326 : vector<4x128xf32>
    %328 = arith.mulf %321, %327 : vector<4x128xf32>
    %329 = vector.broadcast %5 : vector<1x128xf32> to vector<4x128xf32>
    %330 = arith.mulf %328, %329 : vector<4x128xf32>
    %cst_75 = arith.constant dense<0.000000e+00> : vector<4xf32>
    %331 = vector.multi_reduction <add>, %330, %cst_75 [1] : vector<4x128xf32> to vector<4xf32>
    %332 = vector.shape_cast %331 : vector<4xf32> to vector<4x1xf32>
    %333 = vector.broadcast %6 : vector<1x1xf32> to vector<4x1xf32>
    %334 = arith.addf %332, %333 : vector<4x1xf32>
    %c5_76 = arith.constant 5 : index
    %c0_77 = arith.constant 0 : index
    %c0_78 = arith.constant 0 : index
    %335 = vector.load %arg9[%c5_76, %c0_77, %c0_78] : memref<12x4x1xf32, #tpu.memory_space<vmem>>, vector<1x4x1xf32>
    %336 = vector.shape_cast %335 : vector<1x4x1xf32> to vector<4x1xf32>
    %337 = vector.shape_cast %334 : vector<4x1xf32> to vector<1x4x1xf32>
    tpu.vector_store %arg9[%c5_76, %c0_77, %c0_78], %337 {strides = array<i32>} : memref<12x4x1xf32, #tpu.memory_space<vmem>>, vector<1x4x1xf32>,
    %c6 = arith.constant 6 : index
    %c0_79 = arith.constant 0 : index
    %c0_80 = arith.constant 0 : index
    %338 = vector.load %arg1[%c6, %c0_79, %c0_80] : memref<8x4x1xf32, #tpu.memory_space<vmem>>, vector<1x4x1xf32>
    %339 = vector.shape_cast %338 : vector<1x4x1xf32> to vector<4x1xf32>
    %cst_81 = arith.constant dense<0.000000e+00> : vector<4x512xf32>
    %340 = tpu.matmul %307, %1, %cst_81 {dimension_numbers = #tpu.dot_dimension_numbers<[1], [0], [0], [1], [0, 0, 1, 1], [], []>} : vector<4x128xf32>, vector<128x512xf32>, vector<4x512xf32> -> vector<4x512xf32>
    %341 = vector.broadcast %339 : vector<4x1xf32> to vector<4x512xf32>
    %342 = vector.broadcast %0 : vector<1x512xf32> to vector<4x512xf32>
    %343 = arith.mulf %341, %342 : vector<4x512xf32>
    %344 = arith.addf %340, %343 : vector<4x512xf32>
    %345 = vector.broadcast %2 : vector<1x512xf32> to vector<4x512xf32>
    %346 = arith.addf %344, %345 : vector<4x512xf32>
    %347 = vector.extract_strided_slice %346 {offsets = [0, 0], sizes = [4, 384], strides = [1, 1]} : vector<4x512xf32> to vector<4x384xf32>
    %348 = arith.negf %347 : vector<4x384xf32>
    %349 = math.exp %348 : vector<4x384xf32>
    %cst_82 = arith.constant 1.000000e+00 : f32
    %350 = vector.broadcast %cst_82 : f32 to vector<4x384xf32>
    %351 = arith.addf %350, %349 : vector<4x384xf32>
    %352 = arith.divf %350, %351 : vector<4x384xf32>
    %353 = vector.extract_strided_slice %352 {offsets = [0, 0], sizes = [4, 128], strides = [1, 1]} : vector<4x384xf32> to vector<4x128xf32>
    %354 = vector.extract_strided_slice %352 {offsets = [0, 128], sizes = [4, 128], strides = [1, 1]} : vector<4x384xf32> to vector<4x128xf32>
    %355 = vector.extract_strided_slice %352 {offsets = [0, 256], sizes = [4, 128], strides = [1, 1]} : vector<4x384xf32> to vector<4x128xf32>
    %356 = vector.extract_strided_slice %346 {offsets = [0, 384], sizes = [4, 128], strides = [1, 1]} : vector<4x512xf32> to vector<4x128xf32>
    %357 = math.tanh %356 : vector<4x128xf32>
    %358 = arith.mulf %354, %305 : vector<4x128xf32>
    %359 = arith.mulf %353, %357 : vector<4x128xf32>
    %360 = arith.addf %358, %359 : vector<4x128xf32>
    %361 = math.tanh %360 : vector<4x128xf32>
    %362 = arith.mulf %355, %361 : vector<4x128xf32>
    %c64_i32_83 = arith.constant 64 : i32
    %363 = tpu.dynamic_rotate %328 by %c64_i32_83 dim 1 : vector<4x128xf32>, i32 -> vector<4x128xf32>
    %364 = arith.addf %362, %363 : vector<4x128xf32>
    %cst_84 = arith.constant dense<0.000000e+00> : vector<4x512xf32>
    %365 = tpu.matmul %364, %3, %cst_84 {dimension_numbers = #tpu.dot_dimension_numbers<[1], [0], [0], [1], [0, 0, 1, 1], [], []>} : vector<4x128xf32>, vector<128x512xf32>, vector<4x512xf32> -> vector<4x512xf32>
    %366 = vector.broadcast %4 : vector<1x512xf32> to vector<4x512xf32>
    %367 = arith.addf %365, %366 : vector<4x512xf32>
    %368 = vector.extract_strided_slice %367 {offsets = [0, 0], sizes = [4, 384], strides = [1, 1]} : vector<4x512xf32> to vector<4x384xf32>
    %369 = arith.negf %368 : vector<4x384xf32>
    %370 = math.exp %369 : vector<4x384xf32>
    %cst_85 = arith.constant 1.000000e+00 : f32
    %371 = vector.broadcast %cst_85 : f32 to vector<4x384xf32>
    %372 = arith.addf %371, %370 : vector<4x384xf32>
    %373 = arith.divf %371, %372 : vector<4x384xf32>
    %374 = vector.extract_strided_slice %373 {offsets = [0, 0], sizes = [4, 128], strides = [1, 1]} : vector<4x384xf32> to vector<4x128xf32>
    %375 = vector.extract_strided_slice %373 {offsets = [0, 128], sizes = [4, 128], strides = [1, 1]} : vector<4x384xf32> to vector<4x128xf32>
    %376 = vector.extract_strided_slice %373 {offsets = [0, 256], sizes = [4, 128], strides = [1, 1]} : vector<4x384xf32> to vector<4x128xf32>
    %377 = vector.extract_strided_slice %367 {offsets = [0, 384], sizes = [4, 128], strides = [1, 1]} : vector<4x512xf32> to vector<4x128xf32>
    %378 = math.tanh %377 : vector<4x128xf32>
    %379 = arith.mulf %375, %326 : vector<4x128xf32>
    %380 = arith.mulf %374, %378 : vector<4x128xf32>
    %381 = arith.addf %379, %380 : vector<4x128xf32>
    %382 = math.tanh %381 : vector<4x128xf32>
    %383 = arith.mulf %376, %382 : vector<4x128xf32>
    %384 = vector.broadcast %5 : vector<1x128xf32> to vector<4x128xf32>
    %385 = arith.mulf %383, %384 : vector<4x128xf32>
    %cst_86 = arith.constant dense<0.000000e+00> : vector<4xf32>
    %386 = vector.multi_reduction <add>, %385, %cst_86 [1] : vector<4x128xf32> to vector<4xf32>
    %387 = vector.shape_cast %386 : vector<4xf32> to vector<4x1xf32>
    %388 = vector.broadcast %6 : vector<1x1xf32> to vector<4x1xf32>
    %389 = arith.addf %387, %388 : vector<4x1xf32>
    %c6_87 = arith.constant 6 : index
    %c0_88 = arith.constant 0 : index
    %c0_89 = arith.constant 0 : index
    %390 = vector.load %arg9[%c6_87, %c0_88, %c0_89] : memref<12x4x1xf32, #tpu.memory_space<vmem>>, vector<1x4x1xf32>
    %391 = vector.shape_cast %390 : vector<1x4x1xf32> to vector<4x1xf32>
    %392 = vector.shape_cast %389 : vector<4x1xf32> to vector<1x4x1xf32>
    tpu.vector_store %arg9[%c6_87, %c0_88, %c0_89], %392 {strides = array<i32>} : memref<12x4x1xf32, #tpu.memory_space<vmem>>, vector<1x4x1xf32>,
    %c7 = arith.constant 7 : index
    %c0_90 = arith.constant 0 : index
    %c0_91 = arith.constant 0 : index
    %393 = vector.load %arg1[%c7, %c0_90, %c0_91] : memref<8x4x1xf32, #tpu.memory_space<vmem>>, vector<1x4x1xf32>
    %394 = vector.shape_cast %393 : vector<1x4x1xf32> to vector<4x1xf32>
    %cst_92 = arith.constant dense<0.000000e+00> : vector<4x512xf32>
    %395 = tpu.matmul %362, %1, %cst_92 {dimension_numbers = #tpu.dot_dimension_numbers<[1], [0], [0], [1], [0, 0, 1, 1], [], []>} : vector<4x128xf32>, vector<128x512xf32>, vector<4x512xf32> -> vector<4x512xf32>
    %396 = vector.broadcast %394 : vector<4x1xf32> to vector<4x512xf32>
    %397 = vector.broadcast %0 : vector<1x512xf32> to vector<4x512xf32>
    %398 = arith.mulf %396, %397 : vector<4x512xf32>
    %399 = arith.addf %395, %398 : vector<4x512xf32>
    %400 = vector.broadcast %2 : vector<1x512xf32> to vector<4x512xf32>
    %401 = arith.addf %399, %400 : vector<4x512xf32>
    %402 = vector.extract_strided_slice %401 {offsets = [0, 0], sizes = [4, 384], strides = [1, 1]} : vector<4x512xf32> to vector<4x384xf32>
    %403 = arith.negf %402 : vector<4x384xf32>
    %404 = math.exp %403 : vector<4x384xf32>
    %cst_93 = arith.constant 1.000000e+00 : f32
    %405 = vector.broadcast %cst_93 : f32 to vector<4x384xf32>
    %406 = arith.addf %405, %404 : vector<4x384xf32>
    %407 = arith.divf %405, %406 : vector<4x384xf32>
    %408 = vector.extract_strided_slice %407 {offsets = [0, 0], sizes = [4, 128], strides = [1, 1]} : vector<4x384xf32> to vector<4x128xf32>
    %409 = vector.extract_strided_slice %407 {offsets = [0, 128], sizes = [4, 128], strides = [1, 1]} : vector<4x384xf32> to vector<4x128xf32>
    %410 = vector.extract_strided_slice %407 {offsets = [0, 256], sizes = [4, 128], strides = [1, 1]} : vector<4x384xf32> to vector<4x128xf32>
    %411 = vector.extract_strided_slice %401 {offsets = [0, 384], sizes = [4, 128], strides = [1, 1]} : vector<4x512xf32> to vector<4x128xf32>
    %412 = math.tanh %411 : vector<4x128xf32>
    %413 = arith.mulf %409, %360 : vector<4x128xf32>
    %414 = arith.mulf %408, %412 : vector<4x128xf32>
    %415 = arith.addf %413, %414 : vector<4x128xf32>
    %416 = math.tanh %415 : vector<4x128xf32>
    %417 = arith.mulf %410, %416 : vector<4x128xf32>
    %c64_i32_94 = arith.constant 64 : i32
    %418 = tpu.dynamic_rotate %383 by %c64_i32_94 dim 1 : vector<4x128xf32>, i32 -> vector<4x128xf32>
    %419 = arith.addf %417, %418 : vector<4x128xf32>
    %cst_95 = arith.constant dense<0.000000e+00> : vector<4x512xf32>
    %420 = tpu.matmul %419, %3, %cst_95 {dimension_numbers = #tpu.dot_dimension_numbers<[1], [0], [0], [1], [0, 0, 1, 1], [], []>} : vector<4x128xf32>, vector<128x512xf32>, vector<4x512xf32> -> vector<4x512xf32>
    %421 = vector.broadcast %4 : vector<1x512xf32> to vector<4x512xf32>
    %422 = arith.addf %420, %421 : vector<4x512xf32>
    %423 = vector.extract_strided_slice %422 {offsets = [0, 0], sizes = [4, 384], strides = [1, 1]} : vector<4x512xf32> to vector<4x384xf32>
    %424 = arith.negf %423 : vector<4x384xf32>
    %425 = math.exp %424 : vector<4x384xf32>
    %cst_96 = arith.constant 1.000000e+00 : f32
    %426 = vector.broadcast %cst_96 : f32 to vector<4x384xf32>
    %427 = arith.addf %426, %425 : vector<4x384xf32>
    %428 = arith.divf %426, %427 : vector<4x384xf32>
    %429 = vector.extract_strided_slice %428 {offsets = [0, 0], sizes = [4, 128], strides = [1, 1]} : vector<4x384xf32> to vector<4x128xf32>
    %430 = vector.extract_strided_slice %428 {offsets = [0, 128], sizes = [4, 128], strides = [1, 1]} : vector<4x384xf32> to vector<4x128xf32>
    %431 = vector.extract_strided_slice %428 {offsets = [0, 256], sizes = [4, 128], strides = [1, 1]} : vector<4x384xf32> to vector<4x128xf32>
    %432 = vector.extract_strided_slice %422 {offsets = [0, 384], sizes = [4, 128], strides = [1, 1]} : vector<4x512xf32> to vector<4x128xf32>
    %433 = math.tanh %432 : vector<4x128xf32>
    %434 = arith.mulf %430, %381 : vector<4x128xf32>
    %435 = arith.mulf %429, %433 : vector<4x128xf32>
    %436 = arith.addf %434, %435 : vector<4x128xf32>
    %437 = math.tanh %436 : vector<4x128xf32>
    %438 = arith.mulf %431, %437 : vector<4x128xf32>
    %439 = vector.broadcast %5 : vector<1x128xf32> to vector<4x128xf32>
    %440 = arith.mulf %438, %439 : vector<4x128xf32>
    %cst_97 = arith.constant dense<0.000000e+00> : vector<4xf32>
    %441 = vector.multi_reduction <add>, %440, %cst_97 [1] : vector<4x128xf32> to vector<4xf32>
    %442 = vector.shape_cast %441 : vector<4xf32> to vector<4x1xf32>
    %443 = vector.broadcast %6 : vector<1x1xf32> to vector<4x1xf32>
    %444 = arith.addf %442, %443 : vector<4x1xf32>
    %c7_98 = arith.constant 7 : index
    %c0_99 = arith.constant 0 : index
    %c0_100 = arith.constant 0 : index
    %445 = vector.load %arg9[%c7_98, %c0_99, %c0_100] : memref<12x4x1xf32, #tpu.memory_space<vmem>>, vector<1x4x1xf32>
    %446 = vector.shape_cast %445 : vector<1x4x1xf32> to vector<4x1xf32>
    %447 = vector.shape_cast %444 : vector<4x1xf32> to vector<1x4x1xf32>
    tpu.vector_store %arg9[%c7_98, %c0_99, %c0_100], %447 {strides = array<i32>} : memref<12x4x1xf32, #tpu.memory_space<vmem>>, vector<1x4x1xf32>,
    %448 = vector.broadcast %5 : vector<1x128xf32> to vector<4x128xf32>
    %449 = arith.mulf %436, %448 : vector<4x128xf32>
    %cst_101 = arith.constant dense<0.000000e+00> : vector<4xf32>
    %450 = vector.multi_reduction <add>, %449, %cst_101 [1] : vector<4x128xf32> to vector<4xf32>
    %451 = vector.shape_cast %450 : vector<4xf32> to vector<4x1xf32>
    %452 = vector.broadcast %6 : vector<1x1xf32> to vector<4x1xf32>
    %453 = arith.addf %451, %452 : vector<4x1xf32>
    %cst_102 = arith.constant dense<0.000000e+00> : vector<4x512xf32>
    %454 = tpu.matmul %417, %1, %cst_102 {dimension_numbers = #tpu.dot_dimension_numbers<[1], [0], [0], [1], [0, 0, 1, 1], [], []>} : vector<4x128xf32>, vector<128x512xf32>, vector<4x512xf32> -> vector<4x512xf32>
    %455 = vector.broadcast %453 : vector<4x1xf32> to vector<4x512xf32>
    %456 = vector.broadcast %0 : vector<1x512xf32> to vector<4x512xf32>
    %457 = arith.mulf %455, %456 : vector<4x512xf32>
    %458 = arith.addf %454, %457 : vector<4x512xf32>
    %459 = vector.broadcast %2 : vector<1x512xf32> to vector<4x512xf32>
    %460 = arith.addf %458, %459 : vector<4x512xf32>
    %461 = vector.extract_strided_slice %460 {offsets = [0, 0], sizes = [4, 384], strides = [1, 1]} : vector<4x512xf32> to vector<4x384xf32>
    %462 = arith.negf %461 : vector<4x384xf32>
    %463 = math.exp %462 : vector<4x384xf32>
    %cst_103 = arith.constant 1.000000e+00 : f32
    %464 = vector.broadcast %cst_103 : f32 to vector<4x384xf32>
    %465 = arith.addf %464, %463 : vector<4x384xf32>
    %466 = arith.divf %464, %465 : vector<4x384xf32>
    %467 = vector.extract_strided_slice %466 {offsets = [0, 0], sizes = [4, 128], strides = [1, 1]} : vector<4x384xf32> to vector<4x128xf32>
    %468 = vector.extract_strided_slice %466 {offsets = [0, 128], sizes = [4, 128], strides = [1, 1]} : vector<4x384xf32> to vector<4x128xf32>
    %469 = vector.extract_strided_slice %466 {offsets = [0, 256], sizes = [4, 128], strides = [1, 1]} : vector<4x384xf32> to vector<4x128xf32>
    %470 = vector.extract_strided_slice %460 {offsets = [0, 384], sizes = [4, 128], strides = [1, 1]} : vector<4x512xf32> to vector<4x128xf32>
    %471 = math.tanh %470 : vector<4x128xf32>
    %472 = arith.mulf %468, %415 : vector<4x128xf32>
    %473 = arith.mulf %467, %471 : vector<4x128xf32>
    %474 = arith.addf %472, %473 : vector<4x128xf32>
    %475 = math.tanh %474 : vector<4x128xf32>
    %476 = arith.mulf %469, %475 : vector<4x128xf32>
    %c64_i32_104 = arith.constant 64 : i32
    %477 = tpu.dynamic_rotate %438 by %c64_i32_104 dim 1 : vector<4x128xf32>, i32 -> vector<4x128xf32>
    %478 = arith.addf %476, %477 : vector<4x128xf32>
    %cst_105 = arith.constant dense<0.000000e+00> : vector<4x512xf32>
    %479 = tpu.matmul %478, %3, %cst_105 {dimension_numbers = #tpu.dot_dimension_numbers<[1], [0], [0], [1], [0, 0, 1, 1], [], []>} : vector<4x128xf32>, vector<128x512xf32>, vector<4x512xf32> -> vector<4x512xf32>
    %480 = vector.broadcast %4 : vector<1x512xf32> to vector<4x512xf32>
    %481 = arith.addf %479, %480 : vector<4x512xf32>
    %482 = vector.extract_strided_slice %481 {offsets = [0, 0], sizes = [4, 384], strides = [1, 1]} : vector<4x512xf32> to vector<4x384xf32>
    %483 = arith.negf %482 : vector<4x384xf32>
    %484 = math.exp %483 : vector<4x384xf32>
    %cst_106 = arith.constant 1.000000e+00 : f32
    %485 = vector.broadcast %cst_106 : f32 to vector<4x384xf32>
    %486 = arith.addf %485, %484 : vector<4x384xf32>
    %487 = arith.divf %485, %486 : vector<4x384xf32>
    %488 = vector.extract_strided_slice %487 {offsets = [0, 0], sizes = [4, 128], strides = [1, 1]} : vector<4x384xf32> to vector<4x128xf32>
    %489 = vector.extract_strided_slice %487 {offsets = [0, 128], sizes = [4, 128], strides = [1, 1]} : vector<4x384xf32> to vector<4x128xf32>
    %490 = vector.extract_strided_slice %487 {offsets = [0, 256], sizes = [4, 128], strides = [1, 1]} : vector<4x384xf32> to vector<4x128xf32>
    %491 = vector.extract_strided_slice %481 {offsets = [0, 384], sizes = [4, 128], strides = [1, 1]} : vector<4x512xf32> to vector<4x128xf32>
    %492 = math.tanh %491 : vector<4x128xf32>
    %493 = arith.mulf %489, %436 : vector<4x128xf32>
    %494 = arith.mulf %488, %492 : vector<4x128xf32>
    %495 = arith.addf %493, %494 : vector<4x128xf32>
    %496 = math.tanh %495 : vector<4x128xf32>
    %497 = arith.mulf %490, %496 : vector<4x128xf32>
    %498 = vector.broadcast %5 : vector<1x128xf32> to vector<4x128xf32>
    %499 = arith.mulf %497, %498 : vector<4x128xf32>
    %cst_107 = arith.constant dense<0.000000e+00> : vector<4xf32>
    %500 = vector.multi_reduction <add>, %499, %cst_107 [1] : vector<4x128xf32> to vector<4xf32>
    %501 = vector.shape_cast %500 : vector<4xf32> to vector<4x1xf32>
    %502 = vector.broadcast %6 : vector<1x1xf32> to vector<4x1xf32>
    %503 = arith.addf %501, %502 : vector<4x1xf32>
    %c8 = arith.constant 8 : index
    %c0_108 = arith.constant 0 : index
    %c0_109 = arith.constant 0 : index
    %504 = vector.load %arg9[%c8, %c0_108, %c0_109] : memref<12x4x1xf32, #tpu.memory_space<vmem>>, vector<1x4x1xf32>
    %505 = vector.shape_cast %504 : vector<1x4x1xf32> to vector<4x1xf32>
    %506 = vector.shape_cast %503 : vector<4x1xf32> to vector<1x4x1xf32>
    tpu.vector_store %arg9[%c8, %c0_108, %c0_109], %506 {strides = array<i32>} : memref<12x4x1xf32, #tpu.memory_space<vmem>>, vector<1x4x1xf32>,
    %cst_110 = arith.constant dense<0.000000e+00> : vector<4x512xf32>
    %507 = tpu.matmul %476, %1, %cst_110 {dimension_numbers = #tpu.dot_dimension_numbers<[1], [0], [0], [1], [0, 0, 1, 1], [], []>} : vector<4x128xf32>, vector<128x512xf32>, vector<4x512xf32> -> vector<4x512xf32>
    %508 = vector.broadcast %503 : vector<4x1xf32> to vector<4x512xf32>
    %509 = vector.broadcast %0 : vector<1x512xf32> to vector<4x512xf32>
    %510 = arith.mulf %508, %509 : vector<4x512xf32>
    %511 = arith.addf %507, %510 : vector<4x512xf32>
    %512 = vector.broadcast %2 : vector<1x512xf32> to vector<4x512xf32>
    %513 = arith.addf %511, %512 : vector<4x512xf32>
    %514 = vector.extract_strided_slice %513 {offsets = [0, 0], sizes = [4, 384], strides = [1, 1]} : vector<4x512xf32> to vector<4x384xf32>
    %515 = arith.negf %514 : vector<4x384xf32>
    %516 = math.exp %515 : vector<4x384xf32>
    %cst_111 = arith.constant 1.000000e+00 : f32
    %517 = vector.broadcast %cst_111 : f32 to vector<4x384xf32>
    %518 = arith.addf %517, %516 : vector<4x384xf32>
    %519 = arith.divf %517, %518 : vector<4x384xf32>
    %520 = vector.extract_strided_slice %519 {offsets = [0, 0], sizes = [4, 128], strides = [1, 1]} : vector<4x384xf32> to vector<4x128xf32>
    %521 = vector.extract_strided_slice %519 {offsets = [0, 128], sizes = [4, 128], strides = [1, 1]} : vector<4x384xf32> to vector<4x128xf32>
    %522 = vector.extract_strided_slice %519 {offsets = [0, 256], sizes = [4, 128], strides = [1, 1]} : vector<4x384xf32> to vector<4x128xf32>
    %523 = vector.extract_strided_slice %513 {offsets = [0, 384], sizes = [4, 128], strides = [1, 1]} : vector<4x512xf32> to vector<4x128xf32>
    %524 = math.tanh %523 : vector<4x128xf32>
    %525 = arith.mulf %521, %474 : vector<4x128xf32>
    %526 = arith.mulf %520, %524 : vector<4x128xf32>
    %527 = arith.addf %525, %526 : vector<4x128xf32>
    %528 = math.tanh %527 : vector<4x128xf32>
    %529 = arith.mulf %522, %528 : vector<4x128xf32>
    %c64_i32_112 = arith.constant 64 : i32
    %530 = tpu.dynamic_rotate %497 by %c64_i32_112 dim 1 : vector<4x128xf32>, i32 -> vector<4x128xf32>
    %531 = arith.addf %529, %530 : vector<4x128xf32>
    %cst_113 = arith.constant dense<0.000000e+00> : vector<4x512xf32>
    %532 = tpu.matmul %531, %3, %cst_113 {dimension_numbers = #tpu.dot_dimension_numbers<[1], [0], [0], [1], [0, 0, 1, 1], [], []>} : vector<4x128xf32>, vector<128x512xf32>, vector<4x512xf32> -> vector<4x512xf32>
    %533 = vector.broadcast %4 : vector<1x512xf32> to vector<4x512xf32>
    %534 = arith.addf %532, %533 : vector<4x512xf32>
    %535 = vector.extract_strided_slice %534 {offsets = [0, 0], sizes = [4, 384], strides = [1, 1]} : vector<4x512xf32> to vector<4x384xf32>
    %536 = arith.negf %535 : vector<4x384xf32>
    %537 = math.exp %536 : vector<4x384xf32>
    %cst_114 = arith.constant 1.000000e+00 : f32
    %538 = vector.broadcast %cst_114 : f32 to vector<4x384xf32>
    %539 = arith.addf %538, %537 : vector<4x384xf32>
    %540 = arith.divf %538, %539 : vector<4x384xf32>
    %541 = vector.extract_strided_slice %540 {offsets = [0, 0], sizes = [4, 128], strides = [1, 1]} : vector<4x384xf32> to vector<4x128xf32>
    %542 = vector.extract_strided_slice %540 {offsets = [0, 128], sizes = [4, 128], strides = [1, 1]} : vector<4x384xf32> to vector<4x128xf32>
    %543 = vector.extract_strided_slice %540 {offsets = [0, 256], sizes = [4, 128], strides = [1, 1]} : vector<4x384xf32> to vector<4x128xf32>
    %544 = vector.extract_strided_slice %534 {offsets = [0, 384], sizes = [4, 128], strides = [1, 1]} : vector<4x512xf32> to vector<4x128xf32>
    %545 = math.tanh %544 : vector<4x128xf32>
    %546 = arith.mulf %542, %495 : vector<4x128xf32>
    %547 = arith.mulf %541, %545 : vector<4x128xf32>
    %548 = arith.addf %546, %547 : vector<4x128xf32>
    %549 = math.tanh %548 : vector<4x128xf32>
    %550 = arith.mulf %543, %549 : vector<4x128xf32>
    %551 = vector.broadcast %5 : vector<1x128xf32> to vector<4x128xf32>
    %552 = arith.mulf %550, %551 : vector<4x128xf32>
    %cst_115 = arith.constant dense<0.000000e+00> : vector<4xf32>
    %553 = vector.multi_reduction <add>, %552, %cst_115 [1] : vector<4x128xf32> to vector<4xf32>
    %554 = vector.shape_cast %553 : vector<4xf32> to vector<4x1xf32>
    %555 = vector.broadcast %6 : vector<1x1xf32> to vector<4x1xf32>
    %556 = arith.addf %554, %555 : vector<4x1xf32>
    %c9 = arith.constant 9 : index
    %c0_116 = arith.constant 0 : index
    %c0_117 = arith.constant 0 : index
    %557 = vector.load %arg9[%c9, %c0_116, %c0_117] : memref<12x4x1xf32, #tpu.memory_space<vmem>>, vector<1x4x1xf32>
    %558 = vector.shape_cast %557 : vector<1x4x1xf32> to vector<4x1xf32>
    %559 = vector.shape_cast %556 : vector<4x1xf32> to vector<1x4x1xf32>
    tpu.vector_store %arg9[%c9, %c0_116, %c0_117], %559 {strides = array<i32>} : memref<12x4x1xf32, #tpu.memory_space<vmem>>, vector<1x4x1xf32>,
    %cst_118 = arith.constant dense<0.000000e+00> : vector<4x512xf32>
    %560 = tpu.matmul %529, %1, %cst_118 {dimension_numbers = #tpu.dot_dimension_numbers<[1], [0], [0], [1], [0, 0, 1, 1], [], []>} : vector<4x128xf32>, vector<128x512xf32>, vector<4x512xf32> -> vector<4x512xf32>
    %561 = vector.broadcast %556 : vector<4x1xf32> to vector<4x512xf32>
    %562 = vector.broadcast %0 : vector<1x512xf32> to vector<4x512xf32>
    %563 = arith.mulf %561, %562 : vector<4x512xf32>
    %564 = arith.addf %560, %563 : vector<4x512xf32>
    %565 = vector.broadcast %2 : vector<1x512xf32> to vector<4x512xf32>
    %566 = arith.addf %564, %565 : vector<4x512xf32>
    %567 = vector.extract_strided_slice %566 {offsets = [0, 0], sizes = [4, 384], strides = [1, 1]} : vector<4x512xf32> to vector<4x384xf32>
    %568 = arith.negf %567 : vector<4x384xf32>
    %569 = math.exp %568 : vector<4x384xf32>
    %cst_119 = arith.constant 1.000000e+00 : f32
    %570 = vector.broadcast %cst_119 : f32 to vector<4x384xf32>
    %571 = arith.addf %570, %569 : vector<4x384xf32>
    %572 = arith.divf %570, %571 : vector<4x384xf32>
    %573 = vector.extract_strided_slice %572 {offsets = [0, 0], sizes = [4, 128], strides = [1, 1]} : vector<4x384xf32> to vector<4x128xf32>
    %574 = vector.extract_strided_slice %572 {offsets = [0, 128], sizes = [4, 128], strides = [1, 1]} : vector<4x384xf32> to vector<4x128xf32>
    %575 = vector.extract_strided_slice %572 {offsets = [0, 256], sizes = [4, 128], strides = [1, 1]} : vector<4x384xf32> to vector<4x128xf32>
    %576 = vector.extract_strided_slice %566 {offsets = [0, 384], sizes = [4, 128], strides = [1, 1]} : vector<4x512xf32> to vector<4x128xf32>
    %577 = math.tanh %576 : vector<4x128xf32>
    %578 = arith.mulf %574, %527 : vector<4x128xf32>
    %579 = arith.mulf %573, %577 : vector<4x128xf32>
    %580 = arith.addf %578, %579 : vector<4x128xf32>
    %581 = math.tanh %580 : vector<4x128xf32>
    %582 = arith.mulf %575, %581 : vector<4x128xf32>
    %c64_i32_120 = arith.constant 64 : i32
    %583 = tpu.dynamic_rotate %550 by %c64_i32_120 dim 1 : vector<4x128xf32>, i32 -> vector<4x128xf32>
    %584 = arith.addf %582, %583 : vector<4x128xf32>
    %cst_121 = arith.constant dense<0.000000e+00> : vector<4x512xf32>
    %585 = tpu.matmul %584, %3, %cst_121 {dimension_numbers = #tpu.dot_dimension_numbers<[1], [0], [0], [1], [0, 0, 1, 1], [], []>} : vector<4x128xf32>, vector<128x512xf32>, vector<4x512xf32> -> vector<4x512xf32>
    %586 = vector.broadcast %4 : vector<1x512xf32> to vector<4x512xf32>
    %587 = arith.addf %585, %586 : vector<4x512xf32>
    %588 = vector.extract_strided_slice %587 {offsets = [0, 0], sizes = [4, 384], strides = [1, 1]} : vector<4x512xf32> to vector<4x384xf32>
    %589 = arith.negf %588 : vector<4x384xf32>
    %590 = math.exp %589 : vector<4x384xf32>
    %cst_122 = arith.constant 1.000000e+00 : f32
    %591 = vector.broadcast %cst_122 : f32 to vector<4x384xf32>
    %592 = arith.addf %591, %590 : vector<4x384xf32>
    %593 = arith.divf %591, %592 : vector<4x384xf32>
    %594 = vector.extract_strided_slice %593 {offsets = [0, 0], sizes = [4, 128], strides = [1, 1]} : vector<4x384xf32> to vector<4x128xf32>
    %595 = vector.extract_strided_slice %593 {offsets = [0, 128], sizes = [4, 128], strides = [1, 1]} : vector<4x384xf32> to vector<4x128xf32>
    %596 = vector.extract_strided_slice %593 {offsets = [0, 256], sizes = [4, 128], strides = [1, 1]} : vector<4x384xf32> to vector<4x128xf32>
    %597 = vector.extract_strided_slice %587 {offsets = [0, 384], sizes = [4, 128], strides = [1, 1]} : vector<4x512xf32> to vector<4x128xf32>
    %598 = math.tanh %597 : vector<4x128xf32>
    %599 = arith.mulf %595, %548 : vector<4x128xf32>
    %600 = arith.mulf %594, %598 : vector<4x128xf32>
    %601 = arith.addf %599, %600 : vector<4x128xf32>
    %602 = math.tanh %601 : vector<4x128xf32>
    %603 = arith.mulf %596, %602 : vector<4x128xf32>
    %604 = vector.broadcast %5 : vector<1x128xf32> to vector<4x128xf32>
    %605 = arith.mulf %603, %604 : vector<4x128xf32>
    %cst_123 = arith.constant dense<0.000000e+00> : vector<4xf32>
    %606 = vector.multi_reduction <add>, %605, %cst_123 [1] : vector<4x128xf32> to vector<4xf32>
    %607 = vector.shape_cast %606 : vector<4xf32> to vector<4x1xf32>
    %608 = vector.broadcast %6 : vector<1x1xf32> to vector<4x1xf32>
    %609 = arith.addf %607, %608 : vector<4x1xf32>
    %c10 = arith.constant 10 : index
    %c0_124 = arith.constant 0 : index
    %c0_125 = arith.constant 0 : index
    %610 = vector.load %arg9[%c10, %c0_124, %c0_125] : memref<12x4x1xf32, #tpu.memory_space<vmem>>, vector<1x4x1xf32>
    %611 = vector.shape_cast %610 : vector<1x4x1xf32> to vector<4x1xf32>
    %612 = vector.shape_cast %609 : vector<4x1xf32> to vector<1x4x1xf32>
    tpu.vector_store %arg9[%c10, %c0_124, %c0_125], %612 {strides = array<i32>} : memref<12x4x1xf32, #tpu.memory_space<vmem>>, vector<1x4x1xf32>,
    %cst_126 = arith.constant dense<0.000000e+00> : vector<4x512xf32>
    %613 = tpu.matmul %582, %1, %cst_126 {dimension_numbers = #tpu.dot_dimension_numbers<[1], [0], [0], [1], [0, 0, 1, 1], [], []>} : vector<4x128xf32>, vector<128x512xf32>, vector<4x512xf32> -> vector<4x512xf32>
    %614 = vector.broadcast %609 : vector<4x1xf32> to vector<4x512xf32>
    %615 = vector.broadcast %0 : vector<1x512xf32> to vector<4x512xf32>
    %616 = arith.mulf %614, %615 : vector<4x512xf32>
    %617 = arith.addf %613, %616 : vector<4x512xf32>
    %618 = vector.broadcast %2 : vector<1x512xf32> to vector<4x512xf32>
    %619 = arith.addf %617, %618 : vector<4x512xf32>
    %620 = vector.extract_strided_slice %619 {offsets = [0, 0], sizes = [4, 384], strides = [1, 1]} : vector<4x512xf32> to vector<4x384xf32>
    %621 = arith.negf %620 : vector<4x384xf32>
    %622 = math.exp %621 : vector<4x384xf32>
    %cst_127 = arith.constant 1.000000e+00 : f32
    %623 = vector.broadcast %cst_127 : f32 to vector<4x384xf32>
    %624 = arith.addf %623, %622 : vector<4x384xf32>
    %625 = arith.divf %623, %624 : vector<4x384xf32>
    %626 = vector.extract_strided_slice %625 {offsets = [0, 0], sizes = [4, 128], strides = [1, 1]} : vector<4x384xf32> to vector<4x128xf32>
    %627 = vector.extract_strided_slice %625 {offsets = [0, 128], sizes = [4, 128], strides = [1, 1]} : vector<4x384xf32> to vector<4x128xf32>
    %628 = vector.extract_strided_slice %625 {offsets = [0, 256], sizes = [4, 128], strides = [1, 1]} : vector<4x384xf32> to vector<4x128xf32>
    %629 = vector.extract_strided_slice %619 {offsets = [0, 384], sizes = [4, 128], strides = [1, 1]} : vector<4x512xf32> to vector<4x128xf32>
    %630 = math.tanh %629 : vector<4x128xf32>
    %631 = arith.mulf %627, %580 : vector<4x128xf32>
    %632 = arith.mulf %626, %630 : vector<4x128xf32>
    %633 = arith.addf %631, %632 : vector<4x128xf32>
    %634 = math.tanh %633 : vector<4x128xf32>
    %635 = arith.mulf %628, %634 : vector<4x128xf32>
    %c64_i32_128 = arith.constant 64 : i32
    %636 = tpu.dynamic_rotate %603 by %c64_i32_128 dim 1 : vector<4x128xf32>, i32 -> vector<4x128xf32>
    %637 = arith.addf %635, %636 : vector<4x128xf32>
    %cst_129 = arith.constant dense<0.000000e+00> : vector<4x512xf32>
    %638 = tpu.matmul %637, %3, %cst_129 {dimension_numbers = #tpu.dot_dimension_numbers<[1], [0], [0], [1], [0, 0, 1, 1], [], []>} : vector<4x128xf32>, vector<128x512xf32>, vector<4x512xf32> -> vector<4x512xf32>
    %639 = vector.broadcast %4 : vector<1x512xf32> to vector<4x512xf32>
    %640 = arith.addf %638, %639 : vector<4x512xf32>
    %641 = vector.extract_strided_slice %640 {offsets = [0, 0], sizes = [4, 384], strides = [1, 1]} : vector<4x512xf32> to vector<4x384xf32>
    %642 = arith.negf %641 : vector<4x384xf32>
    %643 = math.exp %642 : vector<4x384xf32>
    %cst_130 = arith.constant 1.000000e+00 : f32
    %644 = vector.broadcast %cst_130 : f32 to vector<4x384xf32>
    %645 = arith.addf %644, %643 : vector<4x384xf32>
    %646 = arith.divf %644, %645 : vector<4x384xf32>
    %647 = vector.extract_strided_slice %646 {offsets = [0, 0], sizes = [4, 128], strides = [1, 1]} : vector<4x384xf32> to vector<4x128xf32>
    %648 = vector.extract_strided_slice %646 {offsets = [0, 128], sizes = [4, 128], strides = [1, 1]} : vector<4x384xf32> to vector<4x128xf32>
    %649 = vector.extract_strided_slice %646 {offsets = [0, 256], sizes = [4, 128], strides = [1, 1]} : vector<4x384xf32> to vector<4x128xf32>
    %650 = vector.extract_strided_slice %640 {offsets = [0, 384], sizes = [4, 128], strides = [1, 1]} : vector<4x512xf32> to vector<4x128xf32>
    %651 = math.tanh %650 : vector<4x128xf32>
    %652 = arith.mulf %648, %601 : vector<4x128xf32>
    %653 = arith.mulf %647, %651 : vector<4x128xf32>
    %654 = arith.addf %652, %653 : vector<4x128xf32>
    %655 = math.tanh %654 : vector<4x128xf32>
    %656 = arith.mulf %649, %655 : vector<4x128xf32>
    %657 = vector.broadcast %5 : vector<1x128xf32> to vector<4x128xf32>
    %658 = arith.mulf %656, %657 : vector<4x128xf32>
    %cst_131 = arith.constant dense<0.000000e+00> : vector<4xf32>
    %659 = vector.multi_reduction <add>, %658, %cst_131 [1] : vector<4x128xf32> to vector<4xf32>
    %660 = vector.shape_cast %659 : vector<4xf32> to vector<4x1xf32>
    %661 = vector.broadcast %6 : vector<1x1xf32> to vector<4x1xf32>
    %662 = arith.addf %660, %661 : vector<4x1xf32>
    %c11 = arith.constant 11 : index
    %c0_132 = arith.constant 0 : index
    %c0_133 = arith.constant 0 : index
    %663 = vector.load %arg9[%c11, %c0_132, %c0_133] : memref<12x4x1xf32, #tpu.memory_space<vmem>>, vector<1x4x1xf32>
    %664 = vector.shape_cast %663 : vector<1x4x1xf32> to vector<4x1xf32>
    %665 = vector.shape_cast %662 : vector<4x1xf32> to vector<1x4x1xf32>
    tpu.vector_store %arg9[%c11, %c0_132, %c0_133], %665 {strides = array<i32>} : memref<12x4x1xf32, #tpu.memory_space<vmem>>, vector<1x4x1xf32>,
    return
  }
  func.func @transform_0(%arg0: i32) -> (i32, i32, i32) {
    %c0_i32 = arith.constant 0 : i32
    %c0_i32_0 = arith.constant 0 : i32
    %c0_i32_1 = arith.constant 0 : i32
    %c0_i32_2 = arith.constant 0 : i32
    return %c0_i32, %c0_i32_0, %c0_i32_1 : i32, i32, i32
  }
  func.func @transform_1(%arg0: i32) -> (i32, i32) {
    %c0_i32 = arith.constant 0 : i32
    %c0_i32_0 = arith.constant 0 : i32
    %c0_i32_1 = arith.constant 0 : i32
    return %c0_i32, %c0_i32_0 : i32, i32
  }
  func.func @transform_2(%arg0: i32) -> (i32, i32) {
    %c0_i32 = arith.constant 0 : i32
    %c0_i32_0 = arith.constant 0 : i32
    %c0_i32_1 = arith.constant 0 : i32
    return %c0_i32, %c0_i32_0 : i32, i32
  }
  func.func @transform_3(%arg0: i32) -> (i32, i32) {
    %c0_i32 = arith.constant 0 : i32
    %c0_i32_0 = arith.constant 0 : i32
    %c0_i32_1 = arith.constant 0 : i32
    return %c0_i32, %c0_i32_0 : i32, i32
  }
  func.func @transform_4(%arg0: i32) -> (i32, i32) {
    %c0_i32 = arith.constant 0 : i32
    %c0_i32_0 = arith.constant 0 : i32
    %c0_i32_1 = arith.constant 0 : i32
    return %c0_i32, %c0_i32_0 : i32, i32
  }
  func.func @transform_5(%arg0: i32) -> (i32, i32) {
    %c0_i32 = arith.constant 0 : i32
    %c0_i32_0 = arith.constant 0 : i32
    %c0_i32_1 = arith.constant 0 : i32
    return %c0_i32, %c0_i32_0 : i32, i32
  }
  func.func @transform_6(%arg0: i32) -> (i32, i32) {
    %c0_i32 = arith.constant 0 : i32
    %c0_i32_0 = arith.constant 0 : i32
    %c0_i32_1 = arith.constant 0 : i32
    return %c0_i32, %c0_i32_0 : i32, i32
  }
  func.func @transform_7(%arg0: i32) -> (i32, i32) {
    %c0_i32 = arith.constant 0 : i32
    %c0_i32_0 = arith.constant 0 : i32
    %c0_i32_1 = arith.constant 0 : i32
    return %c0_i32, %c0_i32_0 : i32, i32
  }
  func.func @transform_8(%arg0: i32) -> (i32, i32, i32) {
    %c0_i32 = arith.constant 0 : i32
    %c0_i32_0 = arith.constant 0 : i32
    %c0_i32_1 = arith.constant 0 : i32
    %c0_i32_2 = arith.constant 0 : i32
    return %c0_i32, %c0_i32_0, %c0_i32_1 : i32, i32, i32
  }
}

</mosaic_0001>

<llo_original>
// kernel: tpu_custom_call.1
$region0: #{tpu_custom_call.1}
  #allocation0 [shape = 'u32[]', space=smem, size = 0x4, offset = 0x4, fixed_abs, tag = 'smem constant byte address 0x4 - core index']
  #allocation1 [shape = 'u32[144,128]{1,0:T(1,128)}', space=vmem, size = 0x12000, scoped, tag = 'internal scratch']
  #allocation2 [shape = 'f32[1,1]{1,0:T(1,128)S(1)}', space=vmem, size = 0x200, scoped, tag = 'scoped memory for tpu_custom_call.1']
  %s0 = inlined_call_operand.vmem [shape: f32[8,4,1], index: 0, kind: input, shape index: {}]
  %s1 = inlined_call_operand.vmem [shape: f32[1,512], index: 1, kind: input, shape index: {}]
  %s2 = inlined_call_operand.hbm [shape: f32[128,512], index: 2, kind: input, shape index: {}]
  %s3 = inlined_call_operand.vmem [shape: f32[1,512], index: 3, kind: input, shape index: {}]
  %s4 = inlined_call_operand.hbm [shape: f32[128,512], index: 4, kind: input, shape index: {}]
  %s5 = inlined_call_operand.vmem [shape: f32[1,512], index: 5, kind: input, shape index: {}]
  %s6 = inlined_call_operand.vmem [shape: f32[1,128], index: 6, kind: input, shape index: {}]
  %s7 = inlined_call_operand.<no memory space> [shape: f32[1,1], index: 7, kind: input, shape index: {}]
  %s8 = inlined_call_operand.vmem [shape: f32[12,4,1], index: 8, kind: output, shape index: {}]
  %s9 = sld [smem:[#allocation0]]
  $region50: #{tpu_custom_call.1} parent=0
    _
  %s11 = ssub.s32 1, %s9
  %s12 = scalar_select 0, %s11, %s9
  %v13 = vstv %s7
  %14 = vst [vmem:[#allocation2] sm:$0x1] %v13
  $region1: #{tpu_custom_call.1} parent=0
    #allocation3 [shape = 'u8[262144]{0}', space=vmem, size = 0x40000, scoped, tag = 'input window, operand 2, single buffered']
    #allocation4 [shape = 's32[1]{0}', space=sflag, size = 0x4, scoped, tag = 'scoped memory for tpu_custom_call.1']
    #allocation5 [shape = 'u8[262144]{0}', space=vmem, size = 0x40000, scoped, tag = 'input window, operand 4, single buffered']
    #allocation6 [shape = 's32[1]{0}', space=sflag, size = 0x4, scoped, tag = 'scoped memory for tpu_custom_call.1']
    %15 = vsyncpa [#allocation4], 0
    %16 = vsyncpa [#allocation6], 0
    // Predicated region
    $region2: #{tpu_custom_call.1} parent=1 // pred_check
      _
    $region3: #{tpu_custom_call.1} parent=1 // pred_check_branch
      %18 = sbr.rel (0) target = $region5
    $region4: #{tpu_custom_call.1} parent=1 // pred_region
      _
    $region5: #{tpu_custom_call.1} parent=1 // pred_fallthru
      _
    // Predicated region
    $region6: #{tpu_custom_call.1} parent=1 // pred_check
      _
    $region7: #{tpu_custom_call.1} parent=1 // pred_check_branch
      %20 = sbr.rel (0) target = $region9
    $region8: #{tpu_custom_call.1} parent=1 // pred_region
      _
    $region9: #{tpu_custom_call.1} parent=1 // pred_fallthru
      _
    // Predicated region
    $region10: #{tpu_custom_call.1} parent=1 // pred_check
      _
    $region11: #{tpu_custom_call.1} parent=1 // pred_check_branch
      %22 = sbr.rel (0) target = $region13
    $region12: #{tpu_custom_call.1} parent=1 // pred_region
      %s24 = ssub.s32 8192, 8192
      %25 = vsyncadd [#allocation4], %s24
      %s26 = sshll.u32 [#allocation3], 4
      %s27 = int_to_ptr.vmem [resolvable:$true] %s26
      %32 = dma.hbm_to_vmem [thread:$0]  %s2, 8192, %s27, [#allocation4], 512, 512, 32
    $region13: #{tpu_custom_call.1} parent=1 // pred_fallthru
      _
    // Predicated region
    $region14: #{tpu_custom_call.1} parent=1 // pred_check
      _
    $region15: #{tpu_custom_call.1} parent=1 // pred_check_branch
      %34 = sbr.rel (0) target = $region17
    $region16: #{tpu_custom_call.1} parent=1 // pred_region
      _
    $region17: #{tpu_custom_call.1} parent=1 // pred_fallthru
      _
    // Predicated region
    $region18: #{tpu_custom_call.1} parent=1 // pred_check
      _
    $region19: #{tpu_custom_call.1} parent=1 // pred_check_branch
      %36 = sbr.rel (0) target = $region21
    $region20: #{tpu_custom_call.1} parent=1 // pred_region
      %s38 = ssub.s32 8192, 8192
      %39 = vsyncadd [#allocation6], %s38
      %s40 = sshll.u32 [#allocation5], 4
      %s41 = int_to_ptr.vmem [resolvable:$true] %s40
      %46 = dma.hbm_to_vmem [thread:$0]  %s4, 8192, %s41, [#allocation6], 512, 512, 32
    $region21: #{tpu_custom_call.1} parent=1 // pred_fallthru
      _
    // Predicated region
    $region22: #{tpu_custom_call.1} parent=1 // pred_check
      _
    $region23: #{tpu_custom_call.1} parent=1 // pred_check_branch
      %48 = sbr.rel (0) target = $region25
    $region24: #{tpu_custom_call.1} parent=1 // pred_region
      _
    $region25: #{tpu_custom_call.1} parent=1 // pred_fallthru
      _
    // Predicated region
    $region26: #{tpu_custom_call.1} parent=1 // pred_check
      _
    $region27: #{tpu_custom_call.1} parent=1 // pred_check_branch
      %50 = sbr.rel (0) target = $region29
    $region28: #{tpu_custom_call.1} parent=1 // pred_region
      _
    $region29: #{tpu_custom_call.1} parent=1 // pred_fallthru
      _
    // Predicated region
    $region30: #{tpu_custom_call.1} parent=1 // pred_check
      _
    $region31: #{tpu_custom_call.1} parent=1 // pred_check_branch
      %52 = sbr.rel (0) target = $region33
    $region32: #{tpu_custom_call.1} parent=1 // pred_region
      _
    $region33: #{tpu_custom_call.1} parent=1 // pred_fallthru
      _
    // Predicated region
    $region34: #{tpu_custom_call.1} parent=1 // pred_check
      _
    $region35: #{tpu_custom_call.1} parent=1 // pred_check_branch
      %54 = sbr.rel (0) target = $region37
    $region36: #{tpu_custom_call.1} parent=1 // pred_region
      %55 = dma.done [#allocation4], 8192
    $region37: #{tpu_custom_call.1} parent=1 // pred_fallthru
      _
    // Predicated region
    $region38: #{tpu_custom_call.1} parent=1 // pred_check
      _
    $region39: #{tpu_custom_call.1} parent=1 // pred_check_branch
      %57 = sbr.rel (0) target = $region41
    $region40: #{tpu_custom_call.1} parent=1 // pred_region
      %58 = dma.done [#allocation6], 8192
    $region41: #{tpu_custom_call.1} parent=1 // pred_fallthru
      _
    %v59 = vld [vmem:[%s1] sm:$0xf]
    %v60 = vld [vmem:[#allocation3] sm:$0xff]
    %v61 = vld [vmem:[#allocation3 + $0x8] sm:$0xff]
    %v62 = vld [vmem:[#allocation3 + $0x10] sm:$0xff]
    %v63 = vld [vmem:[#allocation3 + $0x18] sm:$0xff]
    %v64 = vld [vmem:[#allocation3 + $0x20] sm:$0xff]
    %v65 = vld [vmem:[#allocation3 + $0x28] sm:$0xff]
    %v66 = vld [vmem:[#allocation3 + $0x30] sm:$0xff]
    %v67 = vld [vmem:[#allocation3 + $0x38] sm:$0xff]
    %v68 = vld [vmem:[#allocation3 + $0x40] sm:$0xff]
    %v69 = vld [vmem:[#allocation3 + $0x48] sm:$0xff]
    %v70 = vld [vmem:[#allocation3 + $0x50] sm:$0xff]
    %v71 = vld [vmem:[#allocation3 + $0x58] sm:$0xff]
    %v72 = vld [vmem:[#allocation3 + $0x60] sm:$0xff]
    %v73 = vld [vmem:[#allocation3 + $0x68] sm:$0xff]
    %v74 = vld [vmem:[#allocation3 + $0x70] sm:$0xff]
    %v75 = vld [vmem:[#allocation3 + $0x78] sm:$0xff]
    %v76 = vld [vmem:[#allocation3 + $0x80] sm:$0xff]
    %v77 = vld [vmem:[#allocation3 + $0x88] sm:$0xff]
    %v78 = vld [vmem:[#allocation3 + $0x90] sm:$0xff]
    %v79 = vld [vmem:[#allocation3 + $0x98] sm:$0xff]
    %v80 = vld [vmem:[#allocation3 + $0xa0] sm:$0xff]
    %v81 = vld [vmem:[#allocation3 + $0xa8] sm:$0xff]
    %v82 = vld [vmem:[#allocation3 + $0xb0] sm:$0xff]
    %v83 = vld [vmem:[#allocation3 + $0xb8] sm:$0xff]
    %v84 = vld [vmem:[#allocation3 + $0xc0] sm:$0xff]
    %v85 = vld [vmem:[#allocation3 + $0xc8] sm:$0xff]
    %v86 = vld [vmem:[#allocation3 + $0xd0] sm:$0xff]
    %v87 = vld [vmem:[#allocation3 + $0xd8] sm:$0xff]
    %v88 = vld [vmem:[#allocation3 + $0xe0] sm:$0xff]
    %v89 = vld [vmem:[#allocation3 + $0xe8] sm:$0xff]
    %v90 = vld [vmem:[#allocation3 + $0xf0] sm:$0xff]
    %v91 = vld [vmem:[#allocation3 + $0xf8] sm:$0xff]
    %v92 = vld [vmem:[#allocation3 + $0x100] sm:$0xff]
    %v93 = vld [vmem:[#allocation3 + $0x108] sm:$0xff]
    %v94 = vld [vmem:[#allocation3 + $0x110] sm:$0xff]
    %v95 = vld [vmem:[#allocation3 + $0x118] sm:$0xff]
    %v96 = vld [vmem:[#allocation3 + $0x120] sm:$0xff]
    %v97 = vld [vmem:[#allocation3 + $0x128] sm:$0xff]
    %v98 = vld [vmem:[#allocation3 + $0x130] sm:$0xff]
    %v99 = vld [vmem:[#allocation3 + $0x138] sm:$0xff]
    %v100 = vld [vmem:[#allocation3 + $0x140] sm:$0xff]
    %v101 = vld [vmem:[#allocation3 + $0x148] sm:$0xff]
    %v102 = vld [vmem:[#allocation3 + $0x150] sm:$0xff]
    %v103 = vld [vmem:[#allocation3 + $0x158] sm:$0xff]
    %v104 = vld [vmem:[#allocation3 + $0x160] sm:$0xff]
    %v105 = vld [vmem:[#allocation3 + $0x168] sm:$0xff]
    %v106 = vld [vmem:[#allocation3 + $0x170] sm:$0xff]
    %v107 = vld [vmem:[#allocation3 + $0x178] sm:$0xff]
    %v108 = vld [vmem:[#allocation3 + $0x180] sm:$0xff]
    %v109 = vld [vmem:[#allocation3 + $0x188] sm:$0xff]
    %v110 = vld [vmem:[#allocation3 + $0x190] sm:$0xff]
    %v111 = vld [vmem:[#allocation3 + $0x198] sm:$0xff]
    %v112 = vld [vmem:[#allocation3 + $0x1a0] sm:$0xff]
    %v113 = vld [vmem:[#allocation3 + $0x1a8] sm:$0xff]
    %v114 = vld [vmem:[#allocation3 + $0x1b0] sm:$0xff]
    %v115 = vld [vmem:[#allocation3 + $0x1b8] sm:$0xff]
    %v116 = vld [vmem:[#allocation3 + $0x1c0] sm:$0xff]
    %v117 = vld [vmem:[#allocation3 + $0x1c8] sm:$0xff]
    %v118 = vld [vmem:[#allocation3 + $0x1d0] sm:$0xff]
    %v119 = vld [vmem:[#allocation3 + $0x1d8] sm:$0xff]
    %v120 = vld [vmem:[#allocation3 + $0x1e0] sm:$0xff]
    %v121 = vld [vmem:[#allocation3 + $0x1e8] sm:$0xff]
    %v122 = vld [vmem:[#allocation3 + $0x1f0] sm:$0xff]
    %v123 = vld [vmem:[#allocation3 + $0x1f8] sm:$0xff]
    %v124 = vld [vmem:[%s3] sm:$0xf]
    %v125 = vld [vmem:[#allocation5] sm:$0xff]
    %v126 = vld [vmem:[#allocation5 + $0x8] sm:$0xff]
    %v127 = vld [vmem:[#allocation5 + $0x10] sm:$0xff]
    %v128 = vld [vmem:[#allocation5 + $0x18] sm:$0xff]
    %v129 = vld [vmem:[#allocation5 + $0x20] sm:$0xff]
    %v130 = vld [vmem:[#allocation5 + $0x28] sm:$0xff]
    %v131 = vld [vmem:[#allocation5 + $0x30] sm:$0xff]
    %v132 = vld [vmem:[#allocation5 + $0x38] sm:$0xff]
    %v133 = vld [vmem:[#allocation5 + $0x40] sm:$0xff]
    %v134 = vld [vmem:[#allocation5 + $0x48] sm:$0xff]
    %v135 = vld [vmem:[#allocation5 + $0x50] sm:$0xff]
    %v136 = vld [vmem:[#allocation5 + $0x58] sm:$0xff]
    %v137 = vld [vmem:[#allocation5 + $0x60] sm:$0xff]
    %v138 = vld [vmem:[#allocation5 + $0x68] sm:$0xff]
    %v139 = vld [vmem:[#allocation5 + $0x70] sm:$0xff]
    %v140 = vld [vmem:[#allocation5 + $0x78] sm:$0xff]
    %v141 = vld [vmem:[#allocation5 + $0x80] sm:$0xff]
    %v142 = vld [vmem:[#allocation5 + $0x88] sm:$0xff]
    %v143 = vld [vmem:[#allocation5 + $0x90] sm:$0xff]
    %v144 = vld [vmem:[#allocation5 + $0x98] sm:$0xff]
    %v145 = vld [vmem:[#allocation5 + $0xa0] sm:$0xff]
    %v146 = vld [vmem:[#allocation5 + $0xa8] sm:$0xff]
    %v147 = vld [vmem:[#allocation5 + $0xb0] sm:$0xff]
    %v148 = vld [vmem:[#allocation5 + $0xb8] sm:$0xff]
    %v149 = vld [vmem:[#allocation5 + $0xc0] sm:$0xff]
    %v150 = vld [vmem:[#allocation5 + $0xc8] sm:$0xff]
    %v151 = vld [vmem:[#allocation5 + $0xd0] sm:$0xff]
    %v152 = vld [vmem:[#allocation5 + $0xd8] sm:$0xff]
    %v153 = vld [vmem:[#allocation5 + $0xe0] sm:$0xff]
    %v154 = vld [vmem:[#allocation5 + $0xe8] sm:$0xff]
    %v155 = vld [vmem:[#allocation5 + $0xf0] sm:$0xff]
    %v156 = vld [vmem:[#allocation5 + $0xf8] sm:$0xff]
    %v157 = vld [vmem:[#allocation5 + $0x100] sm:$0xff]
    %v158 = vld [vmem:[#allocation5 + $0x108] sm:$0xff]
    %v159 = vld [vmem:[#allocation5 + $0x110] sm:$0xff]
    %v160 = vld [vmem:[#allocation5 + $0x118] sm:$0xff]
    %v161 = vld [vmem:[#allocation5 + $0x120] sm:$0xff]
    %v162 = vld [vmem:[#allocation5 + $0x128] sm:$0xff]
    %v163 = vld [vmem:[#allocation5 + $0x130] sm:$0xff]
    %v164 = vld [vmem:[#allocation5 + $0x138] sm:$0xff]
    %v165 = vld [vmem:[#allocation5 + $0x140] sm:$0xff]
    %v166 = vld [vmem:[#allocation5 + $0x148] sm:$0xff]
    %v167 = vld [vmem:[#allocation5 + $0x150] sm:$0xff]
    %v168 = vld [vmem:[#allocation5 + $0x158] sm:$0xff]
    %v169 = vld [vmem:[#allocation5 + $0x160] sm:$0xff]
    %v170 = vld [vmem:[#allocation5 + $0x168] sm:$0xff]
    %v171 = vld [vmem:[#allocation5 + $0x170] sm:$0xff]
    %v172 = vld [vmem:[#allocation5 + $0x178] sm:$0xff]
    %v173 = vld [vmem:[#allocation5 + $0x180] sm:$0xff]
    %v174 = vld [vmem:[#allocation5 + $0x188] sm:$0xff]
    %v175 = vld [vmem:[#allocation5 + $0x190] sm:$0xff]
    %v176 = vld [vmem:[#allocation5 + $0x198] sm:$0xff]
    %v177 = vld [vmem:[#allocation5 + $0x1a0] sm:$0xff]
    %v178 = vld [vmem:[#allocation5 + $0x1a8] sm:$0xff]
    %v179 = vld [vmem:[#allocation5 + $0x1b0] sm:$0xff]
    %v180 = vld [vmem:[#allocation5 + $0x1b8] sm:$0xff]
    %v181 = vld [vmem:[#allocation5 + $0x1c0] sm:$0xff]
    %v182 = vld [vmem:[#allocation5 + $0x1c8] sm:$0xff]
    %v183 = vld [vmem:[#allocation5 + $0x1d0] sm:$0xff]
    %v184 = vld [vmem:[#allocation5 + $0x1d8] sm:$0xff]
    %v185 = vld [vmem:[#allocation5 + $0x1e0] sm:$0xff]
    %v186 = vld [vmem:[#allocation5 + $0x1e8] sm:$0xff]
    %v187 = vld [vmem:[#allocation5 + $0x1f0] sm:$0xff]
    %v188 = vld [vmem:[#allocation5 + $0x1f8] sm:$0xff]
    %v189 = vld [vmem:[%s5] sm:$0xf]
    %v190 = vld [vmem:[%s6] sm:$0x1]
    %v191 = vld [vmem:[#allocation2] sm:$0x1]
    %v192 = vld [vmem:[%s0] sm:$0xf]
    %194 = vset.pattern.permute.xlu0 0
    %195 = vperm.xlu0 %194, %v192
    %v196 = vpop.permute.xlu0 %195
    %v199 = vlaneseq
    %v200 = vshrl.u32 %v199, 7
    %v201 = vsub.s32 0, %v200
    %v202 = vrot.slane %v59, %v201
    %v203 = vlaneseq
    %v204 = vshrl.u32 %v203, 7
    %v205 = vsub.s32 1, %v204
    %v206 = vrot.slane %v59, %v205
    %v207 = vlaneseq
    %v208 = vshrl.u32 %v207, 7
    %v209 = vsub.s32 2, %v208
    %v210 = vrot.slane %v59, %v209
    %v211 = vlaneseq
    %v212 = vshrl.u32 %v211, 7
    %v213 = vsub.s32 3, %v212
    %v214 = vrot.slane %v59, %v213
    %v219 = vmul.f32 %v196, %v202
    %v220 = vmul.f32 %v196, %v206
    %v221 = vmul.f32 %v196, %v210
    %v222 = vmul.f32 %v196, %v214
    %223 = vmatprep.subr.mxu0 %v121
    %224 = vmatpush1.msra.mxu0 %v120
    %225 = vmatprep.subr.mxu0 %v117
    %226 = vmatpush1.msra.mxu0 %v116
    %227 = vmatprep.subr.mxu0 %v113
    %228 = vmatpush1.msra.mxu0 %v112
    %229 = vmatprep.subr.mxu0 %v109
    %230 = vmatpush1.msra.mxu0 %v108
    %231 = vmatprep.subr.mxu0 %v105
    %232 = vmatpush1.msra.mxu0 %v104
    %233 = vmatprep.subr.mxu0 %v101
    %234 = vmatpush1.msra.mxu0 %v100
    %235 = vmatprep.subr.mxu0 %v97
    %236 = vmatpush1.msra.mxu0 %v96
    %237 = vmatprep.subr.mxu0 %v93
    %238 = vmatpush1.msra.mxu0 %v92
    %239 = vmatprep.subr.mxu0 %v89
    %240 = vmatpush1.msra.mxu0 %v88
    %241 = vmatprep.subr.mxu0 %v85
    %242 = vmatpush1.msra.mxu0 %v84
    %243 = vmatprep.subr.mxu0 %v81
    %244 = vmatpush1.msra.mxu0 %v80
    %245 = vmatprep.subr.mxu0 %v77
    %246 = vmatpush1.msra.mxu0 %v76
    %247 = vmatprep.subr.mxu0 %v73
    %248 = vmatpush1.msra.mxu0 %v72
    %249 = vmatprep.subr.mxu0 %v69
    %250 = vmatpush1.msra.mxu0 %v68
    %251 = vmatprep.subr.mxu0 %v65
    %252 = vmatpush1.msra.mxu0 %v64
    %253 = vmatprep.subr.mxu0 %v61
    %254 = vmatpush1.msra.mxu0 %v60
    %255 = vmatprep.subr.mxu0 0.0
    %256 = vmatpush2.msra.mxu0 0.0
    %257 = vmatprep.subr.mxu0 0.0
    %258 = vmatpush2.msra.mxu0 0.0
    %259 = vmatprep.subr.mxu0 0.0
    %260 = vmatpush2.msra.mxu0 0.0
    %261 = vmatprep.subr.mxu0 0.0
    %262 = vmatpush2.msra.mxu0 0.0
    %263 = vmatprep.subr.mxu0 0.0
    %264 = vmatpush2.msra.mxu0 0.0
    %265 = vmatprep.subr.mxu0 0.0
    %266 = vmatpush2.msra.mxu0 0.0
    %267 = vmatprep.subr.mxu0 0.0
    %268 = vmatpush2.msra.mxu0 0.0
    %269 = vmatprep.subr.mxu0 0.0
    %270 = vmatpush2.msra.mxu0 0.0
    %271 = vmatprep.subr.mxu0 0.0
    %272 = vmatpush2.msra.mxu0 0.0
    %273 = vmatprep.subr.mxu0 0.0
    %274 = vmatpush2.msra.mxu0 0.0
    %275 = vmatprep.subr.mxu0 0.0
    %276 = vmatpush2.msra.mxu0 0.0
    %277 = vmatprep.subr.mxu0 0.0
    %278 = vmatpush2.msra.mxu0 0.0
    %279 = vmatprep.subr.mxu0 0.0
    %280 = vmatpush2.msra.mxu0 0.0
    %281 = vmatprep.subr.mxu0 0.0
    %282 = vmatpush2.msra.mxu0 0.0
    %283 = vmatprep.subr.mxu0 0.0
    %284 = vmatpush2.msra.mxu0 0.0
    %285 = vmatprep.subr.mxu0 0.0
    %286 = vmatpush2.msra.mxu0 0.0
    %287 = vmatprep.mubr.f32.mxu0 0.0
    %288 = vmatmul.mubr.f32.gmra.mxu0 0.0
    %v289 = vpop.f32.mrf.mxu0
    %v290 = vadd.f32 %v219, %v289
    %v291 = vpop.f32.mrf.mxu0
    %v292 = vadd.f32 %v220, %v291
    %293 = vdwg.mxu0
    %294 = vmatprep.subr.mxu0 %v123
    %295 = vmatpush1.msra.mxu0 %v122
    %296 = vmatprep.subr.mxu0 %v119
    %297 = vmatpush1.msra.mxu0 %v118
    %298 = vmatprep.subr.mxu0 %v115
    %299 = vmatpush1.msra.mxu0 %v114
    %300 = vmatprep.subr.mxu0 %v111
    %301 = vmatpush1.msra.mxu0 %v110
    %302 = vmatprep.subr.mxu0 %v107
    %303 = vmatpush1.msra.mxu0 %v106
    %304 = vmatprep.subr.mxu0 %v103
    %305 = vmatpush1.msra.mxu0 %v102
    %306 = vmatprep.subr.mxu0 %v99
    %307 = vmatpush1.msra.mxu0 %v98
    %308 = vmatprep.subr.mxu0 %v95
    %309 = vmatpush1.msra.mxu0 %v94
    %310 = vmatprep.subr.mxu0 %v91
    %311 = vmatpush1.msra.mxu0 %v90
    %312 = vmatprep.subr.mxu0 %v87
    %313 = vmatpush1.msra.mxu0 %v86
    %314 = vmatprep.subr.mxu0 %v83
    %315 = vmatpush1.msra.mxu0 %v82
    %316 = vmatprep.subr.mxu0 %v79
    %317 = vmatpush1.msra.mxu0 %v78
    %318 = vmatprep.subr.mxu0 %v75
    %319 = vmatpush1.msra.mxu0 %v74
    %320 = vmatprep.subr.mxu0 %v71
    %321 = vmatpush1.msra.mxu0 %v70
    %322 = vmatprep.subr.mxu0 %v67
    %323 = vmatpush1.msra.mxu0 %v66
    %324 = vmatprep.subr.mxu0 %v63
    %325 = vmatpush1.msra.mxu0 %v62
    %326 = vmatprep.subr.mxu0 0.0
    %327 = vmatpush2.msra.mxu0 0.0
    %328 = vmatprep.subr.mxu0 0.0
    %329 = vmatpush2.msra.mxu0 0.0
    %330 = vmatprep.subr.mxu0 0.0
    %331 = vmatpush2.msra.mxu0 0.0
    %332 = vmatprep.subr.mxu0 0.0
    %333 = vmatpush2.msra.mxu0 0.0
    %334 = vmatprep.subr.mxu0 0.0
    %335 = vmatpush2.msra.mxu0 0.0
    %336 = vmatprep.subr.mxu0 0.0
    %337 = vmatpush2.msra.mxu0 0.0
    %338 = vmatprep.subr.mxu0 0.0
    %339 = vmatpush2.msra.mxu0 0.0
    %340 = vmatprep.subr.mxu0 0.0
    %341 = vmatpush2.msra.mxu0 0.0
    %342 = vmatprep.subr.mxu0 0.0
    %343 = vmatpush2.msra.mxu0 0.0
    %344 = vmatprep.subr.mxu0 0.0
    %345 = vmatpush2.msra.mxu0 0.0
    %346 = vmatprep.subr.mxu0 0.0
    %347 = vmatpush2.msra.mxu0 0.0
    %348 = vmatprep.subr.mxu0 0.0
    %349 = vmatpush2.msra.mxu0 0.0
    %350 = vmatprep.subr.mxu0 0.0
    %351 = vmatpush2.msra.mxu0 0.0
    %352 = vmatprep.subr.mxu0 0.0
    %353 = vmatpush2.msra.mxu0 0.0
    %354 = vmatprep.subr.mxu0 0.0
    %355 = vmatpush2.msra.mxu0 0.0
    %356 = vmatprep.subr.mxu0 0.0
    %357 = vmatpush2.msra.mxu0 0.0
    %358 = vmatprep.mubr.f32.mxu0 0.0
    %359 = vmatmul.mubr.f32.gmra.mxu0 0.0
    %v360 = vpop.f32.mrf.mxu0
    %v361 = vadd.f32 %v221, %v360
    %v362 = vpop.f32.mrf.mxu0
    %v363 = vadd.f32 %v222, %v362
    %364 = vdwg.mxu0
    %v366 = vlaneseq
    %v367 = vshrl.u32 %v366, 7
    %v368 = vsub.s32 0, %v367
    %v369 = vrot.slane %v124, %v368
    %v370 = vlaneseq
    %v371 = vshrl.u32 %v370, 7
    %v372 = vsub.s32 1, %v371
    %v373 = vrot.slane %v124, %v372
    %v374 = vlaneseq
    %v375 = vshrl.u32 %v374, 7
    %v376 = vsub.s32 2, %v375
    %v377 = vrot.slane %v124, %v376
    %v378 = vlaneseq
    %v379 = vshrl.u32 %v378, 7
    %v380 = vsub.s32 3, %v379
    %v381 = vrot.slane %v124, %v380
    %v386 = vadd.f32 %v290, %v369
    %v387 = vadd.f32 %v292, %v373
    %v388 = vadd.f32 %v361, %v377
    %v389 = vadd.f32 %v363, %v381
    %v390 = vxor.u32 %v386, 2147483648
    %v391 = vxor.u32 %v387, 2147483648
    %v392 = vxor.u32 %v388, 2147483648
    %v393 = vmul.f32 %v390, 1.442695
    %v394 = vpow.pop %v393
    %v395 = vmul.f32 %v391, 1.442695
    %v396 = vpow.pop %v395
    %v397 = vmul.f32 %v392, 1.442695
    %v398 = vpow.pop %v397
    %v399 = vadd.f32 %v394, 1.0
    %v400 = vadd.f32 %v396, 1.0
    %v401 = vadd.f32 %v398, 1.0
    %v402 = vrcp.pop %v399
    %v403 = vmul.f32 1.0, %v402
    %v404 = vrcp.pop %v400
    %v405 = vmul.f32 1.0, %v404
    %v406 = vrcp.pop %v401
    %v407 = vmul.f32 1.0, %v406
    %v408 = vtanh.pop %v389
    %v409 = vmul.f32 %v405, 0.0
    %v410 = vmul.f32 %v403, %v408
    %v411 = vadd.f32 %v409, %v410
    %v412 = vtanh.pop %v411
    %v413 = vmul.f32 %v407, %v412
    %414 = vrot.lane.b32.xlu0 0.0, 64
    %v415 = vpop.permute.xlu0 %414
    %v416 = vadd.f32 %v413, %v415
    %v418 = vlaneseq
    %v419 = vshrl.u32 %v418, 7
    %v420 = vsub.s32 0, %v419
    %v421 = vrot.slane %v189, %v420
    %v422 = vlaneseq
    %v423 = vshrl.u32 %v422, 7
    %v424 = vsub.s32 1, %v423
    %v425 = vrot.slane %v189, %v424
    %v426 = vlaneseq
    %v427 = vshrl.u32 %v426, 7
    %v428 = vsub.s32 2, %v427
    %v429 = vrot.slane %v189, %v428
    %v430 = vlaneseq
    %v431 = vshrl.u32 %v430, 7
    %v432 = vsub.s32 3, %v431
    %v433 = vrot.slane %v189, %v432
    %438 = vmatprep.subr.mxu0 %v186
    %439 = vmatpush1.msra.mxu0 %v185
    %440 = vmatprep.subr.mxu0 %v182
    %441 = vmatpush1.msra.mxu0 %v181
    %442 = vmatprep.subr.mxu0 %v178
    %443 = vmatpush1.msra.mxu0 %v177
    %444 = vmatprep.subr.mxu0 %v174
    %445 = vmatpush1.msra.mxu0 %v173
    %446 = vmatprep.subr.mxu0 %v170
    %447 = vmatpush1.msra.mxu0 %v169
    %448 = vmatprep.subr.mxu0 %v166
    %449 = vmatpush1.msra.mxu0 %v165
    %450 = vmatprep.subr.mxu0 %v162
    %451 = vmatpush1.msra.mxu0 %v161
    %452 = vmatprep.subr.mxu0 %v158
    %453 = vmatpush1.msra.mxu0 %v157
    %454 = vmatprep.subr.mxu0 %v154
    %455 = vmatpush1.msra.mxu0 %v153
    %456 = vmatprep.subr.mxu0 %v150
    %457 = vmatpush1.msra.mxu0 %v149
    %458 = vmatprep.subr.mxu0 %v146
    %459 = vmatpush1.msra.mxu0 %v145
    %460 = vmatprep.subr.mxu0 %v142
    %461 = vmatpush1.msra.mxu0 %v141
    %462 = vmatprep.subr.mxu0 %v138
    %463 = vmatpush1.msra.mxu0 %v137
    %464 = vmatprep.subr.mxu0 %v134
    %465 = vmatpush1.msra.mxu0 %v133
    %466 = vmatprep.subr.mxu0 %v130
    %467 = vmatpush1.msra.mxu0 %v129
    %468 = vmatprep.subr.mxu0 %v126
    %469 = vmatpush1.msra.mxu0 %v125
    %470 = vmatprep.subr.mxu0 0.0
    %471 = vmatpush2.msra.mxu0 0.0
    %472 = vmatprep.subr.mxu0 0.0
    %473 = vmatpush2.msra.mxu0 0.0
    %474 = vmatprep.subr.mxu0 0.0
    %475 = vmatpush2.msra.mxu0 0.0
    %476 = vmatprep.subr.mxu0 0.0
    %477 = vmatpush2.msra.mxu0 0.0
    %478 = vmatprep.subr.mxu0 0.0
    %479 = vmatpush2.msra.mxu0 0.0
    %480 = vmatprep.subr.mxu0 0.0
    %481 = vmatpush2.msra.mxu0 0.0
    %482 = vmatprep.subr.mxu0 0.0
    %483 = vmatpush2.msra.mxu0 0.0
    %484 = vmatprep.subr.mxu0 0.0
    %485 = vmatpush2.msra.mxu0 0.0
    %486 = vmatprep.subr.mxu0 0.0
    %487 = vmatpush2.msra.mxu0 0.0
    %488 = vmatprep.subr.mxu0 0.0
    %489 = vmatpush2.msra.mxu0 0.0
    %490 = vmatprep.subr.mxu0 0.0
    %491 = vmatpush2.msra.mxu0 0.0
    %492 = vmatprep.subr.mxu0 0.0
    %493 = vmatpush2.msra.mxu0 0.0
    %494 = vmatprep.subr.mxu0 0.0
    %495 = vmatpush2.msra.mxu0 0.0
    %496 = vmatprep.subr.mxu0 0.0
    %497 = vmatpush2.msra.mxu0 0.0
    %498 = vmatprep.subr.mxu0 0.0
    %499 = vmatpush2.msra.mxu0 0.0
    %500 = vmatprep.subr.mxu0 0.0
    %501 = vmatpush2.msra.mxu0 0.0
    %502 = vmatprep.mubr.f32.mxu0 0.0
    %503 = vmatmul.mubr.f32.gmra.mxu0 %v416
    %v504 = vpop.f32.mrf.mxu0
    %v505 = vadd.f32 %v421, %v504
    %v506 = vpop.f32.mrf.mxu0
    %v507 = vadd.f32 %v425, %v506
    %508 = vdwg.mxu0
    %509 = vmatprep.subr.mxu0 %v188
    %510 = vmatpush1.msra.mxu0 %v187
    %511 = vmatprep.subr.mxu0 %v184
    %512 = vmatpush1.msra.mxu0 %v183
    %513 = vmatprep.subr.mxu0 %v180
    %514 = vmatpush1.msra.mxu0 %v179
    %515 = vmatprep.subr.mxu0 %v176
    %516 = vmatpush1.msra.mxu0 %v175
    %517 = vmatprep.subr.mxu0 %v172
    %518 = vmatpush1.msra.mxu0 %v171
    %519 = vmatprep.subr.mxu0 %v168
    %520 = vmatpush1.msra.mxu0 %v167
    %521 = vmatprep.subr.mxu0 %v164
    %522 = vmatpush1.msra.mxu0 %v163
    %523 = vmatprep.subr.mxu0 %v160
    %524 = vmatpush1.msra.mxu0 %v159
    %525 = vmatprep.subr.mxu0 %v156
    %526 = vmatpush1.msra.mxu0 %v155
    %527 = vmatprep.subr.mxu0 %v152
    %528 = vmatpush1.msra.mxu0 %v151
    %529 = vmatprep.subr.mxu0 %v148
    %530 = vmatpush1.msra.mxu0 %v147
    %531 = vmatprep.subr.mxu0 %v144
    %532 = vmatpush1.msra.mxu0 %v143
    %533 = vmatprep.subr.mxu0 %v140
    %534 = vmatpush1.msra.mxu0 %v139
    %535 = vmatprep.subr.mxu0 %v136
    %536 = vmatpush1.msra.mxu0 %v135
    %537 = vmatprep.subr.mxu0 %v132
    %538 = vmatpush1.msra.mxu0 %v131
    %539 = vmatprep.subr.mxu0 %v128
    %540 = vmatpush1.msra.mxu0 %v127
    %541 = vmatprep.subr.mxu0 0.0
    %542 = vmatpush2.msra.mxu0 0.0
    %543 = vmatprep.subr.mxu0 0.0
    %544 = vmatpush2.msra.mxu0 0.0
    %545 = vmatprep.subr.mxu0 0.0
    %546 = vmatpush2.msra.mxu0 0.0
    %547 = vmatprep.subr.mxu0 0.0
    %548 = vmatpush2.msra.mxu0 0.0
    %549 = vmatprep.subr.mxu0 0.0
    %550 = vmatpush2.msra.mxu0 0.0
    %551 = vmatprep.subr.mxu0 0.0
    %552 = vmatpush2.msra.mxu0 0.0
    %553 = vmatprep.subr.mxu0 0.0
    %554 = vmatpush2.msra.mxu0 0.0
    %555 = vmatprep.subr.mxu0 0.0
    %556 = vmatpush2.msra.mxu0 0.0
    %557 = vmatprep.subr.mxu0 0.0
    %558 = vmatpush2.msra.mxu0 0.0
    %559 = vmatprep.subr.mxu0 0.0
    %560 = vmatpush2.msra.mxu0 0.0
    %561 = vmatprep.subr.mxu0 0.0
    %562 = vmatpush2.msra.mxu0 0.0
    %563 = vmatprep.subr.mxu0 0.0
    %564 = vmatpush2.msra.mxu0 0.0
    %565 = vmatprep.subr.mxu0 0.0
    %566 = vmatpush2.msra.mxu0 0.0
    %567 = vmatprep.subr.mxu0 0.0
    %568 = vmatpush2.msra.mxu0 0.0
    %569 = vmatprep.subr.mxu0 0.0
    %570 = vmatpush2.msra.mxu0 0.0
    %571 = vmatprep.subr.mxu0 0.0
    %572 = vmatpush2.msra.mxu0 0.0
    %573 = vmatprep.mubr.f32.mxu0 0.0
    %574 = vmatmul.mubr.f32.gmra.mxu0 %v416
    %v575 = vpop.f32.mrf.mxu0
    %v576 = vadd.f32 %v429, %v575
    %v577 = vpop.f32.mrf.mxu0
    %v578 = vadd.f32 %v433, %v577
    %579 = vdwg.mxu0
    %v580 = vxor.u32 %v505, 2147483648
    %v581 = vxor.u32 %v507, 2147483648
    %v582 = vxor.u32 %v576, 2147483648
    %v583 = vmul.f32 %v580, 1.442695
    %v584 = vpow.pop %v583
    %v585 = vmul.f32 %v581, 1.442695
    %v586 = vpow.pop %v585
    %v587 = vmul.f32 %v582, 1.442695
    %v588 = vpow.pop %v587
    %v589 = vadd.f32 %v584, 1.0
    %v590 = vadd.f32 %v586, 1.0
    %v591 = vadd.f32 %v588, 1.0
    %v592 = vrcp.pop %v589
    %v593 = vmul.f32 1.0, %v592
    %v594 = vrcp.pop %v590
    %v595 = vmul.f32 1.0, %v594
    %v596 = vrcp.pop %v591
    %v597 = vmul.f32 1.0, %v596
    %v598 = vtanh.pop %v578
    %v599 = vmul.f32 %v595, 0.0
    %v600 = vmul.f32 %v593, %v598
    %v601 = vadd.f32 %v599, %v600
    %v602 = vtanh.pop %v601
    %v603 = vmul.f32 %v597, %v602
    %v605 = vlaneseq
    %v606 = vshrl.u32 %v605, 7
    %v607 = vsub.s32 0, %v606
    %v608 = vrot.slane %v190, %v607
    %v610 = vmul.f32 %v603, %v608
    %vm611 = vcmask 1043456
    %v612 = vsel %vm611, %v610, 0.0
    %613 = vadd.xlane.f32.xlu0 %v612
    %v614 = vpop.xlane.xlu0 %613
    %v616 = vlaneseq
    %v617 = vshrl.u32 %v616, 7
    %v618 = vsub.s32 0, %v617
    %v619 = vrot.slane %v191, %v618
    %v621 = vadd.f32 %v614, %v619
    %vm622 = vcmask 3072
    %623 = vst.msk [vmem:[%s8] sm:$0xf] %vm622, %v621
    %s624 = scalar_lea.vmem %s0, 4
    %v625 = vld [vmem:[%s624] sm:$0xf]
    %627 = vset.pattern.permute.xlu0 0
    %628 = vperm.xlu0 %627, %v625
    %v629 = vpop.permute.xlu0 %628
    %v631 = vmul.f32 %v629, %v202
    %v632 = vmul.f32 %v629, %v206
    %v633 = vmul.f32 %v629, %v210
    %v634 = vmul.f32 %v629, %v214
    %635 = vmatprep.subr.mxu0 %v121
    %636 = vmatpush1.msra.mxu0 %v120
    %637 = vmatprep.subr.mxu0 %v117
    %638 = vmatpush1.msra.mxu0 %v116
    %639 = vmatprep.subr.mxu0 %v113
    %640 = vmatpush1.msra.mxu0 %v112
    %641 = vmatprep.subr.mxu0 %v109
    %642 = vmatpush1.msra.mxu0 %v108
    %643 = vmatprep.subr.mxu0 %v105
    %644 = vmatpush1.msra.mxu0 %v104
    %645 = vmatprep.subr.mxu0 %v101
    %646 = vmatpush1.msra.mxu0 %v100
    %647 = vmatprep.subr.mxu0 %v97
    %648 = vmatpush1.msra.mxu0 %v96
    %649 = vmatprep.subr.mxu0 %v93
    %650 = vmatpush1.msra.mxu0 %v92
    %651 = vmatprep.subr.mxu0 %v89
    %652 = vmatpush1.msra.mxu0 %v88
    %653 = vmatprep.subr.mxu0 %v85
    %654 = vmatpush1.msra.mxu0 %v84
    %655 = vmatprep.subr.mxu0 %v81
    %656 = vmatpush1.msra.mxu0 %v80
    %657 = vmatprep.subr.mxu0 %v77
    %658 = vmatpush1.msra.mxu0 %v76
    %659 = vmatprep.subr.mxu0 %v73
    %660 = vmatpush1.msra.mxu0 %v72
    %661 = vmatprep.subr.mxu0 %v69
    %662 = vmatpush1.msra.mxu0 %v68
    %663 = vmatprep.subr.mxu0 %v65
    %664 = vmatpush1.msra.mxu0 %v64
    %665 = vmatprep.subr.mxu0 %v61
    %666 = vmatpush1.msra.mxu0 %v60
    %667 = vmatprep.subr.mxu0 0.0
    %668 = vmatpush2.msra.mxu0 0.0
    %669 = vmatprep.subr.mxu0 0.0
    %670 = vmatpush2.msra.mxu0 0.0
    %671 = vmatprep.subr.mxu0 0.0
    %672 = vmatpush2.msra.mxu0 0.0
    %673 = vmatprep.subr.mxu0 0.0
    %674 = vmatpush2.msra.mxu0 0.0
    %675 = vmatprep.subr.mxu0 0.0
    %676 = vmatpush2.msra.mxu0 0.0
    %677 = vmatprep.subr.mxu0 0.0
    %678 = vmatpush2.msra.mxu0 0.0
    %679 = vmatprep.subr.mxu0 0.0
    %680 = vmatpush2.msra.mxu0 0.0
    %681 = vmatprep.subr.mxu0 0.0
    %682 = vmatpush2.msra.mxu0 0.0
    %683 = vmatprep.subr.mxu0 0.0
    %684 = vmatpush2.msra.mxu0 0.0
    %685 = vmatprep.subr.mxu0 0.0
    %686 = vmatpush2.msra.mxu0 0.0
    %687 = vmatprep.subr.mxu0 0.0
    %688 = vmatpush2.msra.mxu0 0.0
    %689 = vmatprep.subr.mxu0 0.0
    %690 = vmatpush2.msra.mxu0 0.0
    %691 = vmatprep.subr.mxu0 0.0
    %692 = vmatpush2.msra.mxu0 0.0
    %693 = vmatprep.subr.mxu0 0.0
    %694 = vmatpush2.msra.mxu0 0.0
    %695 = vmatprep.subr.mxu0 0.0
    %696 = vmatpush2.msra.mxu0 0.0
    %697 = vmatprep.subr.mxu0 0.0
    %698 = vmatpush2.msra.mxu0 0.0
    %699 = vmatprep.mubr.f32.mxu0 0.0
    %700 = vmatmul.mubr.f32.gmra.mxu0 %v413
    %v701 = vpop.f32.mrf.mxu0
    %v702 = vadd.f32 %v631, %v701
    %v703 = vpop.f32.mrf.mxu0
    %v704 = vadd.f32 %v632, %v703
    %705 = vdwg.mxu0
    %706 = vmatprep.subr.mxu0 %v123
    %707 = vmatpush1.msra.mxu0 %v122
    %708 = vmatprep.subr.mxu0 %v119
    %709 = vmatpush1.msra.mxu0 %v118
    %710 = vmatprep.subr.mxu0 %v115
    %711 = vmatpush1.msra.mxu0 %v114
    %712 = vmatprep.subr.mxu0 %v111
    %713 = vmatpush1.msra.mxu0 %v110
    %714 = vmatprep.subr.mxu0 %v107
    %715 = vmatpush1.msra.mxu0 %v106
    %716 = vmatprep.subr.mxu0 %v103
    %717 = vmatpush1.msra.mxu0 %v102
    %718 = vmatprep.subr.mxu0 %v99
    %719 = vmatpush1.msra.mxu0 %v98
    %720 = vmatprep.subr.mxu0 %v95
    %721 = vmatpush1.msra.mxu0 %v94
    %722 = vmatprep.subr.mxu0 %v91
    %723 = vmatpush1.msra.mxu0 %v90
    %724 = vmatprep.subr.mxu0 %v87
    %725 = vmatpush1.msra.mxu0 %v86
    %726 = vmatprep.subr.mxu0 %v83
    %727 = vmatpush1.msra.mxu0 %v82
    %728 = vmatprep.subr.mxu0 %v79
    %729 = vmatpush1.msra.mxu0 %v78
    %730 = vmatprep.subr.mxu0 %v75
    %731 = vmatpush1.msra.mxu0 %v74
    %732 = vmatprep.subr.mxu0 %v71
    %733 = vmatpush1.msra.mxu0 %v70
    %734 = vmatprep.subr.mxu0 %v67
    %735 = vmatpush1.msra.mxu0 %v66
    %736 = vmatprep.subr.mxu0 %v63
    %737 = vmatpush1.msra.mxu0 %v62
    %738 = vmatprep.subr.mxu0 0.0
    %739 = vmatpush2.msra.mxu0 0.0
    %740 = vmatprep.subr.mxu0 0.0
    %741 = vmatpush2.msra.mxu0 0.0
    %742 = vmatprep.subr.mxu0 0.0
    %743 = vmatpush2.msra.mxu0 0.0
    %744 = vmatprep.subr.mxu0 0.0
    %745 = vmatpush2.msra.mxu0 0.0
    %746 = vmatprep.subr.mxu0 0.0
    %747 = vmatpush2.msra.mxu0 0.0
    %748 = vmatprep.subr.mxu0 0.0
    %749 = vmatpush2.msra.mxu0 0.0
    %750 = vmatprep.subr.mxu0 0.0
    %751 = vmatpush2.msra.mxu0 0.0
    %752 = vmatprep.subr.mxu0 0.0
    %753 = vmatpush2.msra.mxu0 0.0
    %754 = vmatprep.subr.mxu0 0.0
    %755 = vmatpush2.msra.mxu0 0.0
    %756 = vmatprep.subr.mxu0 0.0
    %757 = vmatpush2.msra.mxu0 0.0
    %758 = vmatprep.subr.mxu0 0.0
    %759 = vmatpush2.msra.mxu0 0.0
    %760 = vmatprep.subr.mxu0 0.0
    %761 = vmatpush2.msra.mxu0 0.0
    %762 = vmatprep.subr.mxu0 0.0
    %763 = vmatpush2.msra.mxu0 0.0
    %764 = vmatprep.subr.mxu0 0.0
    %765 = vmatpush2.msra.mxu0 0.0
    %766 = vmatprep.subr.mxu0 0.0
    %767 = vmatpush2.msra.mxu0 0.0
    %768 = vmatprep.subr.mxu0 0.0
    %769 = vmatpush2.msra.mxu0 0.0
    %770 = vmatprep.mubr.f32.mxu0 0.0
    %771 = vmatmul.mubr.f32.gmra.mxu0 %v413
    %v772 = vpop.f32.mrf.mxu0
    %v773 = vadd.f32 %v633, %v772
    %v774 = vpop.f32.mrf.mxu0
    %v775 = vadd.f32 %v634, %v774
    %776 = vdwg.mxu0
    %v777 = vadd.f32 %v702, %v369
    %v778 = vadd.f32 %v704, %v373
    %v779 = vadd.f32 %v773, %v377
    %v780 = vadd.f32 %v775, %v381
    %v781 = vxor.u32 %v777, 2147483648
    %v782 = vxor.u32 %v778, 2147483648
    %v783 = vxor.u32 %v779, 2147483648
    %v784 = vmul.f32 %v781, 1.442695
    %v785 = vpow.pop %v784
    %v786 = vmul.f32 %v782, 1.442695
    %v787 = vpow.pop %v786
    %v788 = vmul.f32 %v783, 1.442695
    %v789 = vpow.pop %v788
    %v790 = vadd.f32 %v785, 1.0
    %v791 = vadd.f32 %v787, 1.0
    %v792 = vadd.f32 %v789, 1.0
    %v793 = vrcp.pop %v790
    %v794 = vmul.f32 1.0, %v793
    %v795 = vrcp.pop %v791
    %v796 = vmul.f32 1.0, %v795
    %v797 = vrcp.pop %v792
    %v798 = vmul.f32 1.0, %v797
    %v799 = vtanh.pop %v780
    %v800 = vmul.f32 %v796, %v411
    %v801 = vmul.f32 %v794, %v799
    %v802 = vadd.f32 %v800, %v801
    %v803 = vtanh.pop %v802
    %v804 = vmul.f32 %v798, %v803
    %805 = vrot.lane.b32.xlu0 %v603, 64
    %v806 = vpop.permute.xlu0 %805
    %v807 = vadd.f32 %v804, %v806
    %808 = vmatprep.subr.mxu0 %v186
    %809 = vmatpush1.msra.mxu0 %v185
    %810 = vmatprep.subr.mxu0 %v182
    %811 = vmatpush1.msra.mxu0 %v181
    %812 = vmatprep.subr.mxu0 %v178
    %813 = vmatpush1.msra.mxu0 %v177
    %814 = vmatprep.subr.mxu0 %v174
    %815 = vmatpush1.msra.mxu0 %v173
    %816 = vmatprep.subr.mxu0 %v170
    %817 = vmatpush1.msra.mxu0 %v169
    %818 = vmatprep.subr.mxu0 %v166
    %819 = vmatpush1.msra.mxu0 %v165
    %820 = vmatprep.subr.mxu0 %v162
    %821 = vmatpush1.msra.mxu0 %v161
    %822 = vmatprep.subr.mxu0 %v158
    %823 = vmatpush1.msra.mxu0 %v157
    %824 = vmatprep.subr.mxu0 %v154
    %825 = vmatpush1.msra.mxu0 %v153
    %826 = vmatprep.subr.mxu0 %v150
    %827 = vmatpush1.msra.mxu0 %v149
    %828 = vmatprep.subr.mxu0 %v146
    %829 = vmatpush1.msra.mxu0 %v145
    %830 = vmatprep.subr.mxu0 %v142
    %831 = vmatpush1.msra.mxu0 %v141
    %832 = vmatprep.subr.mxu0 %v138
    %833 = vmatpush1.msra.mxu0 %v137
    %834 = vmatprep.subr.mxu0 %v134
    %835 = vmatpush1.msra.mxu0 %v133
    %836 = vmatprep.subr.mxu0 %v130
    %837 = vmatpush1.msra.mxu0 %v129
    %838 = vmatprep.subr.mxu0 %v126
    %839 = vmatpush1.msra.mxu0 %v125
    %840 = vmatprep.subr.mxu0 0.0
    %841 = vmatpush2.msra.mxu0 0.0
    %842 = vmatprep.subr.mxu0 0.0
    %843 = vmatpush2.msra.mxu0 0.0
    %844 = vmatprep.subr.mxu0 0.0
    %845 = vmatpush2.msra.mxu0 0.0
    %846 = vmatprep.subr.mxu0 0.0
    %847 = vmatpush2.msra.mxu0 0.0
    %848 = vmatprep.subr.mxu0 0.0
    %849 = vmatpush2.msra.mxu0 0.0
    %850 = vmatprep.subr.mxu0 0.0
    %851 = vmatpush2.msra.mxu0 0.0
    %852 = vmatprep.subr.mxu0 0.0
    %853 = vmatpush2.msra.mxu0 0.0
    %854 = vmatprep.subr.mxu0 0.0
    %855 = vmatpush2.msra.mxu0 0.0
    %856 = vmatprep.subr.mxu0 0.0
    %857 = vmatpush2.msra.mxu0 0.0
    %858 = vmatprep.subr.mxu0 0.0
    %859 = vmatpush2.msra.mxu0 0.0
    %860 = vmatprep.subr.mxu0 0.0
    %861 = vmatpush2.msra.mxu0 0.0
    %862 = vmatprep.subr.mxu0 0.0
    %863 = vmatpush2.msra.mxu0 0.0
    %864 = vmatprep.subr.mxu0 0.0
    %865 = vmatpush2.msra.mxu0 0.0
    %866 = vmatprep.subr.mxu0 0.0
    %867 = vmatpush2.msra.mxu0 0.0
    %868 = vmatprep.subr.mxu0 0.0
    %869 = vmatpush2.msra.mxu0 0.0
    %870 = vmatprep.subr.mxu0 0.0
    %871 = vmatpush2.msra.mxu0 0.0
    %872 = vmatprep.mubr.f32.mxu0 0.0
    %873 = vmatmul.mubr.f32.gmra.mxu0 %v807
    %v874 = vpop.f32.mrf.mxu0
    %v875 = vadd.f32 %v421, %v874
    %v876 = vpop.f32.mrf.mxu0
    %v877 = vadd.f32 %v425, %v876
    %878 = vdwg.mxu0
    %879 = vmatprep.subr.mxu0 %v188
    %880 = vmatpush1.msra.mxu0 %v187
    %881 = vmatprep.subr.mxu0 %v184
    %882 = vmatpush1.msra.mxu0 %v183
    %883 = vmatprep.subr.mxu0 %v180
    %884 = vmatpush1.msra.mxu0 %v179
    %885 = vmatprep.subr.mxu0 %v176
    %886 = vmatpush1.msra.mxu0 %v175
    %887 = vmatprep.subr.mxu0 %v172
    %888 = vmatpush1.msra.mxu0 %v171
    %889 = vmatprep.subr.mxu0 %v168
    %890 = vmatpush1.msra.mxu0 %v167
    %891 = vmatprep.subr.mxu0 %v164
    %892 = vmatpush1.msra.mxu0 %v163
    %893 = vmatprep.subr.mxu0 %v160
    %894 = vmatpush1.msra.mxu0 %v159
    %895 = vmatprep.subr.mxu0 %v156
    %896 = vmatpush1.msra.mxu0 %v155
    %897 = vmatprep.subr.mxu0 %v152
    %898 = vmatpush1.msra.mxu0 %v151
    %899 = vmatprep.subr.mxu0 %v148
    %900 = vmatpush1.msra.mxu0 %v147
    %901 = vmatprep.subr.mxu0 %v144
    %902 = vmatpush1.msra.mxu0 %v143
    %903 = vmatprep.subr.mxu0 %v140
    %904 = vmatpush1.msra.mxu0 %v139
    %905 = vmatprep.subr.mxu0 %v136
    %906 = vmatpush1.msra.mxu0 %v135
    %907 = vmatprep.subr.mxu0 %v132
    %908 = vmatpush1.msra.mxu0 %v131
    %909 = vmatprep.subr.mxu0 %v128
    %910 = vmatpush1.msra.mxu0 %v127
    %911 = vmatprep.subr.mxu0 0.0
    %912 = vmatpush2.msra.mxu0 0.0
    %913 = vmatprep.subr.mxu0 0.0
    %914 = vmatpush2.msra.mxu0 0.0
    %915 = vmatprep.subr.mxu0 0.0
    %916 = vmatpush2.msra.mxu0 0.0
    %917 = vmatprep.subr.mxu0 0.0
    %918 = vmatpush2.msra.mxu0 0.0
    %919 = vmatprep.subr.mxu0 0.0
    %920 = vmatpush2.msra.mxu0 0.0
    %921 = vmatprep.subr.mxu0 0.0
    %922 = vmatpush2.msra.mxu0 0.0
    %923 = vmatprep.subr.mxu0 0.0
    %924 = vmatpush2.msra.mxu0 0.0
    %925 = vmatprep.subr.mxu0 0.0
    %926 = vmatpush2.msra.mxu0 0.0
    %927 = vmatprep.subr.mxu0 0.0
    %928 = vmatpush2.msra.mxu0 0.0
    %929 = vmatprep.subr.mxu0 0.0
    %930 = vmatpush2.msra.mxu0 0.0
    %931 = vmatprep.subr.mxu0 0.0
    %932 = vmatpush2.msra.mxu0 0.0
    %933 = vmatprep.subr.mxu0 0.0
    %934 = vmatpush2.msra.mxu0 0.0
    %935 = vmatprep.subr.mxu0 0.0
    %936 = vmatpush2.msra.mxu0 0.0
    %937 = vmatprep.subr.mxu0 0.0
    %938 = vmatpush2.msra.mxu0 0.0
    %939 = vmatprep.subr.mxu0 0.0
    %940 = vmatpush2.msra.mxu0 0.0
    %941 = vmatprep.subr.mxu0 0.0
    %942 = vmatpush2.msra.mxu0 0.0
    %943 = vmatprep.mubr.f32.mxu0 0.0
    %944 = vmatmul.mubr.f32.gmra.mxu0 %v807
    %v945 = vpop.f32.mrf.mxu0
    %v946 = vadd.f32 %v429, %v945
    %v947 = vpop.f32.mrf.mxu0
    %v948 = vadd.f32 %v433, %v947
    %949 = vdwg.mxu0
    %v950 = vxor.u32 %v875, 2147483648
    %v951 = vxor.u32 %v877, 2147483648
    %v952 = vxor.u32 %v946, 2147483648
    %v953 = vmul.f32 %v950, 1.442695
    %v954 = vpow.pop %v953
    %v955 = vmul.f32 %v951, 1.442695
    %v956 = vpow.pop %v955
    %v957 = vmul.f32 %v952, 1.442695
    %v958 = vpow.pop %v957
    %v959 = vadd.f32 %v954, 1.0
    %v960 = vadd.f32 %v956, 1.0
    %v961 = vadd.f32 %v958, 1.0
    %v962 = vrcp.pop %v959
    %v963 = vmul.f32 1.0, %v962
    %v964 = vrcp.pop %v960
    %v965 = vmul.f32 1.0, %v964
    %v966 = vrcp.pop %v961
    %v967 = vmul.f32 1.0, %v966
    %v968 = vtanh.pop %v948
    %v969 = vmul.f32 %v965, %v601
    %v970 = vmul.f32 %v963, %v968
    %v971 = vadd.f32 %v969, %v970
    %v972 = vtanh.pop %v971
    %v973 = vmul.f32 %v967, %v972
    %v974 = vmul.f32 %v973, %v608
    %v975 = vsel %vm611, %v974, 0.0
    %976 = vadd.xlane.f32.xlu0 %v975
    %v977 = vpop.xlane.xlu0 %976
    %v978 = vadd.f32 %v977, %v619
    %s979 = scalar_lea.vmem %s8, 4
    %980 = vst.msk [vmem:[%s979] sm:$0xf] %vm622, %v978
    %s981 = scalar_lea.vmem %s0, 8
    %v982 = vld [vmem:[%s981] sm:$0xf]
    %984 = vset.pattern.permute.xlu0 0
    %985 = vperm.xlu0 %984, %v982
    %v986 = vpop.permute.xlu0 %985
    %v988 = vmul.f32 %v986, %v202
    %v989 = vmul.f32 %v986, %v206
    %v990 = vmul.f32 %v986, %v210
    %v991 = vmul.f32 %v986, %v214
    %992 = vmatprep.subr.mxu0 %v121
    %993 = vmatpush1.msra.mxu0 %v120
    %994 = vmatprep.subr.mxu0 %v117
    %995 = vmatpush1.msra.mxu0 %v116
    %996 = vmatprep.subr.mxu0 %v113
    %997 = vmatpush1.msra.mxu0 %v112
    %998 = vmatprep.subr.mxu0 %v109
    %999 = vmatpush1.msra.mxu0 %v108
    %1000 = vmatprep.subr.mxu0 %v105
    %1001 = vmatpush1.msra.mxu0 %v104
    %1002 = vmatprep.subr.mxu0 %v101
    %1003 = vmatpush1.msra.mxu0 %v100
    %1004 = vmatprep.subr.mxu0 %v97
    %1005 = vmatpush1.msra.mxu0 %v96
    %1006 = vmatprep.subr.mxu0 %v93
    %1007 = vmatpush1.msra.mxu0 %v92
    %1008 = vmatprep.subr.mxu0 %v89
    %1009 = vmatpush1.msra.mxu0 %v88
    %1010 = vmatprep.subr.mxu0 %v85
    %1011 = vmatpush1.msra.mxu0 %v84
    %1012 = vmatprep.subr.mxu0 %v81
    %1013 = vmatpush1.msra.mxu0 %v80
    %1014 = vmatprep.subr.mxu0 %v77
    %1015 = vmatpush1.msra.mxu0 %v76
    %1016 = vmatprep.subr.mxu0 %v73
    %1017 = vmatpush1.msra.mxu0 %v72
    %1018 = vmatprep.subr.mxu0 %v69
    %1019 = vmatpush1.msra.mxu0 %v68
    %1020 = vmatprep.subr.mxu0 %v65
    %1021 = vmatpush1.msra.mxu0 %v64
    %1022 = vmatprep.subr.mxu0 %v61
    %1023 = vmatpush1.msra.mxu0 %v60
    %1024 = vmatprep.subr.mxu0 0.0
    %1025 = vmatpush2.msra.mxu0 0.0
    %1026 = vmatprep.subr.mxu0 0.0
    %1027 = vmatpush2.msra.mxu0 0.0
    %1028 = vmatprep.subr.mxu0 0.0
    %1029 = vmatpush2.msra.mxu0 0.0
    %1030 = vmatprep.subr.mxu0 0.0
    %1031 = vmatpush2.msra.mxu0 0.0
    %1032 = vmatprep.subr.mxu0 0.0
    %1033 = vmatpush2.msra.mxu0 0.0
    %1034 = vmatprep.subr.mxu0 0.0
    %1035 = vmatpush2.msra.mxu0 0.0
    %1036 = vmatprep.subr.mxu0 0.0
    %1037 = vmatpush2.msra.mxu0 0.0
    %1038 = vmatprep.subr.mxu0 0.0
    %1039 = vmatpush2.msra.mxu0 0.0
    %1040 = vmatprep.subr.mxu0 0.0
    %1041 = vmatpush2.msra.mxu0 0.0
    %1042 = vmatprep.subr.mxu0 0.0
    %1043 = vmatpush2.msra.mxu0 0.0
    %1044 = vmatprep.subr.mxu0 0.0
    %1045 = vmatpush2.msra.mxu0 0.0
    %1046 = vmatprep.subr.mxu0 0.0
    %1047 = vmatpush2.msra.mxu0 0.0
    %1048 = vmatprep.subr.mxu0 0.0
    %1049 = vmatpush2.msra.mxu0 0.0
    %1050 = vmatprep.subr.mxu0 0.0
    %1051 = vmatpush2.msra.mxu0 0.0
    %1052 = vmatprep.subr.mxu0 0.0
    %1053 = vmatpush2.msra.mxu0 0.0
    %1054 = vmatprep.subr.mxu0 0.0
    %1055 = vmatpush2.msra.mxu0 0.0
    %1056 = vmatprep.mubr.f32.mxu0 0.0
    %1057 = vmatmul.mubr.f32.gmra.mxu0 %v804
    %v1058 = vpop.f32.mrf.mxu0
    %v1059 = vadd.f32 %v988, %v1058
    %v1060 = vpop.f32.mrf.mxu0
    %v1061 = vadd.f32 %v989, %v1060
    %1062 = vdwg.mxu0
    %1063 = vmatprep.subr.mxu0 %v123
    %1064 = vmatpush1.msra.mxu0 %v122
    %1065 = vmatprep.subr.mxu0 %v119
    %1066 = vmatpush1.msra.mxu0 %v118
    %1067 = vmatprep.subr.mxu0 %v115
    %1068 = vmatpush1.msra.mxu0 %v114
    %1069 = vmatprep.subr.mxu0 %v111
    %1070 = vmatpush1.msra.mxu0 %v110
    %1071 = vmatprep.subr.mxu0 %v107
    %1072 = vmatpush1.msra.mxu0 %v106
    %1073 = vmatprep.subr.mxu0 %v103
    %1074 = vmatpush1.msra.mxu0 %v102
    %1075 = vmatprep.subr.mxu0 %v99
    %1076 = vmatpush1.msra.mxu0 %v98
    %1077 = vmatprep.subr.mxu0 %v95
    %1078 = vmatpush1.msra.mxu0 %v94
    %1079 = vmatprep.subr.mxu0 %v91
    %1080 = vmatpush1.msra.mxu0 %v90
    %1081 = vmatprep.subr.mxu0 %v87
    %1082 = vmatpush1.msra.mxu0 %v86
    %1083 = vmatprep.subr.mxu0 %v83
    %1084 = vmatpush1.msra.mxu0 %v82
    %1085 = vmatprep.subr.mxu0 %v79
    %1086 = vmatpush1.msra.mxu0 %v78
    %1087 = vmatprep.subr.mxu0 %v75
    %1088 = vmatpush1.msra.mxu0 %v74
    %1089 = vmatprep.subr.mxu0 %v71
    %1090 = vmatpush1.msra.mxu0 %v70
    %1091 = vmatprep.subr.mxu0 %v67
    %1092 = vmatpush1.msra.mxu0 %v66
    %1093 = vmatprep.subr.mxu0 %v63
    %1094 = vmatpush1.msra.mxu0 %v62
    %1095 = vmatprep.subr.mxu0 0.0
    %1096 = vmatpush2.msra.mxu0 0.0
    %1097 = vmatprep.subr.mxu0 0.0
    %1098 = vmatpush2.msra.mxu0 0.0
    %1099 = vmatprep.subr.mxu0 0.0
    %1100 = vmatpush2.msra.mxu0 0.0
    %1101 = vmatprep.subr.mxu0 0.0
    %1102 = vmatpush2.msra.mxu0 0.0
    %1103 = vmatprep.subr.mxu0 0.0
    %1104 = vmatpush2.msra.mxu0 0.0
    %1105 = vmatprep.subr.mxu0 0.0
    %1106 = vmatpush2.msra.mxu0 0.0
    %1107 = vmatprep.subr.mxu0 0.0
    %1108 = vmatpush2.msra.mxu0 0.0
    %1109 = vmatprep.subr.mxu0 0.0
    %1110 = vmatpush2.msra.mxu0 0.0
    %1111 = vmatprep.subr.mxu0 0.0
    %1112 = vmatpush2.msra.mxu0 0.0
    %1113 = vmatprep.subr.mxu0 0.0
    %1114 = vmatpush2.msra.mxu0 0.0
    %1115 = vmatprep.subr.mxu0 0.0
    %1116 = vmatpush2.msra.mxu0 0.0
    %1117 = vmatprep.subr.mxu0 0.0
    %1118 = vmatpush2.msra.mxu0 0.0
    %1119 = vmatprep.subr.mxu0 0.0
    %1120 = vmatpush2.msra.mxu0 0.0
    %1121 = vmatprep.subr.mxu0 0.0
    %1122 = vmatpush2.msra.mxu0 0.0
    %1123 = vmatprep.subr.mxu0 0.0
    %1124 = vmatpush2.msra.mxu0 0.0
    %1125 = vmatprep.subr.mxu0 0.0
    %1126 = vmatpush2.msra.mxu0 0.0
    %1127 = vmatprep.mubr.f32.mxu0 0.0
    %1128 = vmatmul.mubr.f32.gmra.mxu0 %v804
    %v1129 = vpop.f32.mrf.mxu0
    %v1130 = vadd.f32 %v990, %v1129
    %v1131 = vpop.f32.mrf.mxu0
    %v1132 = vadd.f32 %v991, %v1131
    %1133 = vdwg.mxu0
    %v1134 = vadd.f32 %v1059, %v369
    %v1135 = vadd.f32 %v1061, %v373
    %v1136 = vadd.f32 %v1130, %v377
    %v1137 = vadd.f32 %v1132, %v381
    %v1138 = vxor.u32 %v1134, 2147483648
    %v1139 = vxor.u32 %v1135, 2147483648
    %v1140 = vxor.u32 %v1136, 2147483648
    %v1141 = vmul.f32 %v1138, 1.442695
    %v1142 = vpow.pop %v1141
    %v1143 = vmul.f32 %v1139, 1.442695
    %v1144 = vpow.pop %v1143
    %v1145 = vmul.f32 %v1140, 1.442695
    %v1146 = vpow.pop %v1145
    %v1147 = vadd.f32 %v1142, 1.0
    %v1148 = vadd.f32 %v1144, 1.0
    %v1149 = vadd.f32 %v1146, 1.0
    %v1150 = vrcp.pop %v1147
    %v1151 = vmul.f32 1.0, %v1150
    %v1152 = vrcp.pop %v1148
    %v1153 = vmul.f32 1.0, %v1152
    %v1154 = vrcp.pop %v1149
    %v1155 = vmul.f32 1.0, %v1154
    %v1156 = vtanh.pop %v1137
    %v1157 = vmul.f32 %v1153, %v802
    %v1158 = vmul.f32 %v1151, %v1156
    %v1159 = vadd.f32 %v1157, %v1158
    %v1160 = vtanh.pop %v1159
    %v1161 = vmul.f32 %v1155, %v1160
    %1162 = vrot.lane.b32.xlu0 %v973, 64
    %v1163 = vpop.permute.xlu0 %1162
    %v1164 = vadd.f32 %v1161, %v1163
    %1165 = vmatprep.subr.mxu0 %v186
    %1166 = vmatpush1.msra.mxu0 %v185
    %1167 = vmatprep.subr.mxu0 %v182
    %1168 = vmatpush1.msra.mxu0 %v181
    %1169 = vmatprep.subr.mxu0 %v178
    %1170 = vmatpush1.msra.mxu0 %v177
    %1171 = vmatprep.subr.mxu0 %v174
    %1172 = vmatpush1.msra.mxu0 %v173
    %1173 = vmatprep.subr.mxu0 %v170
    %1174 = vmatpush1.msra.mxu0 %v169
    %1175 = vmatprep.subr.mxu0 %v166
    %1176 = vmatpush1.msra.mxu0 %v165
    %1177 = vmatprep.subr.mxu0 %v162
    %1178 = vmatpush1.msra.mxu0 %v161
    %1179 = vmatprep.subr.mxu0 %v158
    %1180 = vmatpush1.msra.mxu0 %v157
    %1181 = vmatprep.subr.mxu0 %v154
    %1182 = vmatpush1.msra.mxu0 %v153
    %1183 = vmatprep.subr.mxu0 %v150
    %1184 = vmatpush1.msra.mxu0 %v149
    %1185 = vmatprep.subr.mxu0 %v146
    %1186 = vmatpush1.msra.mxu0 %v145
    %1187 = vmatprep.subr.mxu0 %v142
    %1188 = vmatpush1.msra.mxu0 %v141
    %1189 = vmatprep.subr.mxu0 %v138
    %1190 = vmatpush1.msra.mxu0 %v137
    %1191 = vmatprep.subr.mxu0 %v134
    %1192 = vmatpush1.msra.mxu0 %v133
    %1193 = vmatprep.subr.mxu0 %v130
    %1194 = vmatpush1.msra.mxu0 %v129
    %1195 = vmatprep.subr.mxu0 %v126
    %1196 = vmatpush1.msra.mxu0 %v125
    %1197 = vmatprep.subr.mxu0 0.0
    %1198 = vmatpush2.msra.mxu0 0.0
    %1199 = vmatprep.subr.mxu0 0.0
    %1200 = vmatpush2.msra.mxu0 0.0
    %1201 = vmatprep.subr.mxu0 0.0
    %1202 = vmatpush2.msra.mxu0 0.0
    %1203 = vmatprep.subr.mxu0 0.0
    %1204 = vmatpush2.msra.mxu0 0.0
    %1205 = vmatprep.subr.mxu0 0.0
    %1206 = vmatpush2.msra.mxu0 0.0
    %1207 = vmatprep.subr.mxu0 0.0
    %1208 = vmatpush2.msra.mxu0 0.0
    %1209 = vmatprep.subr.mxu0 0.0
    %1210 = vmatpush2.msra.mxu0 0.0
    %1211 = vmatprep.subr.mxu0 0.0
    %1212 = vmatpush2.msra.mxu0 0.0
    %1213 = vmatprep.subr.mxu0 0.0
    %1214 = vmatpush2.msra.mxu0 0.0
    %1215 = vmatprep.subr.mxu0 0.0
    %1216 = vmatpush2.msra.mxu0 0.0
    %1217 = vmatprep.subr.mxu0 0.0
    %1218 = vmatpush2.msra.mxu0 0.0
    %1219 = vmatprep.subr.mxu0 0.0
    %1220 = vmatpush2.msra.mxu0 0.0
    %1221 = vmatprep.subr.mxu0 0.0
    %1222 = vmatpush2.msra.mxu0 0.0
    %1223 = vmatprep.subr.mxu0 0.0
    %1224 = vmatpush2.msra.mxu0 0.0
    %1225 = vmatprep.subr.mxu0 0.0
    %1226 = vmatpush2.msra.mxu0 0.0
    %1227 = vmatprep.subr.mxu0 0.0
    %1228 = vmatpush2.msra.mxu0 0.0
    %1229 = vmatprep.mubr.f32.mxu0 0.0
    %1230 = vmatmul.mubr.f32.gmra.mxu0 %v1164
    %v1231 = vpop.f32.mrf.mxu0
    %v1232 = vadd.f32 %v421, %v1231
    %v1233 = vpop.f32.mrf.mxu0
    %v1234 = vadd.f32 %v425, %v1233
    %1235 = vdwg.mxu0
    %1236 = vmatprep.subr.mxu0 %v188
    %1237 = vmatpush1.msra.mxu0 %v187
    %1238 = vmatprep.subr.mxu0 %v184
    %1239 = vmatpush1.msra.mxu0 %v183
    %1240 = vmatprep.subr.mxu0 %v180
    %1241 = vmatpush1.msra.mxu0 %v179
    %1242 = vmatprep.subr.mxu0 %v176
    %1243 = vmatpush1.msra.mxu0 %v175
    %1244 = vmatprep.subr.mxu0 %v172
    %1245 = vmatpush1.msra.mxu0 %v171
    %1246 = vmatprep.subr.mxu0 %v168
    %1247 = vmatpush1.msra.mxu0 %v167
    %1248 = vmatprep.subr.mxu0 %v164
    %1249 = vmatpush1.msra.mxu0 %v163
    %1250 = vmatprep.subr.mxu0 %v160
    %1251 = vmatpush1.msra.mxu0 %v159
    %1252 = vmatprep.subr.mxu0 %v156
    %1253 = vmatpush1.msra.mxu0 %v155
    %1254 = vmatprep.subr.mxu0 %v152
    %1255 = vmatpush1.msra.mxu0 %v151
    %1256 = vmatprep.subr.mxu0 %v148
    %1257 = vmatpush1.msra.mxu0 %v147
    %1258 = vmatprep.subr.mxu0 %v144
    %1259 = vmatpush1.msra.mxu0 %v143
    %1260 = vmatprep.subr.mxu0 %v140
    %1261 = vmatpush1.msra.mxu0 %v139
    %1262 = vmatprep.subr.mxu0 %v136
    %1263 = vmatpush1.msra.mxu0 %v135
    %1264 = vmatprep.subr.mxu0 %v132
    %1265 = vmatpush1.msra.mxu0 %v131
    %1266 = vmatprep.subr.mxu0 %v128
    %1267 = vmatpush1.msra.mxu0 %v127
    %1268 = vmatprep.subr.mxu0 0.0
    %1269 = vmatpush2.msra.mxu0 0.0
    %1270 = vmatprep.subr.mxu0 0.0
    %1271 = vmatpush2.msra.mxu0 0.0
    %1272 = vmatprep.subr.mxu0 0.0
    %1273 = vmatpush2.msra.mxu0 0.0
    %1274 = vmatprep.subr.mxu0 0.0
    %1275 = vmatpush2.msra.mxu0 0.0
    %1276 = vmatprep.subr.mxu0 0.0
    %1277 = vmatpush2.msra.mxu0 0.0
    %1278 = vmatprep.subr.mxu0 0.0
    %1279 = vmatpush2.msra.mxu0 0.0
    %1280 = vmatprep.subr.mxu0 0.0
    %1281 = vmatpush2.msra.mxu0 0.0
    %1282 = vmatprep.subr.mxu0 0.0
    %1283 = vmatpush2.msra.mxu0 0.0
    %1284 = vmatprep.subr.mxu0 0.0
    %1285 = vmatpush2.msra.mxu0 0.0
    %1286 = vmatprep.subr.mxu0 0.0
    %1287 = vmatpush2.msra.mxu0 0.0
    %1288 = vmatprep.subr.mxu0 0.0
    %1289 = vmatpush2.msra.mxu0 0.0
    %1290 = vmatprep.subr.mxu0 0.0
    %1291 = vmatpush2.msra.mxu0 0.0
    %1292 = vmatprep.subr.mxu0 0.0
    %1293 = vmatpush2.msra.mxu0 0.0
    %1294 = vmatprep.subr.mxu0 0.0
    %1295 = vmatpush2.msra.mxu0 0.0
    %1296 = vmatprep.subr.mxu0 0.0
    %1297 = vmatpush2.msra.mxu0 0.0
    %1298 = vmatprep.subr.mxu0 0.0
    %1299 = vmatpush2.msra.mxu0 0.0
    %1300 = vmatprep.mubr.f32.mxu0 0.0
    %1301 = vmatmul.mubr.f32.gmra.mxu0 %v1164
    %v1302 = vpop.f32.mrf.mxu0
    %v1303 = vadd.f32 %v429, %v1302
    %v1304 = vpop.f32.mrf.mxu0
    %v1305 = vadd.f32 %v433, %v1304
    %1306 = vdwg.mxu0
    %v1307 = vxor.u32 %v1232, 2147483648
    %v1308 = vxor.u32 %v1234, 2147483648
    %v1309 = vxor.u32 %v1303, 2147483648
    %v1310 = vmul.f32 %v1307, 1.442695
    %v1311 = vpow.pop %v1310
    %v1312 = vmul.f32 %v1308, 1.442695
    %v1313 = vpow.pop %v1312
    %v1314 = vmul.f32 %v1309, 1.442695
    %v1315 = vpow.pop %v1314
    %v1316 = vadd.f32 %v1311, 1.0
    %v1317 = vadd.f32 %v1313, 1.0
    %v1318 = vadd.f32 %v1315, 1.0
    %v1319 = vrcp.pop %v1316
    %v1320 = vmul.f32 1.0, %v1319
    %v1321 = vrcp.pop %v1317
    %v1322 = vmul.f32 1.0, %v1321
    %v1323 = vrcp.pop %v1318
    %v1324 = vmul.f32 1.0, %v1323
    %v1325 = vtanh.pop %v1305
    %v1326 = vmul.f32 %v1322, %v971
    %v1327 = vmul.f32 %v1320, %v1325
    %v1328 = vadd.f32 %v1326, %v1327
    %v1329 = vtanh.pop %v1328
    %v1330 = vmul.f32 %v1324, %v1329
    %v1331 = vmul.f32 %v1330, %v608
    %v1332 = vsel %vm611, %v1331, 0.0
    %1333 = vadd.xlane.f32.xlu0 %v1332
    %v1334 = vpop.xlane.xlu0 %1333
    %v1335 = vadd.f32 %v1334, %v619
    %s1336 = scalar_lea.vmem %s8, 8
    %1337 = vst.msk [vmem:[%s1336] sm:$0xf] %vm622, %v1335
    %s1338 = scalar_lea.vmem %s0, 12
    %v1339 = vld [vmem:[%s1338] sm:$0xf]
    %1341 = vset.pattern.permute.xlu0 0
    %1342 = vperm.xlu0 %1341, %v1339
    %v1343 = vpop.permute.xlu0 %1342
    %v1345 = vmul.f32 %v1343, %v202
    %v1346 = vmul.f32 %v1343, %v206
    %v1347 = vmul.f32 %v1343, %v210
    %v1348 = vmul.f32 %v1343, %v214
    %1349 = vmatprep.subr.mxu0 %v121
    %1350 = vmatpush1.msra.mxu0 %v120
    %1351 = vmatprep.subr.mxu0 %v117
    %1352 = vmatpush1.msra.mxu0 %v116
    %1353 = vmatprep.subr.mxu0 %v113
    %1354 = vmatpush1.msra.mxu0 %v112
    %1355 = vmatprep.subr.mxu0 %v109
    %1356 = vmatpush1.msra.mxu0 %v108
    %1357 = vmatprep.subr.mxu0 %v105
    %1358 = vmatpush1.msra.mxu0 %v104
    %1359 = vmatprep.subr.mxu0 %v101
    %1360 = vmatpush1.msra.mxu0 %v100
    %1361 = vmatprep.subr.mxu0 %v97
    %1362 = vmatpush1.msra.mxu0 %v96
    %1363 = vmatprep.subr.mxu0 %v93
    %1364 = vmatpush1.msra.mxu0 %v92
    %1365 = vmatprep.subr.mxu0 %v89
    %1366 = vmatpush1.msra.mxu0 %v88
    %1367 = vmatprep.subr.mxu0 %v85
    %1368 = vmatpush1.msra.mxu0 %v84
    %1369 = vmatprep.subr.mxu0 %v81
    %1370 = vmatpush1.msra.mxu0 %v80
    %1371 = vmatprep.subr.mxu0 %v77
    %1372 = vmatpush1.msra.mxu0 %v76
    %1373 = vmatprep.subr.mxu0 %v73
    %1374 = vmatpush1.msra.mxu0 %v72
    %1375 = vmatprep.subr.mxu0 %v69
    %1376 = vmatpush1.msra.mxu0 %v68
    %1377 = vmatprep.subr.mxu0 %v65
    %1378 = vmatpush1.msra.mxu0 %v64
    %1379 = vmatprep.subr.mxu0 %v61
    %1380 = vmatpush1.msra.mxu0 %v60
    %1381 = vmatprep.subr.mxu0 0.0
    %1382 = vmatpush2.msra.mxu0 0.0
    %1383 = vmatprep.subr.mxu0 0.0
    %1384 = vmatpush2.msra.mxu0 0.0
    %1385 = vmatprep.subr.mxu0 0.0
    %1386 = vmatpush2.msra.mxu0 0.0
    %1387 = vmatprep.subr.mxu0 0.0
    %1388 = vmatpush2.msra.mxu0 0.0
    %1389 = vmatprep.subr.mxu0 0.0
    %1390 = vmatpush2.msra.mxu0 0.0
    %1391 = vmatprep.subr.mxu0 0.0
    %1392 = vmatpush2.msra.mxu0 0.0
    %1393 = vmatprep.subr.mxu0 0.0
    %1394 = vmatpush2.msra.mxu0 0.0
    %1395 = vmatprep.subr.mxu0 0.0
    %1396 = vmatpush2.msra.mxu0 0.0
    %1397 = vmatprep.subr.mxu0 0.0
    %1398 = vmatpush2.msra.mxu0 0.0
    %1399 = vmatprep.subr.mxu0 0.0
    %1400 = vmatpush2.msra.mxu0 0.0
    %1401 = vmatprep.subr.mxu0 0.0
    %1402 = vmatpush2.msra.mxu0 0.0
    %1403 = vmatprep.subr.mxu0 0.0
    %1404 = vmatpush2.msra.mxu0 0.0
    %1405 = vmatprep.subr.mxu0 0.0
    %1406 = vmatpush2.msra.mxu0 0.0
    %1407 = vmatprep.subr.mxu0 0.0
    %1408 = vmatpush2.msra.mxu0 0.0
    %1409 = vmatprep.subr.mxu0 0.0
    %1410 = vmatpush2.msra.mxu0 0.0
    %1411 = vmatprep.subr.mxu0 0.0
    %1412 = vmatpush2.msra.mxu0 0.0
    %1413 = vmatprep.mubr.f32.mxu0 0.0
    %1414 = vmatmul.mubr.f32.gmra.mxu0 %v1161
    %v1415 = vpop.f32.mrf.mxu0
    %v1416 = vadd.f32 %v1345, %v1415
    %v1417 = vpop.f32.mrf.mxu0
    %v1418 = vadd.f32 %v1346, %v1417
    %1419 = vdwg.mxu0
    %1420 = vmatprep.subr.mxu0 %v123
    %1421 = vmatpush1.msra.mxu0 %v122
    %1422 = vmatprep.subr.mxu0 %v119
    %1423 = vmatpush1.msra.mxu0 %v118
    %1424 = vmatprep.subr.mxu0 %v115
    %1425 = vmatpush1.msra.mxu0 %v114
    %1426 = vmatprep.subr.mxu0 %v111
    %1427 = vmatpush1.msra.mxu0 %v110
    %1428 = vmatprep.subr.mxu0 %v107
    %1429 = vmatpush1.msra.mxu0 %v106
    %1430 = vmatprep.subr.mxu0 %v103
    %1431 = vmatpush1.msra.mxu0 %v102
    %1432 = vmatprep.subr.mxu0 %v99
    %1433 = vmatpush1.msra.mxu0 %v98
    %1434 = vmatprep.subr.mxu0 %v95
    %1435 = vmatpush1.msra.mxu0 %v94
    %1436 = vmatprep.subr.mxu0 %v91
    %1437 = vmatpush1.msra.mxu0 %v90
    %1438 = vmatprep.subr.mxu0 %v87
    %1439 = vmatpush1.msra.mxu0 %v86
    %1440 = vmatprep.subr.mxu0 %v83
    %1441 = vmatpush1.msra.mxu0 %v82
    %1442 = vmatprep.subr.mxu0 %v79
    %1443 = vmatpush1.msra.mxu0 %v78
    %1444 = vmatprep.subr.mxu0 %v75
    %1445 = vmatpush1.msra.mxu0 %v74
    %1446 = vmatprep.subr.mxu0 %v71
    %1447 = vmatpush1.msra.mxu0 %v70
    %1448 = vmatprep.subr.mxu0 %v67
    %1449 = vmatpush1.msra.mxu0 %v66
    %1450 = vmatprep.subr.mxu0 %v63
    %1451 = vmatpush1.msra.mxu0 %v62
    %1452 = vmatprep.subr.mxu0 0.0
    %1453 = vmatpush2.msra.mxu0 0.0
    %1454 = vmatprep.subr.mxu0 0.0
    %1455 = vmatpush2.msra.mxu0 0.0
    %1456 = vmatprep.subr.mxu0 0.0
    %1457 = vmatpush2.msra.mxu0 0.0
    %1458 = vmatprep.subr.mxu0 0.0
    %1459 = vmatpush2.msra.mxu0 0.0
    %1460 = vmatprep.subr.mxu0 0.0
    %1461 = vmatpush2.msra.mxu0 0.0
    %1462 = vmatprep.subr.mxu0 0.0
    %1463 = vmatpush2.msra.mxu0 0.0
    %1464 = vmatprep.subr.mxu0 0.0
    %1465 = vmatpush2.msra.mxu0 0.0
    %1466 = vmatprep.subr.mxu0 0.0
    %1467 = vmatpush2.msra.mxu0 0.0
    %1468 = vmatprep.subr.mxu0 0.0
    %1469 = vmatpush2.msra.mxu0 0.0
    %1470 = vmatprep.subr.mxu0 0.0
    %1471 = vmatpush2.msra.mxu0 0.0
    %1472 = vmatprep.subr.mxu0 0.0
    %1473 = vmatpush2.msra.mxu0 0.0
    %1474 = vmatprep.subr.mxu0 0.0
    %1475 = vmatpush2.msra.mxu0 0.0
    %1476 = vmatprep.subr.mxu0 0.0
    %1477 = vmatpush2.msra.mxu0 0.0
    %1478 = vmatprep.subr.mxu0 0.0
    %1479 = vmatpush2.msra.mxu0 0.0
    %1480 = vmatprep.subr.mxu0 0.0
    %1481 = vmatpush2.msra.mxu0 0.0
    %1482 = vmatprep.subr.mxu0 0.0
    %1483 = vmatpush2.msra.mxu0 0.0
    %1484 = vmatprep.mubr.f32.mxu0 0.0
    %1485 = vmatmul.mubr.f32.gmra.mxu0 %v1161
    %v1486 = vpop.f32.mrf.mxu0
    %v1487 = vadd.f32 %v1347, %v1486
    %v1488 = vpop.f32.mrf.mxu0
    %v1489 = vadd.f32 %v1348, %v1488
    %1490 = vdwg.mxu0
    %v1491 = vadd.f32 %v1416, %v369
    %v1492 = vadd.f32 %v1418, %v373
    %v1493 = vadd.f32 %v1487, %v377
    %v1494 = vadd.f32 %v1489, %v381
    %v1495 = vxor.u32 %v1491, 2147483648
    %v1496 = vxor.u32 %v1492, 2147483648
    %v1497 = vxor.u32 %v1493, 2147483648
    %v1498 = vmul.f32 %v1495, 1.442695
    %v1499 = vpow.pop %v1498
    %v1500 = vmul.f32 %v1496, 1.442695
    %v1501 = vpow.pop %v1500
    %v1502 = vmul.f32 %v1497, 1.442695
    %v1503 = vpow.pop %v1502
    %v1504 = vadd.f32 %v1499, 1.0
    %v1505 = vadd.f32 %v1501, 1.0
    %v1506 = vadd.f32 %v1503, 1.0
    %v1507 = vrcp.pop %v1504
    %v1508 = vmul.f32 1.0, %v1507
    %v1509 = vrcp.pop %v1505
    %v1510 = vmul.f32 1.0, %v1509
    %v1511 = vrcp.pop %v1506
    %v1512 = vmul.f32 1.0, %v1511
    %v1513 = vtanh.pop %v1494
    %v1514 = vmul.f32 %v1510, %v1159
    %v1515 = vmul.f32 %v1508, %v1513
    %v1516 = vadd.f32 %v1514, %v1515
    %v1517 = vtanh.pop %v1516
    %v1518 = vmul.f32 %v1512, %v1517
    %1519 = vrot.lane.b32.xlu0 %v1330, 64
    %v1520 = vpop.permute.xlu0 %1519
    %v1521 = vadd.f32 %v1518, %v1520
    %1522 = vmatprep.subr.mxu0 %v186
    %1523 = vmatpush1.msra.mxu0 %v185
    %1524 = vmatprep.subr.mxu0 %v182
    %1525 = vmatpush1.msra.mxu0 %v181
    %1526 = vmatprep.subr.mxu0 %v178
    %1527 = vmatpush1.msra.mxu0 %v177
    %1528 = vmatprep.subr.mxu0 %v174
    %1529 = vmatpush1.msra.mxu0 %v173
    %1530 = vmatprep.subr.mxu0 %v170
    %1531 = vmatpush1.msra.mxu0 %v169
    %1532 = vmatprep.subr.mxu0 %v166
    %1533 = vmatpush1.msra.mxu0 %v165
    %1534 = vmatprep.subr.mxu0 %v162
    %1535 = vmatpush1.msra.mxu0 %v161
    %1536 = vmatprep.subr.mxu0 %v158
    %1537 = vmatpush1.msra.mxu0 %v157
    %1538 = vmatprep.subr.mxu0 %v154
    %1539 = vmatpush1.msra.mxu0 %v153
    %1540 = vmatprep.subr.mxu0 %v150
    %1541 = vmatpush1.msra.mxu0 %v149
    %1542 = vmatprep.subr.mxu0 %v146
    %1543 = vmatpush1.msra.mxu0 %v145
    %1544 = vmatprep.subr.mxu0 %v142
    %1545 = vmatpush1.msra.mxu0 %v141
    %1546 = vmatprep.subr.mxu0 %v138
    %1547 = vmatpush1.msra.mxu0 %v137
    %1548 = vmatprep.subr.mxu0 %v134
    %1549 = vmatpush1.msra.mxu0 %v133
    %1550 = vmatprep.subr.mxu0 %v130
    %1551 = vmatpush1.msra.mxu0 %v129
    %1552 = vmatprep.subr.mxu0 %v126
    %1553 = vmatpush1.msra.mxu0 %v125
    %1554 = vmatprep.subr.mxu0 0.0
    %1555 = vmatpush2.msra.mxu0 0.0
    %1556 = vmatprep.subr.mxu0 0.0
    %1557 = vmatpush2.msra.mxu0 0.0
    %1558 = vmatprep.subr.mxu0 0.0
    %1559 = vmatpush2.msra.mxu0 0.0
    %1560 = vmatprep.subr.mxu0 0.0
    %1561 = vmatpush2.msra.mxu0 0.0
    %1562 = vmatprep.subr.mxu0 0.0
    %1563 = vmatpush2.msra.mxu0 0.0
    %1564 = vmatprep.subr.mxu0 0.0
    %1565 = vmatpush2.msra.mxu0 0.0
    %1566 = vmatprep.subr.mxu0 0.0
    %1567 = vmatpush2.msra.mxu0 0.0
    %1568 = vmatprep.subr.mxu0 0.0
    %1569 = vmatpush2.msra.mxu0 0.0
    %1570 = vmatprep.subr.mxu0 0.0
    %1571 = vmatpush2.msra.mxu0 0.0
    %1572 = vmatprep.subr.mxu0 0.0
    %1573 = vmatpush2.msra.mxu0 0.0
    %1574 = vmatprep.subr.mxu0 0.0
    %1575 = vmatpush2.msra.mxu0 0.0
    %1576 = vmatprep.subr.mxu0 0.0
    %1577 = vmatpush2.msra.mxu0 0.0
    %1578 = vmatprep.subr.mxu0 0.0
    %1579 = vmatpush2.msra.mxu0 0.0
    %1580 = vmatprep.subr.mxu0 0.0
    %1581 = vmatpush2.msra.mxu0 0.0
    %1582 = vmatprep.subr.mxu0 0.0
    %1583 = vmatpush2.msra.mxu0 0.0
    %1584 = vmatprep.subr.mxu0 0.0
    %1585 = vmatpush2.msra.mxu0 0.0
    %1586 = vmatprep.mubr.f32.mxu0 0.0
    %1587 = vmatmul.mubr.f32.gmra.mxu0 %v1521
    %v1588 = vpop.f32.mrf.mxu0
    %v1589 = vadd.f32 %v421, %v1588
    %v1590 = vpop.f32.mrf.mxu0
    %v1591 = vadd.f32 %v425, %v1590
    %1592 = vdwg.mxu0
    %1593 = vmatprep.subr.mxu0 %v188
    %1594 = vmatpush1.msra.mxu0 %v187
    %1595 = vmatprep.subr.mxu0 %v184
    %1596 = vmatpush1.msra.mxu0 %v183
    %1597 = vmatprep.subr.mxu0 %v180
    %1598 = vmatpush1.msra.mxu0 %v179
    %1599 = vmatprep.subr.mxu0 %v176
    %1600 = vmatpush1.msra.mxu0 %v175
    %1601 = vmatprep.subr.mxu0 %v172
    %1602 = vmatpush1.msra.mxu0 %v171
    %1603 = vmatprep.subr.mxu0 %v168
    %1604 = vmatpush1.msra.mxu0 %v167
    %1605 = vmatprep.subr.mxu0 %v164
    %1606 = vmatpush1.msra.mxu0 %v163
    %1607 = vmatprep.subr.mxu0 %v160
    %1608 = vmatpush1.msra.mxu0 %v159
    %1609 = vmatprep.subr.mxu0 %v156
    %1610 = vmatpush1.msra.mxu0 %v155
    %1611 = vmatprep.subr.mxu0 %v152
    %1612 = vmatpush1.msra.mxu0 %v151
    %1613 = vmatprep.subr.mxu0 %v148
    %1614 = vmatpush1.msra.mxu0 %v147
    %1615 = vmatprep.subr.mxu0 %v144
    %1616 = vmatpush1.msra.mxu0 %v143
    %1617 = vmatprep.subr.mxu0 %v140
    %1618 = vmatpush1.msra.mxu0 %v139
    %1619 = vmatprep.subr.mxu0 %v136
    %1620 = vmatpush1.msra.mxu0 %v135
    %1621 = vmatprep.subr.mxu0 %v132
    %1622 = vmatpush1.msra.mxu0 %v131
    %1623 = vmatprep.subr.mxu0 %v128
    %1624 = vmatpush1.msra.mxu0 %v127
    %1625 = vmatprep.subr.mxu0 0.0
    %1626 = vmatpush2.msra.mxu0 0.0
    %1627 = vmatprep.subr.mxu0 0.0
    %1628 = vmatpush2.msra.mxu0 0.0
    %1629 = vmatprep.subr.mxu0 0.0
    %1630 = vmatpush2.msra.mxu0 0.0
    %1631 = vmatprep.subr.mxu0 0.0
    %1632 = vmatpush2.msra.mxu0 0.0
    %1633 = vmatprep.subr.mxu0 0.0
    %1634 = vmatpush2.msra.mxu0 0.0
    %1635 = vmatprep.subr.mxu0 0.0
    %1636 = vmatpush2.msra.mxu0 0.0
    %1637 = vmatprep.subr.mxu0 0.0
    %1638 = vmatpush2.msra.mxu0 0.0
    %1639 = vmatprep.subr.mxu0 0.0
    %1640 = vmatpush2.msra.mxu0 0.0
    %1641 = vmatprep.subr.mxu0 0.0
    %1642 = vmatpush2.msra.mxu0 0.0
    %1643 = vmatprep.subr.mxu0 0.0
    %1644 = vmatpush2.msra.mxu0 0.0
    %1645 = vmatprep.subr.mxu0 0.0
    %1646 = vmatpush2.msra.mxu0 0.0
    %1647 = vmatprep.subr.mxu0 0.0
    %1648 = vmatpush2.msra.mxu0 0.0
    %1649 = vmatprep.subr.mxu0 0.0
    %1650 = vmatpush2.msra.mxu0 0.0
    %1651 = vmatprep.subr.mxu0 0.0
    %1652 = vmatpush2.msra.mxu0 0.0
    %1653 = vmatprep.subr.mxu0 0.0
    %1654 = vmatpush2.msra.mxu0 0.0
    %1655 = vmatprep.subr.mxu0 0.0
    %1656 = vmatpush2.msra.mxu0 0.0
    %1657 = vmatprep.mubr.f32.mxu0 0.0
    %1658 = vmatmul.mubr.f32.gmra.mxu0 %v1521
    %v1659 = vpop.f32.mrf.mxu0
    %v1660 = vadd.f32 %v429, %v1659
    %v1661 = vpop.f32.mrf.mxu0
    %v1662 = vadd.f32 %v433, %v1661
    %1663 = vdwg.mxu0
    %v1664 = vxor.u32 %v1589, 2147483648
    %v1665 = vxor.u32 %v1591, 2147483648
    %v1666 = vxor.u32 %v1660, 2147483648
    %v1667 = vmul.f32 %v1664, 1.442695
    %v1668 = vpow.pop %v1667
    %v1669 = vmul.f32 %v1665, 1.442695
    %v1670 = vpow.pop %v1669
    %v1671 = vmul.f32 %v1666, 1.442695
    %v1672 = vpow.pop %v1671
    %v1673 = vadd.f32 %v1668, 1.0
    %v1674 = vadd.f32 %v1670, 1.0
    %v1675 = vadd.f32 %v1672, 1.0
    %v1676 = vrcp.pop %v1673
    %v1677 = vmul.f32 1.0, %v1676
    %v1678 = vrcp.pop %v1674
    %v1679 = vmul.f32 1.0, %v1678
    %v1680 = vrcp.pop %v1675
    %v1681 = vmul.f32 1.0, %v1680
    %v1682 = vtanh.pop %v1662
    %v1683 = vmul.f32 %v1679, %v1328
    %v1684 = vmul.f32 %v1677, %v1682
    %v1685 = vadd.f32 %v1683, %v1684
    %v1686 = vtanh.pop %v1685
    %v1687 = vmul.f32 %v1681, %v1686
    %v1688 = vmul.f32 %v1687, %v608
    %v1689 = vsel %vm611, %v1688, 0.0
    %1690 = vadd.xlane.f32.xlu0 %v1689
    %v1691 = vpop.xlane.xlu0 %1690
    %v1692 = vadd.f32 %v1691, %v619
    %s1693 = scalar_lea.vmem %s8, 12
    %1694 = vst.msk [vmem:[%s1693] sm:$0xf] %vm622, %v1692
    %s1695 = scalar_lea.vmem %s0, 16
    %v1696 = vld [vmem:[%s1695] sm:$0xf]
    %1698 = vset.pattern.permute.xlu0 0
    %1699 = vperm.xlu0 %1698, %v1696
    %v1700 = vpop.permute.xlu0 %1699
    %v1702 = vmul.f32 %v1700, %v202
    %v1703 = vmul.f32 %v1700, %v206
    %v1704 = vmul.f32 %v1700, %v210
    %v1705 = vmul.f32 %v1700, %v214
    %1706 = vmatprep.subr.mxu0 %v121
    %1707 = vmatpush1.msra.mxu0 %v120
    %1708 = vmatprep.subr.mxu0 %v117
    %1709 = vmatpush1.msra.mxu0 %v116
    %1710 = vmatprep.subr.mxu0 %v113
    %1711 = vmatpush1.msra.mxu0 %v112
    %1712 = vmatprep.subr.mxu0 %v109
    %1713 = vmatpush1.msra.mxu0 %v108
    %1714 = vmatprep.subr.mxu0 %v105
    %1715 = vmatpush1.msra.mxu0 %v104
    %1716 = vmatprep.subr.mxu0 %v101
    %1717 = vmatpush1.msra.mxu0 %v100
    %1718 = vmatprep.subr.mxu0 %v97
    %1719 = vmatpush1.msra.mxu0 %v96
    %1720 = vmatprep.subr.mxu0 %v93
    %1721 = vmatpush1.msra.mxu0 %v92
    %1722 = vmatprep.subr.mxu0 %v89
    %1723 = vmatpush1.msra.mxu0 %v88
    %1724 = vmatprep.subr.mxu0 %v85
    %1725 = vmatpush1.msra.mxu0 %v84
    %1726 = vmatprep.subr.mxu0 %v81
    %1727 = vmatpush1.msra.mxu0 %v80
    %1728 = vmatprep.subr.mxu0 %v77
    %1729 = vmatpush1.msra.mxu0 %v76
    %1730 = vmatprep.subr.mxu0 %v73
    %1731 = vmatpush1.msra.mxu0 %v72
    %1732 = vmatprep.subr.mxu0 %v69
    %1733 = vmatpush1.msra.mxu0 %v68
    %1734 = vmatprep.subr.mxu0 %v65
    %1735 = vmatpush1.msra.mxu0 %v64
    %1736 = vmatprep.subr.mxu0 %v61
    %1737 = vmatpush1.msra.mxu0 %v60
    %1738 = vmatprep.subr.mxu0 0.0
    %1739 = vmatpush2.msra.mxu0 0.0
    %1740 = vmatprep.subr.mxu0 0.0
    %1741 = vmatpush2.msra.mxu0 0.0
    %1742 = vmatprep.subr.mxu0 0.0
    %1743 = vmatpush2.msra.mxu0 0.0
    %1744 = vmatprep.subr.mxu0 0.0
    %1745 = vmatpush2.msra.mxu0 0.0
    %1746 = vmatprep.subr.mxu0 0.0
    %1747 = vmatpush2.msra.mxu0 0.0
    %1748 = vmatprep.subr.mxu0 0.0
    %1749 = vmatpush2.msra.mxu0 0.0
    %1750 = vmatprep.subr.mxu0 0.0
    %1751 = vmatpush2.msra.mxu0 0.0
    %1752 = vmatprep.subr.mxu0 0.0
    %1753 = vmatpush2.msra.mxu0 0.0
    %1754 = vmatprep.subr.mxu0 0.0
    %1755 = vmatpush2.msra.mxu0 0.0
    %1756 = vmatprep.subr.mxu0 0.0
    %1757 = vmatpush2.msra.mxu0 0.0
    %1758 = vmatprep.subr.mxu0 0.0
    %1759 = vmatpush2.msra.mxu0 0.0
    %1760 = vmatprep.subr.mxu0 0.0
    %1761 = vmatpush2.msra.mxu0 0.0
    %1762 = vmatprep.subr.mxu0 0.0
    %1763 = vmatpush2.msra.mxu0 0.0
    %1764 = vmatprep.subr.mxu0 0.0
    %1765 = vmatpush2.msra.mxu0 0.0
    %1766 = vmatprep.subr.mxu0 0.0
    %1767 = vmatpush2.msra.mxu0 0.0
    %1768 = vmatprep.subr.mxu0 0.0
    %1769 = vmatpush2.msra.mxu0 0.0
    %1770 = vmatprep.mubr.f32.mxu0 0.0
    %1771 = vmatmul.mubr.f32.gmra.mxu0 %v1518
    %v1772 = vpop.f32.mrf.mxu0
    %v1773 = vadd.f32 %v1702, %v1772
    %v1774 = vpop.f32.mrf.mxu0
    %v1775 = vadd.f32 %v1703, %v1774
    %1776 = vdwg.mxu0
    %1777 = vmatprep.subr.mxu0 %v123
    %1778 = vmatpush1.msra.mxu0 %v122
    %1779 = vmatprep.subr.mxu0 %v119
    %1780 = vmatpush1.msra.mxu0 %v118
    %1781 = vmatprep.subr.mxu0 %v115
    %1782 = vmatpush1.msra.mxu0 %v114
    %1783 = vmatprep.subr.mxu0 %v111
    %1784 = vmatpush1.msra.mxu0 %v110
    %1785 = vmatprep.subr.mxu0 %v107
    %1786 = vmatpush1.msra.mxu0 %v106
    %1787 = vmatprep.subr.mxu0 %v103
    %1788 = vmatpush1.msra.mxu0 %v102
    %1789 = vmatprep.subr.mxu0 %v99
    %1790 = vmatpush1.msra.mxu0 %v98
    %1791 = vmatprep.subr.mxu0 %v95
    %1792 = vmatpush1.msra.mxu0 %v94
    %1793 = vmatprep.subr.mxu0 %v91
    %1794 = vmatpush1.msra.mxu0 %v90
    %1795 = vmatprep.subr.mxu0 %v87
    %1796 = vmatpush1.msra.mxu0 %v86
    %1797 = vmatprep.subr.mxu0 %v83
    %1798 = vmatpush1.msra.mxu0 %v82
    %1799 = vmatprep.subr.mxu0 %v79
    %1800 = vmatpush1.msra.mxu0 %v78
    %1801 = vmatprep.subr.mxu0 %v75
    %1802 = vmatpush1.msra.mxu0 %v74
    %1803 = vmatprep.subr.mxu0 %v71
    %1804 = vmatpush1.msra.mxu0 %v70
    %1805 = vmatprep.subr.mxu0 %v67
    %1806 = vmatpush1.msra.mxu0 %v66
    %1807 = vmatprep.subr.mxu0 %v63
    %1808 = vmatpush1.msra.mxu0 %v62
    %1809 = vmatprep.subr.mxu0 0.0
    %1810 = vmatpush2.msra.mxu0 0.0
    %1811 = vmatprep.subr.mxu0 0.0
    %1812 = vmatpush2.msra.mxu0 0.0
    %1813 = vmatprep.subr.mxu0 0.0
    %1814 = vmatpush2.msra.mxu0 0.0
    %1815 = vmatprep.subr.mxu0 0.0
    %1816 = vmatpush2.msra.mxu0 0.0
    %1817 = vmatprep.subr.mxu0 0.0
    %1818 = vmatpush2.msra.mxu0 0.0
    %1819 = vmatprep.subr.mxu0 0.0
    %1820 = vmatpush2.msra.mxu0 0.0
    %1821 = vmatprep.subr.mxu0 0.0
    %1822 = vmatpush2.msra.mxu0 0.0
    %1823 = vmatprep.subr.mxu0 0.0
    %1824 = vmatpush2.msra.mxu0 0.0
    %1825 = vmatprep.subr.mxu0 0.0
    %1826 = vmatpush2.msra.mxu0 0.0
    %1827 = vmatprep.subr.mxu0 0.0
    %1828 = vmatpush2.msra.mxu0 0.0
    %1829 = vmatprep.subr.mxu0 0.0
    %1830 = vmatpush2.msra.mxu0 0.0
    %1831 = vmatprep.subr.mxu0 0.0
    %1832 = vmatpush2.msra.mxu0 0.0
    %1833 = vmatprep.subr.mxu0 0.0
    %1834 = vmatpush2.msra.mxu0 0.0
    %1835 = vmatprep.subr.mxu0 0.0
    %1836 = vmatpush2.msra.mxu0 0.0
    %1837 = vmatprep.subr.mxu0 0.0
    %1838 = vmatpush2.msra.mxu0 0.0
    %1839 = vmatprep.subr.mxu0 0.0
    %1840 = vmatpush2.msra.mxu0 0.0
    %1841 = vmatprep.mubr.f32.mxu0 0.0
    %1842 = vmatmul.mubr.f32.gmra.mxu0 %v1518
    %v1843 = vpop.f32.mrf.mxu0
    %v1844 = vadd.f32 %v1704, %v1843
    %v1845 = vpop.f32.mrf.mxu0
    %v1846 = vadd.f32 %v1705, %v1845
    %1847 = vdwg.mxu0
    %v1848 = vadd.f32 %v1773, %v369
    %v1849 = vadd.f32 %v1775, %v373
    %v1850 = vadd.f32 %v1844, %v377
    %v1851 = vadd.f32 %v1846, %v381
    %v1852 = vxor.u32 %v1848, 2147483648
    %v1853 = vxor.u32 %v1849, 2147483648
    %v1854 = vxor.u32 %v1850, 2147483648
    %v1855 = vmul.f32 %v1852, 1.442695
    %v1856 = vpow.pop %v1855
    %v1857 = vmul.f32 %v1853, 1.442695
    %v1858 = vpow.pop %v1857
    %v1859 = vmul.f32 %v1854, 1.442695
    %v1860 = vpow.pop %v1859
    %v1861 = vadd.f32 %v1856, 1.0
    %v1862 = vadd.f32 %v1858, 1.0
    %v1863 = vadd.f32 %v1860, 1.0
    %v1864 = vrcp.pop %v1861
    %v1865 = vmul.f32 1.0, %v1864
    %v1866 = vrcp.pop %v1862
    %v1867 = vmul.f32 1.0, %v1866
    %v1868 = vrcp.pop %v1863
    %v1869 = vmul.f32 1.0, %v1868
    %v1870 = vtanh.pop %v1851
    %v1871 = vmul.f32 %v1867, %v1516
    %v1872 = vmul.f32 %v1865, %v1870
    %v1873 = vadd.f32 %v1871, %v1872
    %v1874 = vtanh.pop %v1873
    %v1875 = vmul.f32 %v1869, %v1874
    %1876 = vrot.lane.b32.xlu0 %v1687, 64
    %v1877 = vpop.permute.xlu0 %1876
    %v1878 = vadd.f32 %v1875, %v1877
    %1879 = vmatprep.subr.mxu0 %v186
    %1880 = vmatpush1.msra.mxu0 %v185
    %1881 = vmatprep.subr.mxu0 %v182
    %1882 = vmatpush1.msra.mxu0 %v181
    %1883 = vmatprep.subr.mxu0 %v178
    %1884 = vmatpush1.msra.mxu0 %v177
    %1885 = vmatprep.subr.mxu0 %v174
    %1886 = vmatpush1.msra.mxu0 %v173
    %1887 = vmatprep.subr.mxu0 %v170
    %1888 = vmatpush1.msra.mxu0 %v169
    %1889 = vmatprep.subr.mxu0 %v166
    %1890 = vmatpush1.msra.mxu0 %v165
    %1891 = vmatprep.subr.mxu0 %v162
    %1892 = vmatpush1.msra.mxu0 %v161
    %1893 = vmatprep.subr.mxu0 %v158
    %1894 = vmatpush1.msra.mxu0 %v157
    %1895 = vmatprep.subr.mxu0 %v154
    %1896 = vmatpush1.msra.mxu0 %v153
    %1897 = vmatprep.subr.mxu0 %v150
    %1898 = vmatpush1.msra.mxu0 %v149
    %1899 = vmatprep.subr.mxu0 %v146
    %1900 = vmatpush1.msra.mxu0 %v145
    %1901 = vmatprep.subr.mxu0 %v142
    %1902 = vmatpush1.msra.mxu0 %v141
    %1903 = vmatprep.subr.mxu0 %v138
    %1904 = vmatpush1.msra.mxu0 %v137
    %1905 = vmatprep.subr.mxu0 %v134
    %1906 = vmatpush1.msra.mxu0 %v133
    %1907 = vmatprep.subr.mxu0 %v130
    %1908 = vmatpush1.msra.mxu0 %v129
    %1909 = vmatprep.subr.mxu0 %v126
    %1910 = vmatpush1.msra.mxu0 %v125
    %1911 = vmatprep.subr.mxu0 0.0
    %1912 = vmatpush2.msra.mxu0 0.0
    %1913 = vmatprep.subr.mxu0 0.0
    %1914 = vmatpush2.msra.mxu0 0.0
    %1915 = vmatprep.subr.mxu0 0.0
    %1916 = vmatpush2.msra.mxu0 0.0
    %1917 = vmatprep.subr.mxu0 0.0
    %1918 = vmatpush2.msra.mxu0 0.0
    %1919 = vmatprep.subr.mxu0 0.0
    %1920 = vmatpush2.msra.mxu0 0.0
    %1921 = vmatprep.subr.mxu0 0.0
    %1922 = vmatpush2.msra.mxu0 0.0
    %1923 = vmatprep.subr.mxu0 0.0
    %1924 = vmatpush2.msra.mxu0 0.0
    %1925 = vmatprep.subr.mxu0 0.0
    %1926 = vmatpush2.msra.mxu0 0.0
    %1927 = vmatprep.subr.mxu0 0.0
    %1928 = vmatpush2.msra.mxu0 0.0
    %1929 = vmatprep.subr.mxu0 0.0
    %1930 = vmatpush2.msra.mxu0 0.0
    %1931 = vmatprep.subr.mxu0 0.0
    %1932 = vmatpush2.msra.mxu0 0.0
    %1933 = vmatprep.subr.mxu0 0.0
    %1934 = vmatpush2.msra.mxu0 0.0
    %1935 = vmatprep.subr.mxu0 0.0
    %1936 = vmatpush2.msra.mxu0 0.0
    %1937 = vmatprep.subr.mxu0 0.0
    %1938 = vmatpush2.msra.mxu0 0.0
    %1939 = vmatprep.subr.mxu0 0.0
    %1940 = vmatpush2.msra.mxu0 0.0
    %1941 = vmatprep.subr.mxu0 0.0
    %1942 = vmatpush2.msra.mxu0 0.0
    %1943 = vmatprep.mubr.f32.mxu0 0.0
    %1944 = vmatmul.mubr.f32.gmra.mxu0 %v1878
    %v1945 = vpop.f32.mrf.mxu0
    %v1946 = vadd.f32 %v421, %v1945
    %v1947 = vpop.f32.mrf.mxu0
    %v1948 = vadd.f32 %v425, %v1947
    %1949 = vdwg.mxu0
    %1950 = vmatprep.subr.mxu0 %v188
    %1951 = vmatpush1.msra.mxu0 %v187
    %1952 = vmatprep.subr.mxu0 %v184
    %1953 = vmatpush1.msra.mxu0 %v183
    %1954 = vmatprep.subr.mxu0 %v180
    %1955 = vmatpush1.msra.mxu0 %v179
    %1956 = vmatprep.subr.mxu0 %v176
    %1957 = vmatpush1.msra.mxu0 %v175
    %1958 = vmatprep.subr.mxu0 %v172
    %1959 = vmatpush1.msra.mxu0 %v171
    %1960 = vmatprep.subr.mxu0 %v168
    %1961 = vmatpush1.msra.mxu0 %v167
    %1962 = vmatprep.subr.mxu0 %v164
    %1963 = vmatpush1.msra.mxu0 %v163
    %1964 = vmatprep.subr.mxu0 %v160
    %1965 = vmatpush1.msra.mxu0 %v159
    %1966 = vmatprep.subr.mxu0 %v156
    %1967 = vmatpush1.msra.mxu0 %v155
    %1968 = vmatprep.subr.mxu0 %v152
    %1969 = vmatpush1.msra.mxu0 %v151
    %1970 = vmatprep.subr.mxu0 %v148
    %1971 = vmatpush1.msra.mxu0 %v147
    %1972 = vmatprep.subr.mxu0 %v144
    %1973 = vmatpush1.msra.mxu0 %v143
    %1974 = vmatprep.subr.mxu0 %v140
    %1975 = vmatpush1.msra.mxu0 %v139
    %1976 = vmatprep.subr.mxu0 %v136
    %1977 = vmatpush1.msra.mxu0 %v135
    %1978 = vmatprep.subr.mxu0 %v132
    %1979 = vmatpush1.msra.mxu0 %v131
    %1980 = vmatprep.subr.mxu0 %v128
    %1981 = vmatpush1.msra.mxu0 %v127
    %1982 = vmatprep.subr.mxu0 0.0
    %1983 = vmatpush2.msra.mxu0 0.0
    %1984 = vmatprep.subr.mxu0 0.0
    %1985 = vmatpush2.msra.mxu0 0.0
    %1986 = vmatprep.subr.mxu0 0.0
    %1987 = vmatpush2.msra.mxu0 0.0
    %1988 = vmatprep.subr.mxu0 0.0
    %1989 = vmatpush2.msra.mxu0 0.0
    %1990 = vmatprep.subr.mxu0 0.0
    %1991 = vmatpush2.msra.mxu0 0.0
    %1992 = vmatprep.subr.mxu0 0.0
    %1993 = vmatpush2.msra.mxu0 0.0
    %1994 = vmatprep.subr.mxu0 0.0
    %1995 = vmatpush2.msra.mxu0 0.0
    %1996 = vmatprep.subr.mxu0 0.0
    %1997 = vmatpush2.msra.mxu0 0.0
    %1998 = vmatprep.subr.mxu0 0.0
    %1999 = vmatpush2.msra.mxu0 0.0
    %2000 = vmatprep.subr.mxu0 0.0
    %2001 = vmatpush2.msra.mxu0 0.0
    %2002 = vmatprep.subr.mxu0 0.0
    %2003 = vmatpush2.msra.mxu0 0.0
    %2004 = vmatprep.subr.mxu0 0.0
    %2005 = vmatpush2.msra.mxu0 0.0
    %2006 = vmatprep.subr.mxu0 0.0
    %2007 = vmatpush2.msra.mxu0 0.0
    %2008 = vmatprep.subr.mxu0 0.0
    %2009 = vmatpush2.msra.mxu0 0.0
    %2010 = vmatprep.subr.mxu0 0.0
    %2011 = vmatpush2.msra.mxu0 0.0
    %2012 = vmatprep.subr.mxu0 0.0
    %2013 = vmatpush2.msra.mxu0 0.0
    %2014 = vmatprep.mubr.f32.mxu0 0.0
    %2015 = vmatmul.mubr.f32.gmra.mxu0 %v1878
    %v2016 = vpop.f32.mrf.mxu0
    %v2017 = vadd.f32 %v429, %v2016
    %v2018 = vpop.f32.mrf.mxu0
    %v2019 = vadd.f32 %v433, %v2018
    %2020 = vdwg.mxu0
    %v2021 = vxor.u32 %v1946, 2147483648
    %v2022 = vxor.u32 %v1948, 2147483648
    %v2023 = vxor.u32 %v2017, 2147483648
    %v2024 = vmul.f32 %v2021, 1.442695
    %v2025 = vpow.pop %v2024
    %v2026 = vmul.f32 %v2022, 1.442695
    %v2027 = vpow.pop %v2026
    %v2028 = vmul.f32 %v2023, 1.442695
    %v2029 = vpow.pop %v2028
    %v2030 = vadd.f32 %v2025, 1.0
    %v2031 = vadd.f32 %v2027, 1.0
    %v2032 = vadd.f32 %v2029, 1.0
    %v2033 = vrcp.pop %v2030
    %v2034 = vmul.f32 1.0, %v2033
    %v2035 = vrcp.pop %v2031
    %v2036 = vmul.f32 1.0, %v2035
    %v2037 = vrcp.pop %v2032
    %v2038 = vmul.f32 1.0, %v2037
    %v2039 = vtanh.pop %v2019
    %v2040 = vmul.f32 %v2036, %v1685
    %v2041 = vmul.f32 %v2034, %v2039
    %v2042 = vadd.f32 %v2040, %v2041
    %v2043 = vtanh.pop %v2042
    %v2044 = vmul.f32 %v2038, %v2043
    %v2045 = vmul.f32 %v2044, %v608
    %v2046 = vsel %vm611, %v2045, 0.0
    %2047 = vadd.xlane.f32.xlu0 %v2046
    %v2048 = vpop.xlane.xlu0 %2047
    %v2049 = vadd.f32 %v2048, %v619
    %s2050 = scalar_lea.vmem %s8, 16
    %2051 = vst.msk [vmem:[%s2050] sm:$0xf] %vm622, %v2049
    %s2052 = scalar_lea.vmem %s0, 20
    %v2053 = vld [vmem:[%s2052] sm:$0xf]
    %2055 = vset.pattern.permute.xlu0 0
    %2056 = vperm.xlu0 %2055, %v2053
    %v2057 = vpop.permute.xlu0 %2056
    %v2059 = vmul.f32 %v2057, %v202
    %v2060 = vmul.f32 %v2057, %v206
    %v2061 = vmul.f32 %v2057, %v210
    %v2062 = vmul.f32 %v2057, %v214
    %2063 = vmatprep.subr.mxu0 %v121
    %2064 = vmatpush1.msra.mxu0 %v120
    %2065 = vmatprep.subr.mxu0 %v117
    %2066 = vmatpush1.msra.mxu0 %v116
    %2067 = vmatprep.subr.mxu0 %v113
    %2068 = vmatpush1.msra.mxu0 %v112
    %2069 = vmatprep.subr.mxu0 %v109
    %2070 = vmatpush1.msra.mxu0 %v108
    %2071 = vmatprep.subr.mxu0 %v105
    %2072 = vmatpush1.msra.mxu0 %v104
    %2073 = vmatprep.subr.mxu0 %v101
    %2074 = vmatpush1.msra.mxu0 %v100
    %2075 = vmatprep.subr.mxu0 %v97
    %2076 = vmatpush1.msra.mxu0 %v96
    %2077 = vmatprep.subr.mxu0 %v93
    %2078 = vmatpush1.msra.mxu0 %v92
    %2079 = vmatprep.subr.mxu0 %v89
    %2080 = vmatpush1.msra.mxu0 %v88
    %2081 = vmatprep.subr.mxu0 %v85
    %2082 = vmatpush1.msra.mxu0 %v84
    %2083 = vmatprep.subr.mxu0 %v81
    %2084 = vmatpush1.msra.mxu0 %v80
    %2085 = vmatprep.subr.mxu0 %v77
    %2086 = vmatpush1.msra.mxu0 %v76
    %2087 = vmatprep.subr.mxu0 %v73
    %2088 = vmatpush1.msra.mxu0 %v72
    %2089 = vmatprep.subr.mxu0 %v69
    %2090 = vmatpush1.msra.mxu0 %v68
    %2091 = vmatprep.subr.mxu0 %v65
    %2092 = vmatpush1.msra.mxu0 %v64
    %2093 = vmatprep.subr.mxu0 %v61
    %2094 = vmatpush1.msra.mxu0 %v60
    %2095 = vmatprep.subr.mxu0 0.0
    %2096 = vmatpush2.msra.mxu0 0.0
    %2097 = vmatprep.subr.mxu0 0.0
    %2098 = vmatpush2.msra.mxu0 0.0
    %2099 = vmatprep.subr.mxu0 0.0
    %2100 = vmatpush2.msra.mxu0 0.0
    %2101 = vmatprep.subr.mxu0 0.0
    %2102 = vmatpush2.msra.mxu0 0.0
    %2103 = vmatprep.subr.mxu0 0.0
    %2104 = vmatpush2.msra.mxu0 0.0
    %2105 = vmatprep.subr.mxu0 0.0
    %2106 = vmatpush2.msra.mxu0 0.0
    %2107 = vmatprep.subr.mxu0 0.0
    %2108 = vmatpush2.msra.mxu0 0.0
    %2109 = vmatprep.subr.mxu0 0.0
    %2110 = vmatpush2.msra.mxu0 0.0
    %2111 = vmatprep.subr.mxu0 0.0
    %2112 = vmatpush2.msra.mxu0 0.0
    %2113 = vmatprep.subr.mxu0 0.0
    %2114 = vmatpush2.msra.mxu0 0.0
    %2115 = vmatprep.subr.mxu0 0.0
    %2116 = vmatpush2.msra.mxu0 0.0
    %2117 = vmatprep.subr.mxu0 0.0
    %2118 = vmatpush2.msra.mxu0 0.0
    %2119 = vmatprep.subr.mxu0 0.0
    %2120 = vmatpush2.msra.mxu0 0.0
    %2121 = vmatprep.subr.mxu0 0.0
    %2122 = vmatpush2.msra.mxu0 0.0
    %2123 = vmatprep.subr.mxu0 0.0
    %2124 = vmatpush2.msra.mxu0 0.0
    %2125 = vmatprep.subr.mxu0 0.0
    %2126 = vmatpush2.msra.mxu0 0.0
    %2127 = vmatprep.mubr.f32.mxu0 0.0
    %2128 = vmatmul.mubr.f32.gmra.mxu0 %v1875
    %v2129 = vpop.f32.mrf.mxu0
    %v2130 = vadd.f32 %v2059, %v2129
    %v2131 = vpop.f32.mrf.mxu0
    %v2132 = vadd.f32 %v2060, %v2131
    %2133 = vdwg.mxu0
    %2134 = vmatprep.subr.mxu0 %v123
    %2135 = vmatpush1.msra.mxu0 %v122
    %2136 = vmatprep.subr.mxu0 %v119
    %2137 = vmatpush1.msra.mxu0 %v118
    %2138 = vmatprep.subr.mxu0 %v115
    %2139 = vmatpush1.msra.mxu0 %v114
    %2140 = vmatprep.subr.mxu0 %v111
    %2141 = vmatpush1.msra.mxu0 %v110
    %2142 = vmatprep.subr.mxu0 %v107
    %2143 = vmatpush1.msra.mxu0 %v106
    %2144 = vmatprep.subr.mxu0 %v103
    %2145 = vmatpush1.msra.mxu0 %v102
    %2146 = vmatprep.subr.mxu0 %v99
    %2147 = vmatpush1.msra.mxu0 %v98
    %2148 = vmatprep.subr.mxu0 %v95
    %2149 = vmatpush1.msra.mxu0 %v94
    %2150 = vmatprep.subr.mxu0 %v91
    %2151 = vmatpush1.msra.mxu0 %v90
    %2152 = vmatprep.subr.mxu0 %v87
    %2153 = vmatpush1.msra.mxu0 %v86
    %2154 = vmatprep.subr.mxu0 %v83
    %2155 = vmatpush1.msra.mxu0 %v82
    %2156 = vmatprep.subr.mxu0 %v79
    %2157 = vmatpush1.msra.mxu0 %v78
    %2158 = vmatprep.subr.mxu0 %v75
    %2159 = vmatpush1.msra.mxu0 %v74
    %2160 = vmatprep.subr.mxu0 %v71
    %2161 = vmatpush1.msra.mxu0 %v70
    %2162 = vmatprep.subr.mxu0 %v67
    %2163 = vmatpush1.msra.mxu0 %v66
    %2164 = vmatprep.subr.mxu0 %v63
    %2165 = vmatpush1.msra.mxu0 %v62
    %2166 = vmatprep.subr.mxu0 0.0
    %2167 = vmatpush2.msra.mxu0 0.0
    %2168 = vmatprep.subr.mxu0 0.0
    %2169 = vmatpush2.msra.mxu0 0.0
    %2170 = vmatprep.subr.mxu0 0.0
    %2171 = vmatpush2.msra.mxu0 0.0
    %2172 = vmatprep.subr.mxu0 0.0
    %2173 = vmatpush2.msra.mxu0 0.0
    %2174 = vmatprep.subr.mxu0 0.0
    %2175 = vmatpush2.msra.mxu0 0.0
    %2176 = vmatprep.subr.mxu0 0.0
    %2177 = vmatpush2.msra.mxu0 0.0
    %2178 = vmatprep.subr.mxu0 0.0
    %2179 = vmatpush2.msra.mxu0 0.0
    %2180 = vmatprep.subr.mxu0 0.0
    %2181 = vmatpush2.msra.mxu0 0.0
    %2182 = vmatprep.subr.mxu0 0.0
    %2183 = vmatpush2.msra.mxu0 0.0
    %2184 = vmatprep.subr.mxu0 0.0
    %2185 = vmatpush2.msra.mxu0 0.0
    %2186 = vmatprep.subr.mxu0 0.0
    %2187 = vmatpush2.msra.mxu0 0.0
    %2188 = vmatprep.subr.mxu0 0.0
    %2189 = vmatpush2.msra.mxu0 0.0
    %2190 = vmatprep.subr.mxu0 0.0
    %2191 = vmatpush2.msra.mxu0 0.0
    %2192 = vmatprep.subr.mxu0 0.0
    %2193 = vmatpush2.msra.mxu0 0.0
    %2194 = vmatprep.subr.mxu0 0.0
    %2195 = vmatpush2.msra.mxu0 0.0
    %2196 = vmatprep.subr.mxu0 0.0
    %2197 = vmatpush2.msra.mxu0 0.0
    %2198 = vmatprep.mubr.f32.mxu0 0.0
    %2199 = vmatmul.mubr.f32.gmra.mxu0 %v1875
    %v2200 = vpop.f32.mrf.mxu0
    %v2201 = vadd.f32 %v2061, %v2200
    %v2202 = vpop.f32.mrf.mxu0
    %v2203 = vadd.f32 %v2062, %v2202
    %2204 = vdwg.mxu0
    %v2205 = vadd.f32 %v2130, %v369
    %v2206 = vadd.f32 %v2132, %v373
    %v2207 = vadd.f32 %v2201, %v377
    %v2208 = vadd.f32 %v2203, %v381
    %v2209 = vxor.u32 %v2205, 2147483648
    %v2210 = vxor.u32 %v2206, 2147483648
    %v2211 = vxor.u32 %v2207, 2147483648
    %v2212 = vmul.f32 %v2209, 1.442695
    %v2213 = vpow.pop %v2212
    %v2214 = vmul.f32 %v2210, 1.442695
    %v2215 = vpow.pop %v2214
    %v2216 = vmul.f32 %v2211, 1.442695
    %v2217 = vpow.pop %v2216
    %v2218 = vadd.f32 %v2213, 1.0
    %v2219 = vadd.f32 %v2215, 1.0
    %v2220 = vadd.f32 %v2217, 1.0
    %v2221 = vrcp.pop %v2218
    %v2222 = vmul.f32 1.0, %v2221
    %v2223 = vrcp.pop %v2219
    %v2224 = vmul.f32 1.0, %v2223
    %v2225 = vrcp.pop %v2220
    %v2226 = vmul.f32 1.0, %v2225
    %v2227 = vtanh.pop %v2208
    %v2228 = vmul.f32 %v2224, %v1873
    %v2229 = vmul.f32 %v2222, %v2227
    %v2230 = vadd.f32 %v2228, %v2229
    %v2231 = vtanh.pop %v2230
    %v2232 = vmul.f32 %v2226, %v2231
    %2233 = vrot.lane.b32.xlu0 %v2044, 64
    %v2234 = vpop.permute.xlu0 %2233
    %v2235 = vadd.f32 %v2232, %v2234
    %2236 = vmatprep.subr.mxu0 %v186
    %2237 = vmatpush1.msra.mxu0 %v185
    %2238 = vmatprep.subr.mxu0 %v182
    %2239 = vmatpush1.msra.mxu0 %v181
    %2240 = vmatprep.subr.mxu0 %v178
    %2241 = vmatpush1.msra.mxu0 %v177
    %2242 = vmatprep.subr.mxu0 %v174
    %2243 = vmatpush1.msra.mxu0 %v173
    %2244 = vmatprep.subr.mxu0 %v170
    %2245 = vmatpush1.msra.mxu0 %v169
    %2246 = vmatprep.subr.mxu0 %v166
    %2247 = vmatpush1.msra.mxu0 %v165
    %2248 = vmatprep.subr.mxu0 %v162
    %2249 = vmatpush1.msra.mxu0 %v161
    %2250 = vmatprep.subr.mxu0 %v158
    %2251 = vmatpush1.msra.mxu0 %v157
    %2252 = vmatprep.subr.mxu0 %v154
    %2253 = vmatpush1.msra.mxu0 %v153
    %2254 = vmatprep.subr.mxu0 %v150
    %2255 = vmatpush1.msra.mxu0 %v149
    %2256 = vmatprep.subr.mxu0 %v146
    %2257 = vmatpush1.msra.mxu0 %v145
    %2258 = vmatprep.subr.mxu0 %v142
    %2259 = vmatpush1.msra.mxu0 %v141
    %2260 = vmatprep.subr.mxu0 %v138
    %2261 = vmatpush1.msra.mxu0 %v137
    %2262 = vmatprep.subr.mxu0 %v134
    %2263 = vmatpush1.msra.mxu0 %v133
    %2264 = vmatprep.subr.mxu0 %v130
    %2265 = vmatpush1.msra.mxu0 %v129
    %2266 = vmatprep.subr.mxu0 %v126
    %2267 = vmatpush1.msra.mxu0 %v125
    %2268 = vmatprep.subr.mxu0 0.0
    %2269 = vmatpush2.msra.mxu0 0.0
    %2270 = vmatprep.subr.mxu0 0.0
    %2271 = vmatpush2.msra.mxu0 0.0
    %2272 = vmatprep.subr.mxu0 0.0
    %2273 = vmatpush2.msra.mxu0 0.0
    %2274 = vmatprep.subr.mxu0 0.0
    %2275 = vmatpush2.msra.mxu0 0.0
    %2276 = vmatprep.subr.mxu0 0.0
    %2277 = vmatpush2.msra.mxu0 0.0
    %2278 = vmatprep.subr.mxu0 0.0
    %2279 = vmatpush2.msra.mxu0 0.0
    %2280 = vmatprep.subr.mxu0 0.0
    %2281 = vmatpush2.msra.mxu0 0.0
    %2282 = vmatprep.subr.mxu0 0.0
    %2283 = vmatpush2.msra.mxu0 0.0
    %2284 = vmatprep.subr.mxu0 0.0
    %2285 = vmatpush2.msra.mxu0 0.0
    %2286 = vmatprep.subr.mxu0 0.0
    %2287 = vmatpush2.msra.mxu0 0.0
    %2288 = vmatprep.subr.mxu0 0.0
    %2289 = vmatpush2.msra.mxu0 0.0
    %2290 = vmatprep.subr.mxu0 0.0
    %2291 = vmatpush2.msra.mxu0 0.0
    %2292 = vmatprep.subr.mxu0 0.0
    %2293 = vmatpush2.msra.mxu0 0.0
    %2294 = vmatprep.subr.mxu0 0.0
    %2295 = vmatpush2.msra.mxu0 0.0
    %2296 = vmatprep.subr.mxu0 0.0
    %2297 = vmatpush2.msra.mxu0 0.0
    %2298 = vmatprep.subr.mxu0 0.0
    %2299 = vmatpush2.msra.mxu0 0.0
    %2300 = vmatprep.mubr.f32.mxu0 0.0
    %2301 = vmatmul.mubr.f32.gmra.mxu0 %v2235
    %v2302 = vpop.f32.mrf.mxu0
    %v2303 = vadd.f32 %v421, %v2302
    %v2304 = vpop.f32.mrf.mxu0
    %v2305 = vadd.f32 %v425, %v2304
    %2306 = vdwg.mxu0
    %2307 = vmatprep.subr.mxu0 %v188
    %2308 = vmatpush1.msra.mxu0 %v187
    %2309 = vmatprep.subr.mxu0 %v184
    %2310 = vmatpush1.msra.mxu0 %v183
    %2311 = vmatprep.subr.mxu0 %v180
    %2312 = vmatpush1.msra.mxu0 %v179
    %2313 = vmatprep.subr.mxu0 %v176
    %2314 = vmatpush1.msra.mxu0 %v175
    %2315 = vmatprep.subr.mxu0 %v172
    %2316 = vmatpush1.msra.mxu0 %v171
    %2317 = vmatprep.subr.mxu0 %v168
    %2318 = vmatpush1.msra.mxu0 %v167
    %2319 = vmatprep.subr.mxu0 %v164
    %2320 = vmatpush1.msra.mxu0 %v163
    %2321 = vmatprep.subr.mxu0 %v160
    %2322 = vmatpush1.msra.mxu0 %v159
    %2323 = vmatprep.subr.mxu0 %v156
    %2324 = vmatpush1.msra.mxu0 %v155
    %2325 = vmatprep.subr.mxu0 %v152
    %2326 = vmatpush1.msra.mxu0 %v151
    %2327 = vmatprep.subr.mxu0 %v148
    %2328 = vmatpush1.msra.mxu0 %v147
    %2329 = vmatprep.subr.mxu0 %v144
    %2330 = vmatpush1.msra.mxu0 %v143
    %2331 = vmatprep.subr.mxu0 %v140
    %2332 = vmatpush1.msra.mxu0 %v139
    %2333 = vmatprep.subr.mxu0 %v136
    %2334 = vmatpush1.msra.mxu0 %v135
    %2335 = vmatprep.subr.mxu0 %v132
    %2336 = vmatpush1.msra.mxu0 %v131
    %2337 = vmatprep.subr.mxu0 %v128
    %2338 = vmatpush1.msra.mxu0 %v127
    %2339 = vmatprep.subr.mxu0 0.0
    %2340 = vmatpush2.msra.mxu0 0.0
    %2341 = vmatprep.subr.mxu0 0.0
    %2342 = vmatpush2.msra.mxu0 0.0
    %2343 = vmatprep.subr.mxu0 0.0
    %2344 = vmatpush2.msra.mxu0 0.0
    %2345 = vmatprep.subr.mxu0 0.0
    %2346 = vmatpush2.msra.mxu0 0.0
    %2347 = vmatprep.subr.mxu0 0.0
    %2348 = vmatpush2.msra.mxu0 0.0
    %2349 = vmatprep.subr.mxu0 0.0
    %2350 = vmatpush2.msra.mxu0 0.0
    %2351 = vmatprep.subr.mxu0 0.0
    %2352 = vmatpush2.msra.mxu0 0.0
    %2353 = vmatprep.subr.mxu0 0.0
    %2354 = vmatpush2.msra.mxu0 0.0
    %2355 = vmatprep.subr.mxu0 0.0
    %2356 = vmatpush2.msra.mxu0 0.0
    %2357 = vmatprep.subr.mxu0 0.0
    %2358 = vmatpush2.msra.mxu0 0.0
    %2359 = vmatprep.subr.mxu0 0.0
    %2360 = vmatpush2.msra.mxu0 0.0
    %2361 = vmatprep.subr.mxu0 0.0
    %2362 = vmatpush2.msra.mxu0 0.0
    %2363 = vmatprep.subr.mxu0 0.0
    %2364 = vmatpush2.msra.mxu0 0.0
    %2365 = vmatprep.subr.mxu0 0.0
    %2366 = vmatpush2.msra.mxu0 0.0
    %2367 = vmatprep.subr.mxu0 0.0
    %2368 = vmatpush2.msra.mxu0 0.0
    %2369 = vmatprep.subr.mxu0 0.0
    %2370 = vmatpush2.msra.mxu0 0.0
    %2371 = vmatprep.mubr.f32.mxu0 0.0
    %2372 = vmatmul.mubr.f32.gmra.mxu0 %v2235
    %v2373 = vpop.f32.mrf.mxu0
    %v2374 = vadd.f32 %v429, %v2373
    %v2375 = vpop.f32.mrf.mxu0
    %v2376 = vadd.f32 %v433, %v2375
    %2377 = vdwg.mxu0
    %v2378 = vxor.u32 %v2303, 2147483648
    %v2379 = vxor.u32 %v2305, 2147483648
    %v2380 = vxor.u32 %v2374, 2147483648
    %v2381 = vmul.f32 %v2378, 1.442695
    %v2382 = vpow.pop %v2381
    %v2383 = vmul.f32 %v2379, 1.442695
    %v2384 = vpow.pop %v2383
    %v2385 = vmul.f32 %v2380, 1.442695
    %v2386 = vpow.pop %v2385
    %v2387 = vadd.f32 %v2382, 1.0
    %v2388 = vadd.f32 %v2384, 1.0
    %v2389 = vadd.f32 %v2386, 1.0
    %v2390 = vrcp.pop %v2387
    %v2391 = vmul.f32 1.0, %v2390
    %v2392 = vrcp.pop %v2388
    %v2393 = vmul.f32 1.0, %v2392
    %v2394 = vrcp.pop %v2389
    %v2395 = vmul.f32 1.0, %v2394
    %v2396 = vtanh.pop %v2376
    %v2397 = vmul.f32 %v2393, %v2042
    %v2398 = vmul.f32 %v2391, %v2396
    %v2399 = vadd.f32 %v2397, %v2398
    %v2400 = vtanh.pop %v2399
    %v2401 = vmul.f32 %v2395, %v2400
    %v2402 = vmul.f32 %v2401, %v608
    %v2403 = vsel %vm611, %v2402, 0.0
    %2404 = vadd.xlane.f32.xlu0 %v2403
    %v2405 = vpop.xlane.xlu0 %2404
    %v2406 = vadd.f32 %v2405, %v619
    %s2407 = scalar_lea.vmem %s8, 20
    %2408 = vst.msk [vmem:[%s2407] sm:$0xf] %vm622, %v2406
    %s2409 = scalar_lea.vmem %s0, 24
    %v2410 = vld [vmem:[%s2409] sm:$0xf]
    %2412 = vset.pattern.permute.xlu0 0
    %2413 = vperm.xlu0 %2412, %v2410
    %v2414 = vpop.permute.xlu0 %2413
    %v2416 = vmul.f32 %v2414, %v202
    %v2417 = vmul.f32 %v2414, %v206
    %v2418 = vmul.f32 %v2414, %v210
    %v2419 = vmul.f32 %v2414, %v214
    %2420 = vmatprep.subr.mxu0 %v121
    %2421 = vmatpush1.msra.mxu0 %v120
    %2422 = vmatprep.subr.mxu0 %v117
    %2423 = vmatpush1.msra.mxu0 %v116
    %2424 = vmatprep.subr.mxu0 %v113
    %2425 = vmatpush1.msra.mxu0 %v112
    %2426 = vmatprep.subr.mxu0 %v109
    %2427 = vmatpush1.msra.mxu0 %v108
    %2428 = vmatprep.subr.mxu0 %v105
    %2429 = vmatpush1.msra.mxu0 %v104
    %2430 = vmatprep.subr.mxu0 %v101
    %2431 = vmatpush1.msra.mxu0 %v100
    %2432 = vmatprep.subr.mxu0 %v97
    %2433 = vmatpush1.msra.mxu0 %v96
    %2434 = vmatprep.subr.mxu0 %v93
    %2435 = vmatpush1.msra.mxu0 %v92
    %2436 = vmatprep.subr.mxu0 %v89
    %2437 = vmatpush1.msra.mxu0 %v88
    %2438 = vmatprep.subr.mxu0 %v85
    %2439 = vmatpush1.msra.mxu0 %v84
    %2440 = vmatprep.subr.mxu0 %v81
    %2441 = vmatpush1.msra.mxu0 %v80
    %2442 = vmatprep.subr.mxu0 %v77
    %2443 = vmatpush1.msra.mxu0 %v76
    %2444 = vmatprep.subr.mxu0 %v73
    %2445 = vmatpush1.msra.mxu0 %v72
    %2446 = vmatprep.subr.mxu0 %v69
    %2447 = vmatpush1.msra.mxu0 %v68
    %2448 = vmatprep.subr.mxu0 %v65
    %2449 = vmatpush1.msra.mxu0 %v64
    %2450 = vmatprep.subr.mxu0 %v61
    %2451 = vmatpush1.msra.mxu0 %v60
    %2452 = vmatprep.subr.mxu0 0.0
    %2453 = vmatpush2.msra.mxu0 0.0
    %2454 = vmatprep.subr.mxu0 0.0
    %2455 = vmatpush2.msra.mxu0 0.0
    %2456 = vmatprep.subr.mxu0 0.0
    %2457 = vmatpush2.msra.mxu0 0.0
    %2458 = vmatprep.subr.mxu0 0.0
    %2459 = vmatpush2.msra.mxu0 0.0
    %2460 = vmatprep.subr.mxu0 0.0
    %2461 = vmatpush2.msra.mxu0 0.0
    %2462 = vmatprep.subr.mxu0 0.0
    %2463 = vmatpush2.msra.mxu0 0.0
    %2464 = vmatprep.subr.mxu0 0.0
    %2465 = vmatpush2.msra.mxu0 0.0
    %2466 = vmatprep.subr.mxu0 0.0
    %2467 = vmatpush2.msra.mxu0 0.0
    %2468 = vmatprep.subr.mxu0 0.0
    %2469 = vmatpush2.msra.mxu0 0.0
    %2470 = vmatprep.subr.mxu0 0.0
    %2471 = vmatpush2.msra.mxu0 0.0
    %2472 = vmatprep.subr.mxu0 0.0
    %2473 = vmatpush2.msra.mxu0 0.0
    %2474 = vmatprep.subr.mxu0 0.0
    %2475 = vmatpush2.msra.mxu0 0.0
    %2476 = vmatprep.subr.mxu0 0.0
    %2477 = vmatpush2.msra.mxu0 0.0
    %2478 = vmatprep.subr.mxu0 0.0
    %2479 = vmatpush2.msra.mxu0 0.0
    %2480 = vmatprep.subr.mxu0 0.0
    %2481 = vmatpush2.msra.mxu0 0.0
    %2482 = vmatprep.subr.mxu0 0.0
    %2483 = vmatpush2.msra.mxu0 0.0
    %2484 = vmatprep.mubr.f32.mxu0 0.0
    %2485 = vmatmul.mubr.f32.gmra.mxu0 %v2232
    %v2486 = vpop.f32.mrf.mxu0
    %v2487 = vadd.f32 %v2416, %v2486
    %v2488 = vpop.f32.mrf.mxu0
    %v2489 = vadd.f32 %v2417, %v2488
    %2490 = vdwg.mxu0
    %2491 = vmatprep.subr.mxu0 %v123
    %2492 = vmatpush1.msra.mxu0 %v122
    %2493 = vmatprep.subr.mxu0 %v119
    %2494 = vmatpush1.msra.mxu0 %v118
    %2495 = vmatprep.subr.mxu0 %v115
    %2496 = vmatpush1.msra.mxu0 %v114
    %2497 = vmatprep.subr.mxu0 %v111
    %2498 = vmatpush1.msra.mxu0 %v110
    %2499 = vmatprep.subr.mxu0 %v107
    %2500 = vmatpush1.msra.mxu0 %v106
    %2501 = vmatprep.subr.mxu0 %v103
    %2502 = vmatpush1.msra.mxu0 %v102
    %2503 = vmatprep.subr.mxu0 %v99
    %2504 = vmatpush1.msra.mxu0 %v98
    %2505 = vmatprep.subr.mxu0 %v95
    %2506 = vmatpush1.msra.mxu0 %v94
    %2507 = vmatprep.subr.mxu0 %v91
    %2508 = vmatpush1.msra.mxu0 %v90
    %2509 = vmatprep.subr.mxu0 %v87
    %2510 = vmatpush1.msra.mxu0 %v86
    %2511 = vmatprep.subr.mxu0 %v83
    %2512 = vmatpush1.msra.mxu0 %v82
    %2513 = vmatprep.subr.mxu0 %v79
    %2514 = vmatpush1.msra.mxu0 %v78
    %2515 = vmatprep.subr.mxu0 %v75
    %2516 = vmatpush1.msra.mxu0 %v74
    %2517 = vmatprep.subr.mxu0 %v71
    %2518 = vmatpush1.msra.mxu0 %v70
    %2519 = vmatprep.subr.mxu0 %v67
    %2520 = vmatpush1.msra.mxu0 %v66
    %2521 = vmatprep.subr.mxu0 %v63
    %2522 = vmatpush1.msra.mxu0 %v62
    %2523 = vmatprep.subr.mxu0 0.0
    %2524 = vmatpush2.msra.mxu0 0.0
    %2525 = vmatprep.subr.mxu0 0.0
    %2526 = vmatpush2.msra.mxu0 0.0
    %2527 = vmatprep.subr.mxu0 0.0
    %2528 = vmatpush2.msra.mxu0 0.0
    %2529 = vmatprep.subr.mxu0 0.0
    %2530 = vmatpush2.msra.mxu0 0.0
    %2531 = vmatprep.subr.mxu0 0.0
    %2532 = vmatpush2.msra.mxu0 0.0
    %2533 = vmatprep.subr.mxu0 0.0
    %2534 = vmatpush2.msra.mxu0 0.0
    %2535 = vmatprep.subr.mxu0 0.0
    %2536 = vmatpush2.msra.mxu0 0.0
    %2537 = vmatprep.subr.mxu0 0.0
    %2538 = vmatpush2.msra.mxu0 0.0
    %2539 = vmatprep.subr.mxu0 0.0
    %2540 = vmatpush2.msra.mxu0 0.0
    %2541 = vmatprep.subr.mxu0 0.0
    %2542 = vmatpush2.msra.mxu0 0.0
    %2543 = vmatprep.subr.mxu0 0.0
    %2544 = vmatpush2.msra.mxu0 0.0
    %2545 = vmatprep.subr.mxu0 0.0
    %2546 = vmatpush2.msra.mxu0 0.0
    %2547 = vmatprep.subr.mxu0 0.0
    %2548 = vmatpush2.msra.mxu0 0.0
    %2549 = vmatprep.subr.mxu0 0.0
    %2550 = vmatpush2.msra.mxu0 0.0
    %2551 = vmatprep.subr.mxu0 0.0
    %2552 = vmatpush2.msra.mxu0 0.0
    %2553 = vmatprep.subr.mxu0 0.0
    %2554 = vmatpush2.msra.mxu0 0.0
    %2555 = vmatprep.mubr.f32.mxu0 0.0
    %2556 = vmatmul.mubr.f32.gmra.mxu0 %v2232
    %v2557 = vpop.f32.mrf.mxu0
    %v2558 = vadd.f32 %v2418, %v2557
    %v2559 = vpop.f32.mrf.mxu0
    %v2560 = vadd.f32 %v2419, %v2559
    %2561 = vdwg.mxu0
    %v2562 = vadd.f32 %v2487, %v369
    %v2563 = vadd.f32 %v2489, %v373
    %v2564 = vadd.f32 %v2558, %v377
    %v2565 = vadd.f32 %v2560, %v381
    %v2566 = vxor.u32 %v2562, 2147483648
    %v2567 = vxor.u32 %v2563, 2147483648
    %v2568 = vxor.u32 %v2564, 2147483648
    %v2569 = vmul.f32 %v2566, 1.442695
    %v2570 = vpow.pop %v2569
    %v2571 = vmul.f32 %v2567, 1.442695
    %v2572 = vpow.pop %v2571
    %v2573 = vmul.f32 %v2568, 1.442695
    %v2574 = vpow.pop %v2573
    %v2575 = vadd.f32 %v2570, 1.0
    %v2576 = vadd.f32 %v2572, 1.0
    %v2577 = vadd.f32 %v2574, 1.0
    %v2578 = vrcp.pop %v2575
    %v2579 = vmul.f32 1.0, %v2578
    %v2580 = vrcp.pop %v2576
    %v2581 = vmul.f32 1.0, %v2580
    %v2582 = vrcp.pop %v2577
    %v2583 = vmul.f32 1.0, %v2582
    %v2584 = vtanh.pop %v2565
    %v2585 = vmul.f32 %v2581, %v2230
    %v2586 = vmul.f32 %v2579, %v2584
    %v2587 = vadd.f32 %v2585, %v2586
    %v2588 = vtanh.pop %v2587
    %v2589 = vmul.f32 %v2583, %v2588
    %2590 = vrot.lane.b32.xlu0 %v2401, 64
    %v2591 = vpop.permute.xlu0 %2590
    %v2592 = vadd.f32 %v2589, %v2591
    %2593 = vmatprep.subr.mxu0 %v186
    %2594 = vmatpush1.msra.mxu0 %v185
    %2595 = vmatprep.subr.mxu0 %v182
    %2596 = vmatpush1.msra.mxu0 %v181
    %2597 = vmatprep.subr.mxu0 %v178
    %2598 = vmatpush1.msra.mxu0 %v177
    %2599 = vmatprep.subr.mxu0 %v174
    %2600 = vmatpush1.msra.mxu0 %v173
    %2601 = vmatprep.subr.mxu0 %v170
    %2602 = vmatpush1.msra.mxu0 %v169
    %2603 = vmatprep.subr.mxu0 %v166
    %2604 = vmatpush1.msra.mxu0 %v165
    %2605 = vmatprep.subr.mxu0 %v162
    %2606 = vmatpush1.msra.mxu0 %v161
    %2607 = vmatprep.subr.mxu0 %v158
    %2608 = vmatpush1.msra.mxu0 %v157
    %2609 = vmatprep.subr.mxu0 %v154
    %2610 = vmatpush1.msra.mxu0 %v153
    %2611 = vmatprep.subr.mxu0 %v150
    %2612 = vmatpush1.msra.mxu0 %v149
    %2613 = vmatprep.subr.mxu0 %v146
    %2614 = vmatpush1.msra.mxu0 %v145
    %2615 = vmatprep.subr.mxu0 %v142
    %2616 = vmatpush1.msra.mxu0 %v141
    %2617 = vmatprep.subr.mxu0 %v138
    %2618 = vmatpush1.msra.mxu0 %v137
    %2619 = vmatprep.subr.mxu0 %v134
    %2620 = vmatpush1.msra.mxu0 %v133
    %2621 = vmatprep.subr.mxu0 %v130
    %2622 = vmatpush1.msra.mxu0 %v129
    %2623 = vmatprep.subr.mxu0 %v126
    %2624 = vmatpush1.msra.mxu0 %v125
    %2625 = vmatprep.subr.mxu0 0.0
    %2626 = vmatpush2.msra.mxu0 0.0
    %2627 = vmatprep.subr.mxu0 0.0
    %2628 = vmatpush2.msra.mxu0 0.0
    %2629 = vmatprep.subr.mxu0 0.0
    %2630 = vmatpush2.msra.mxu0 0.0
    %2631 = vmatprep.subr.mxu0 0.0
    %2632 = vmatpush2.msra.mxu0 0.0
    %2633 = vmatprep.subr.mxu0 0.0
    %2634 = vmatpush2.msra.mxu0 0.0
    %2635 = vmatprep.subr.mxu0 0.0
    %2636 = vmatpush2.msra.mxu0 0.0
    %2637 = vmatprep.subr.mxu0 0.0
    %2638 = vmatpush2.msra.mxu0 0.0
    %2639 = vmatprep.subr.mxu0 0.0
    %2640 = vmatpush2.msra.mxu0 0.0
    %2641 = vmatprep.subr.mxu0 0.0
    %2642 = vmatpush2.msra.mxu0 0.0
    %2643 = vmatprep.subr.mxu0 0.0
    %2644 = vmatpush2.msra.mxu0 0.0
    %2645 = vmatprep.subr.mxu0 0.0
    %2646 = vmatpush2.msra.mxu0 0.0
    %2647 = vmatprep.subr.mxu0 0.0
    %2648 = vmatpush2.msra.mxu0 0.0
    %2649 = vmatprep.subr.mxu0 0.0
    %2650 = vmatpush2.msra.mxu0 0.0
    %2651 = vmatprep.subr.mxu0 0.0
    %2652 = vmatpush2.msra.mxu0 0.0
    %2653 = vmatprep.subr.mxu0 0.0
    %2654 = vmatpush2.msra.mxu0 0.0
    %2655 = vmatprep.subr.mxu0 0.0
    %2656 = vmatpush2.msra.mxu0 0.0
    %2657 = vmatprep.mubr.f32.mxu0 0.0
    %2658 = vmatmul.mubr.f32.gmra.mxu0 %v2592
    %v2659 = vpop.f32.mrf.mxu0
    %v2660 = vadd.f32 %v421, %v2659
    %v2661 = vpop.f32.mrf.mxu0
    %v2662 = vadd.f32 %v425, %v2661
    %2663 = vdwg.mxu0
    %2664 = vmatprep.subr.mxu0 %v188
    %2665 = vmatpush1.msra.mxu0 %v187
    %2666 = vmatprep.subr.mxu0 %v184
    %2667 = vmatpush1.msra.mxu0 %v183
    %2668 = vmatprep.subr.mxu0 %v180
    %2669 = vmatpush1.msra.mxu0 %v179
    %2670 = vmatprep.subr.mxu0 %v176
    %2671 = vmatpush1.msra.mxu0 %v175
    %2672 = vmatprep.subr.mxu0 %v172
    %2673 = vmatpush1.msra.mxu0 %v171
    %2674 = vmatprep.subr.mxu0 %v168
    %2675 = vmatpush1.msra.mxu0 %v167
    %2676 = vmatprep.subr.mxu0 %v164
    %2677 = vmatpush1.msra.mxu0 %v163
    %2678 = vmatprep.subr.mxu0 %v160
    %2679 = vmatpush1.msra.mxu0 %v159
    %2680 = vmatprep.subr.mxu0 %v156
    %2681 = vmatpush1.msra.mxu0 %v155
    %2682 = vmatprep.subr.mxu0 %v152
    %2683 = vmatpush1.msra.mxu0 %v151
    %2684 = vmatprep.subr.mxu0 %v148
    %2685 = vmatpush1.msra.mxu0 %v147
    %2686 = vmatprep.subr.mxu0 %v144
    %2687 = vmatpush1.msra.mxu0 %v143
    %2688 = vmatprep.subr.mxu0 %v140
    %2689 = vmatpush1.msra.mxu0 %v139
    %2690 = vmatprep.subr.mxu0 %v136
    %2691 = vmatpush1.msra.mxu0 %v135
    %2692 = vmatprep.subr.mxu0 %v132
    %2693 = vmatpush1.msra.mxu0 %v131
    %2694 = vmatprep.subr.mxu0 %v128
    %2695 = vmatpush1.msra.mxu0 %v127
    %2696 = vmatprep.subr.mxu0 0.0
    %2697 = vmatpush2.msra.mxu0 0.0
    %2698 = vmatprep.subr.mxu0 0.0
    %2699 = vmatpush2.msra.mxu0 0.0
    %2700 = vmatprep.subr.mxu0 0.0
    %2701 = vmatpush2.msra.mxu0 0.0
    %2702 = vmatprep.subr.mxu0 0.0
    %2703 = vmatpush2.msra.mxu0 0.0
    %2704 = vmatprep.subr.mxu0 0.0
    %2705 = vmatpush2.msra.mxu0 0.0
    %2706 = vmatprep.subr.mxu0 0.0
    %2707 = vmatpush2.msra.mxu0 0.0
    %2708 = vmatprep.subr.mxu0 0.0
    %2709 = vmatpush2.msra.mxu0 0.0
    %2710 = vmatprep.subr.mxu0 0.0
    %2711 = vmatpush2.msra.mxu0 0.0
    %2712 = vmatprep.subr.mxu0 0.0
    %2713 = vmatpush2.msra.mxu0 0.0
    %2714 = vmatprep.subr.mxu0 0.0
    %2715 = vmatpush2.msra.mxu0 0.0
    %2716 = vmatprep.subr.mxu0 0.0
    %2717 = vmatpush2.msra.mxu0 0.0
    %2718 = vmatprep.subr.mxu0 0.0
    %2719 = vmatpush2.msra.mxu0 0.0
    %2720 = vmatprep.subr.mxu0 0.0
    %2721 = vmatpush2.msra.mxu0 0.0
    %2722 = vmatprep.subr.mxu0 0.0
    %2723 = vmatpush2.msra.mxu0 0.0
    %2724 = vmatprep.subr.mxu0 0.0
    %2725 = vmatpush2.msra.mxu0 0.0
    %2726 = vmatprep.subr.mxu0 0.0
    %2727 = vmatpush2.msra.mxu0 0.0
    %2728 = vmatprep.mubr.f32.mxu0 0.0
    %2729 = vmatmul.mubr.f32.gmra.mxu0 %v2592
    %v2730 = vpop.f32.mrf.mxu0
    %v2731 = vadd.f32 %v429, %v2730
    %v2732 = vpop.f32.mrf.mxu0
    %v2733 = vadd.f32 %v433, %v2732
    %2734 = vdwg.mxu0
    %v2735 = vxor.u32 %v2660, 2147483648
    %v2736 = vxor.u32 %v2662, 2147483648
    %v2737 = vxor.u32 %v2731, 2147483648
    %v2738 = vmul.f32 %v2735, 1.442695
    %v2739 = vpow.pop %v2738
    %v2740 = vmul.f32 %v2736, 1.442695
    %v2741 = vpow.pop %v2740
    %v2742 = vmul.f32 %v2737, 1.442695
    %v2743 = vpow.pop %v2742
    %v2744 = vadd.f32 %v2739, 1.0
    %v2745 = vadd.f32 %v2741, 1.0
    %v2746 = vadd.f32 %v2743, 1.0
    %v2747 = vrcp.pop %v2744
    %v2748 = vmul.f32 1.0, %v2747
    %v2749 = vrcp.pop %v2745
    %v2750 = vmul.f32 1.0, %v2749
    %v2751 = vrcp.pop %v2746
    %v2752 = vmul.f32 1.0, %v2751
    %v2753 = vtanh.pop %v2733
    %v2754 = vmul.f32 %v2750, %v2399
    %v2755 = vmul.f32 %v2748, %v2753
    %v2756 = vadd.f32 %v2754, %v2755
    %v2757 = vtanh.pop %v2756
    %v2758 = vmul.f32 %v2752, %v2757
    %v2759 = vmul.f32 %v2758, %v608
    %v2760 = vsel %vm611, %v2759, 0.0
    %2761 = vadd.xlane.f32.xlu0 %v2760
    %v2762 = vpop.xlane.xlu0 %2761
    %v2763 = vadd.f32 %v2762, %v619
    %s2764 = scalar_lea.vmem %s8, 24
    %2765 = vst.msk [vmem:[%s2764] sm:$0xf] %vm622, %v2763
    %s2766 = scalar_lea.vmem %s0, 28
    %v2767 = vld [vmem:[%s2766] sm:$0xf]
    %2769 = vset.pattern.permute.xlu0 0
    %2770 = vperm.xlu0 %2769, %v2767
    %v2771 = vpop.permute.xlu0 %2770
    %v2773 = vmul.f32 %v2771, %v202
    %v2774 = vmul.f32 %v2771, %v206
    %v2775 = vmul.f32 %v2771, %v210
    %v2776 = vmul.f32 %v2771, %v214
    %2777 = vmatprep.subr.mxu0 %v121
    %2778 = vmatpush1.msra.mxu0 %v120
    %2779 = vmatprep.subr.mxu0 %v117
    %2780 = vmatpush1.msra.mxu0 %v116
    %2781 = vmatprep.subr.mxu0 %v113
    %2782 = vmatpush1.msra.mxu0 %v112
    %2783 = vmatprep.subr.mxu0 %v109
    %2784 = vmatpush1.msra.mxu0 %v108
    %2785 = vmatprep.subr.mxu0 %v105
    %2786 = vmatpush1.msra.mxu0 %v104
    %2787 = vmatprep.subr.mxu0 %v101
    %2788 = vmatpush1.msra.mxu0 %v100
    %2789 = vmatprep.subr.mxu0 %v97
    %2790 = vmatpush1.msra.mxu0 %v96
    %2791 = vmatprep.subr.mxu0 %v93
    %2792 = vmatpush1.msra.mxu0 %v92
    %2793 = vmatprep.subr.mxu0 %v89
    %2794 = vmatpush1.msra.mxu0 %v88
    %2795 = vmatprep.subr.mxu0 %v85
    %2796 = vmatpush1.msra.mxu0 %v84
    %2797 = vmatprep.subr.mxu0 %v81
    %2798 = vmatpush1.msra.mxu0 %v80
    %2799 = vmatprep.subr.mxu0 %v77
    %2800 = vmatpush1.msra.mxu0 %v76
    %2801 = vmatprep.subr.mxu0 %v73
    %2802 = vmatpush1.msra.mxu0 %v72
    %2803 = vmatprep.subr.mxu0 %v69
    %2804 = vmatpush1.msra.mxu0 %v68
    %2805 = vmatprep.subr.mxu0 %v65
    %2806 = vmatpush1.msra.mxu0 %v64
    %2807 = vmatprep.subr.mxu0 %v61
    %2808 = vmatpush1.msra.mxu0 %v60
    %2809 = vmatprep.subr.mxu0 0.0
    %2810 = vmatpush2.msra.mxu0 0.0
    %2811 = vmatprep.subr.mxu0 0.0
    %2812 = vmatpush2.msra.mxu0 0.0
    %2813 = vmatprep.subr.mxu0 0.0
    %2814 = vmatpush2.msra.mxu0 0.0
    %2815 = vmatprep.subr.mxu0 0.0
    %2816 = vmatpush2.msra.mxu0 0.0
    %2817 = vmatprep.subr.mxu0 0.0
    %2818 = vmatpush2.msra.mxu0 0.0
    %2819 = vmatprep.subr.mxu0 0.0
    %2820 = vmatpush2.msra.mxu0 0.0
    %2821 = vmatprep.subr.mxu0 0.0
    %2822 = vmatpush2.msra.mxu0 0.0
    %2823 = vmatprep.subr.mxu0 0.0
    %2824 = vmatpush2.msra.mxu0 0.0
    %2825 = vmatprep.subr.mxu0 0.0
    %2826 = vmatpush2.msra.mxu0 0.0
    %2827 = vmatprep.subr.mxu0 0.0
    %2828 = vmatpush2.msra.mxu0 0.0
    %2829 = vmatprep.subr.mxu0 0.0
    %2830 = vmatpush2.msra.mxu0 0.0
    %2831 = vmatprep.subr.mxu0 0.0
    %2832 = vmatpush2.msra.mxu0 0.0
    %2833 = vmatprep.subr.mxu0 0.0
    %2834 = vmatpush2.msra.mxu0 0.0
    %2835 = vmatprep.subr.mxu0 0.0
    %2836 = vmatpush2.msra.mxu0 0.0
    %2837 = vmatprep.subr.mxu0 0.0
    %2838 = vmatpush2.msra.mxu0 0.0
    %2839 = vmatprep.subr.mxu0 0.0
    %2840 = vmatpush2.msra.mxu0 0.0
    %2841 = vmatprep.mubr.f32.mxu0 0.0
    %2842 = vmatmul.mubr.f32.gmra.mxu0 %v2589
    %v2843 = vpop.f32.mrf.mxu0
    %v2844 = vadd.f32 %v2773, %v2843
    %v2845 = vpop.f32.mrf.mxu0
    %v2846 = vadd.f32 %v2774, %v2845
    %2847 = vdwg.mxu0
    %2848 = vmatprep.subr.mxu0 %v123
    %2849 = vmatpush1.msra.mxu0 %v122
    %2850 = vmatprep.subr.mxu0 %v119
    %2851 = vmatpush1.msra.mxu0 %v118
    %2852 = vmatprep.subr.mxu0 %v115
    %2853 = vmatpush1.msra.mxu0 %v114
    %2854 = vmatprep.subr.mxu0 %v111
    %2855 = vmatpush1.msra.mxu0 %v110
    %2856 = vmatprep.subr.mxu0 %v107
    %2857 = vmatpush1.msra.mxu0 %v106
    %2858 = vmatprep.subr.mxu0 %v103
    %2859 = vmatpush1.msra.mxu0 %v102
    %2860 = vmatprep.subr.mxu0 %v99
    %2861 = vmatpush1.msra.mxu0 %v98
    %2862 = vmatprep.subr.mxu0 %v95
    %2863 = vmatpush1.msra.mxu0 %v94
    %2864 = vmatprep.subr.mxu0 %v91
    %2865 = vmatpush1.msra.mxu0 %v90
    %2866 = vmatprep.subr.mxu0 %v87
    %2867 = vmatpush1.msra.mxu0 %v86
    %2868 = vmatprep.subr.mxu0 %v83
    %2869 = vmatpush1.msra.mxu0 %v82
    %2870 = vmatprep.subr.mxu0 %v79
    %2871 = vmatpush1.msra.mxu0 %v78
    %2872 = vmatprep.subr.mxu0 %v75
    %2873 = vmatpush1.msra.mxu0 %v74
    %2874 = vmatprep.subr.mxu0 %v71
    %2875 = vmatpush1.msra.mxu0 %v70
    %2876 = vmatprep.subr.mxu0 %v67
    %2877 = vmatpush1.msra.mxu0 %v66
    %2878 = vmatprep.subr.mxu0 %v63
    %2879 = vmatpush1.msra.mxu0 %v62
    %2880 = vmatprep.subr.mxu0 0.0
    %2881 = vmatpush2.msra.mxu0 0.0
    %2882 = vmatprep.subr.mxu0 0.0
    %2883 = vmatpush2.msra.mxu0 0.0
    %2884 = vmatprep.subr.mxu0 0.0
    %2885 = vmatpush2.msra.mxu0 0.0
    %2886 = vmatprep.subr.mxu0 0.0
    %2887 = vmatpush2.msra.mxu0 0.0
    %2888 = vmatprep.subr.mxu0 0.0
    %2889 = vmatpush2.msra.mxu0 0.0
    %2890 = vmatprep.subr.mxu0 0.0
    %2891 = vmatpush2.msra.mxu0 0.0
    %2892 = vmatprep.subr.mxu0 0.0
    %2893 = vmatpush2.msra.mxu0 0.0
    %2894 = vmatprep.subr.mxu0 0.0
    %2895 = vmatpush2.msra.mxu0 0.0
    %2896 = vmatprep.subr.mxu0 0.0
    %2897 = vmatpush2.msra.mxu0 0.0
    %2898 = vmatprep.subr.mxu0 0.0
    %2899 = vmatpush2.msra.mxu0 0.0
    %2900 = vmatprep.subr.mxu0 0.0
    %2901 = vmatpush2.msra.mxu0 0.0
    %2902 = vmatprep.subr.mxu0 0.0
    %2903 = vmatpush2.msra.mxu0 0.0
    %2904 = vmatprep.subr.mxu0 0.0
    %2905 = vmatpush2.msra.mxu0 0.0
    %2906 = vmatprep.subr.mxu0 0.0
    %2907 = vmatpush2.msra.mxu0 0.0
    %2908 = vmatprep.subr.mxu0 0.0
    %2909 = vmatpush2.msra.mxu0 0.0
    %2910 = vmatprep.subr.mxu0 0.0
    %2911 = vmatpush2.msra.mxu0 0.0
    %2912 = vmatprep.mubr.f32.mxu0 0.0
    %2913 = vmatmul.mubr.f32.gmra.mxu0 %v2589
    %v2914 = vpop.f32.mrf.mxu0
    %v2915 = vadd.f32 %v2775, %v2914
    %v2916 = vpop.f32.mrf.mxu0
    %v2917 = vadd.f32 %v2776, %v2916
    %2918 = vdwg.mxu0
    %v2919 = vadd.f32 %v2844, %v369
    %v2920 = vadd.f32 %v2846, %v373
    %v2921 = vadd.f32 %v2915, %v377
    %v2922 = vadd.f32 %v2917, %v381
    %v2923 = vxor.u32 %v2919, 2147483648
    %v2924 = vxor.u32 %v2920, 2147483648
    %v2925 = vxor.u32 %v2921, 2147483648
    %v2926 = vmul.f32 %v2923, 1.442695
    %v2927 = vpow.pop %v2926
    %v2928 = vmul.f32 %v2924, 1.442695
    %v2929 = vpow.pop %v2928
    %v2930 = vmul.f32 %v2925, 1.442695
    %v2931 = vpow.pop %v2930
    %v2932 = vadd.f32 %v2927, 1.0
    %v2933 = vadd.f32 %v2929, 1.0
    %v2934 = vadd.f32 %v2931, 1.0
    %v2935 = vrcp.pop %v2932
    %v2936 = vmul.f32 1.0, %v2935
    %v2937 = vrcp.pop %v2933
    %v2938 = vmul.f32 1.0, %v2937
    %v2939 = vrcp.pop %v2934
    %v2940 = vmul.f32 1.0, %v2939
    %v2941 = vtanh.pop %v2922
    %v2942 = vmul.f32 %v2938, %v2587
    %v2943 = vmul.f32 %v2936, %v2941
    %v2944 = vadd.f32 %v2942, %v2943
    %v2945 = vtanh.pop %v2944
    %v2946 = vmul.f32 %v2940, %v2945
    %2947 = vrot.lane.b32.xlu0 %v2758, 64
    %v2948 = vpop.permute.xlu0 %2947
    %v2949 = vadd.f32 %v2946, %v2948
    %2950 = vmatprep.subr.mxu0 %v186
    %2951 = vmatpush1.msra.mxu0 %v185
    %2952 = vmatprep.subr.mxu0 %v182
    %2953 = vmatpush1.msra.mxu0 %v181
    %2954 = vmatprep.subr.mxu0 %v178
    %2955 = vmatpush1.msra.mxu0 %v177
    %2956 = vmatprep.subr.mxu0 %v174
    %2957 = vmatpush1.msra.mxu0 %v173
    %2958 = vmatprep.subr.mxu0 %v170
    %2959 = vmatpush1.msra.mxu0 %v169
    %2960 = vmatprep.subr.mxu0 %v166
    %2961 = vmatpush1.msra.mxu0 %v165
    %2962 = vmatprep.subr.mxu0 %v162
    %2963 = vmatpush1.msra.mxu0 %v161
    %2964 = vmatprep.subr.mxu0 %v158
    %2965 = vmatpush1.msra.mxu0 %v157
    %2966 = vmatprep.subr.mxu0 %v154
    %2967 = vmatpush1.msra.mxu0 %v153
    %2968 = vmatprep.subr.mxu0 %v150
    %2969 = vmatpush1.msra.mxu0 %v149
    %2970 = vmatprep.subr.mxu0 %v146
    %2971 = vmatpush1.msra.mxu0 %v145
    %2972 = vmatprep.subr.mxu0 %v142
    %2973 = vmatpush1.msra.mxu0 %v141
    %2974 = vmatprep.subr.mxu0 %v138
    %2975 = vmatpush1.msra.mxu0 %v137
    %2976 = vmatprep.subr.mxu0 %v134
    %2977 = vmatpush1.msra.mxu0 %v133
    %2978 = vmatprep.subr.mxu0 %v130
    %2979 = vmatpush1.msra.mxu0 %v129
    %2980 = vmatprep.subr.mxu0 %v126
    %2981 = vmatpush1.msra.mxu0 %v125
    %2982 = vmatprep.subr.mxu0 0.0
    %2983 = vmatpush2.msra.mxu0 0.0
    %2984 = vmatprep.subr.mxu0 0.0
    %2985 = vmatpush2.msra.mxu0 0.0
    %2986 = vmatprep.subr.mxu0 0.0
    %2987 = vmatpush2.msra.mxu0 0.0
    %2988 = vmatprep.subr.mxu0 0.0
    %2989 = vmatpush2.msra.mxu0 0.0
    %2990 = vmatprep.subr.mxu0 0.0
    %2991 = vmatpush2.msra.mxu0 0.0
    %2992 = vmatprep.subr.mxu0 0.0
    %2993 = vmatpush2.msra.mxu0 0.0
    %2994 = vmatprep.subr.mxu0 0.0
    %2995 = vmatpush2.msra.mxu0 0.0
    %2996 = vmatprep.subr.mxu0 0.0
    %2997 = vmatpush2.msra.mxu0 0.0
    %2998 = vmatprep.subr.mxu0 0.0
    %2999 = vmatpush2.msra.mxu0 0.0
    %3000 = vmatprep.subr.mxu0 0.0
    %3001 = vmatpush2.msra.mxu0 0.0
    %3002 = vmatprep.subr.mxu0 0.0
    %3003 = vmatpush2.msra.mxu0 0.0
    %3004 = vmatprep.subr.mxu0 0.0
    %3005 = vmatpush2.msra.mxu0 0.0
    %3006 = vmatprep.subr.mxu0 0.0
    %3007 = vmatpush2.msra.mxu0 0.0
    %3008 = vmatprep.subr.mxu0 0.0
    %3009 = vmatpush2.msra.mxu0 0.0
    %3010 = vmatprep.subr.mxu0 0.0
    %3011 = vmatpush2.msra.mxu0 0.0
    %3012 = vmatprep.subr.mxu0 0.0
    %3013 = vmatpush2.msra.mxu0 0.0
    %3014 = vmatprep.mubr.f32.mxu0 0.0
    %3015 = vmatmul.mubr.f32.gmra.mxu0 %v2949
    %v3016 = vpop.f32.mrf.mxu0
    %v3017 = vadd.f32 %v421, %v3016
    %v3018 = vpop.f32.mrf.mxu0
    %v3019 = vadd.f32 %v425, %v3018
    %3020 = vdwg.mxu0
    %3021 = vmatprep.subr.mxu0 %v188
    %3022 = vmatpush1.msra.mxu0 %v187
    %3023 = vmatprep.subr.mxu0 %v184
    %3024 = vmatpush1.msra.mxu0 %v183
    %3025 = vmatprep.subr.mxu0 %v180
    %3026 = vmatpush1.msra.mxu0 %v179
    %3027 = vmatprep.subr.mxu0 %v176
    %3028 = vmatpush1.msra.mxu0 %v175
    %3029 = vmatprep.subr.mxu0 %v172
    %3030 = vmatpush1.msra.mxu0 %v171
    %3031 = vmatprep.subr.mxu0 %v168
    %3032 = vmatpush1.msra.mxu0 %v167
    %3033 = vmatprep.subr.mxu0 %v164
    %3034 = vmatpush1.msra.mxu0 %v163
    %3035 = vmatprep.subr.mxu0 %v160
    %3036 = vmatpush1.msra.mxu0 %v159
    %3037 = vmatprep.subr.mxu0 %v156
    %3038 = vmatpush1.msra.mxu0 %v155
    %3039 = vmatprep.subr.mxu0 %v152
    %3040 = vmatpush1.msra.mxu0 %v151
    %3041 = vmatprep.subr.mxu0 %v148
    %3042 = vmatpush1.msra.mxu0 %v147
    %3043 = vmatprep.subr.mxu0 %v144
    %3044 = vmatpush1.msra.mxu0 %v143
    %3045 = vmatprep.subr.mxu0 %v140
    %3046 = vmatpush1.msra.mxu0 %v139
    %3047 = vmatprep.subr.mxu0 %v136
    %3048 = vmatpush1.msra.mxu0 %v135
    %3049 = vmatprep.subr.mxu0 %v132
    %3050 = vmatpush1.msra.mxu0 %v131
    %3051 = vmatprep.subr.mxu0 %v128
    %3052 = vmatpush1.msra.mxu0 %v127
    %3053 = vmatprep.subr.mxu0 0.0
    %3054 = vmatpush2.msra.mxu0 0.0
    %3055 = vmatprep.subr.mxu0 0.0
    %3056 = vmatpush2.msra.mxu0 0.0
    %3057 = vmatprep.subr.mxu0 0.0
    %3058 = vmatpush2.msra.mxu0 0.0
    %3059 = vmatprep.subr.mxu0 0.0
    %3060 = vmatpush2.msra.mxu0 0.0
    %3061 = vmatprep.subr.mxu0 0.0
    %3062 = vmatpush2.msra.mxu0 0.0
    %3063 = vmatprep.subr.mxu0 0.0
    %3064 = vmatpush2.msra.mxu0 0.0
    %3065 = vmatprep.subr.mxu0 0.0
    %3066 = vmatpush2.msra.mxu0 0.0
    %3067 = vmatprep.subr.mxu0 0.0
    %3068 = vmatpush2.msra.mxu0 0.0
    %3069 = vmatprep.subr.mxu0 0.0
    %3070 = vmatpush2.msra.mxu0 0.0
    %3071 = vmatprep.subr.mxu0 0.0
    %3072 = vmatpush2.msra.mxu0 0.0
    %3073 = vmatprep.subr.mxu0 0.0
    %3074 = vmatpush2.msra.mxu0 0.0
    %3075 = vmatprep.subr.mxu0 0.0
    %3076 = vmatpush2.msra.mxu0 0.0
    %3077 = vmatprep.subr.mxu0 0.0
    %3078 = vmatpush2.msra.mxu0 0.0
    %3079 = vmatprep.subr.mxu0 0.0
    %3080 = vmatpush2.msra.mxu0 0.0
    %3081 = vmatprep.subr.mxu0 0.0
    %3082 = vmatpush2.msra.mxu0 0.0
    %3083 = vmatprep.subr.mxu0 0.0
    %3084 = vmatpush2.msra.mxu0 0.0
    %3085 = vmatprep.mubr.f32.mxu0 0.0
    %3086 = vmatmul.mubr.f32.gmra.mxu0 %v2949
    %v3087 = vpop.f32.mrf.mxu0
    %v3088 = vadd.f32 %v429, %v3087
    %v3089 = vpop.f32.mrf.mxu0
    %v3090 = vadd.f32 %v433, %v3089
    %3091 = vdwg.mxu0
    %v3092 = vxor.u32 %v3017, 2147483648
    %v3093 = vxor.u32 %v3019, 2147483648
    %v3094 = vxor.u32 %v3088, 2147483648
    %v3095 = vmul.f32 %v3092, 1.442695
    %v3096 = vpow.pop %v3095
    %v3097 = vmul.f32 %v3093, 1.442695
    %v3098 = vpow.pop %v3097
    %v3099 = vmul.f32 %v3094, 1.442695
    %v3100 = vpow.pop %v3099
    %v3101 = vadd.f32 %v3096, 1.0
    %v3102 = vadd.f32 %v3098, 1.0
    %v3103 = vadd.f32 %v3100, 1.0
    %v3104 = vrcp.pop %v3101
    %v3105 = vmul.f32 1.0, %v3104
    %v3106 = vrcp.pop %v3102
    %v3107 = vmul.f32 1.0, %v3106
    %v3108 = vrcp.pop %v3103
    %v3109 = vmul.f32 1.0, %v3108
    %v3110 = vtanh.pop %v3090
    %v3111 = vmul.f32 %v3107, %v2756
    %v3112 = vmul.f32 %v3105, %v3110
    %v3113 = vadd.f32 %v3111, %v3112
    %v3114 = vtanh.pop %v3113
    %v3115 = vmul.f32 %v3109, %v3114
    %v3116 = vmul.f32 %v3115, %v608
    %v3117 = vsel %vm611, %v3116, 0.0
    %3118 = vadd.xlane.f32.xlu0 %v3117
    %v3119 = vpop.xlane.xlu0 %3118
    %v3120 = vadd.f32 %v3119, %v619
    %s3121 = scalar_lea.vmem %s8, 28
    %3122 = vst.msk [vmem:[%s3121] sm:$0xf] %vm622, %v3120
    %v3123 = vmul.f32 %v3113, %v608
    %v3124 = vsel %vm611, %v3123, 0.0
    %3125 = vadd.xlane.f32.xlu0 %v3124
    %v3126 = vpop.xlane.xlu0 %3125
    %v3127 = vadd.f32 %v3126, %v619
    %3129 = vset.pattern.permute.xlu0 0
    %3130 = vperm.xlu0 %3129, %v3127
    %v3131 = vpop.permute.xlu0 %3130
    %v3133 = vmul.f32 %v3131, %v202
    %v3134 = vmul.f32 %v3131, %v206
    %v3135 = vmul.f32 %v3131, %v210
    %v3136 = vmul.f32 %v3131, %v214
    %3137 = vmatprep.subr.mxu0 %v121
    %3138 = vmatpush1.msra.mxu0 %v120
    %3139 = vmatprep.subr.mxu0 %v117
    %3140 = vmatpush1.msra.mxu0 %v116
    %3141 = vmatprep.subr.mxu0 %v113
    %3142 = vmatpush1.msra.mxu0 %v112
    %3143 = vmatprep.subr.mxu0 %v109
    %3144 = vmatpush1.msra.mxu0 %v108
    %3145 = vmatprep.subr.mxu0 %v105
    %3146 = vmatpush1.msra.mxu0 %v104
    %3147 = vmatprep.subr.mxu0 %v101
    %3148 = vmatpush1.msra.mxu0 %v100
    %3149 = vmatprep.subr.mxu0 %v97
    %3150 = vmatpush1.msra.mxu0 %v96
    %3151 = vmatprep.subr.mxu0 %v93
    %3152 = vmatpush1.msra.mxu0 %v92
    %3153 = vmatprep.subr.mxu0 %v89
    %3154 = vmatpush1.msra.mxu0 %v88
    %3155 = vmatprep.subr.mxu0 %v85
    %3156 = vmatpush1.msra.mxu0 %v84
    %3157 = vmatprep.subr.mxu0 %v81
    %3158 = vmatpush1.msra.mxu0 %v80
    %3159 = vmatprep.subr.mxu0 %v77
    %3160 = vmatpush1.msra.mxu0 %v76
    %3161 = vmatprep.subr.mxu0 %v73
    %3162 = vmatpush1.msra.mxu0 %v72
    %3163 = vmatprep.subr.mxu0 %v69
    %3164 = vmatpush1.msra.mxu0 %v68
    %3165 = vmatprep.subr.mxu0 %v65
    %3166 = vmatpush1.msra.mxu0 %v64
    %3167 = vmatprep.subr.mxu0 %v61
    %3168 = vmatpush1.msra.mxu0 %v60
    %3169 = vmatprep.subr.mxu0 0.0
    %3170 = vmatpush2.msra.mxu0 0.0
    %3171 = vmatprep.subr.mxu0 0.0
    %3172 = vmatpush2.msra.mxu0 0.0
    %3173 = vmatprep.subr.mxu0 0.0
    %3174 = vmatpush2.msra.mxu0 0.0
    %3175 = vmatprep.subr.mxu0 0.0
    %3176 = vmatpush2.msra.mxu0 0.0
    %3177 = vmatprep.subr.mxu0 0.0
    %3178 = vmatpush2.msra.mxu0 0.0
    %3179 = vmatprep.subr.mxu0 0.0
    %3180 = vmatpush2.msra.mxu0 0.0
    %3181 = vmatprep.subr.mxu0 0.0
    %3182 = vmatpush2.msra.mxu0 0.0
    %3183 = vmatprep.subr.mxu0 0.0
    %3184 = vmatpush2.msra.mxu0 0.0
    %3185 = vmatprep.subr.mxu0 0.0
    %3186 = vmatpush2.msra.mxu0 0.0
    %3187 = vmatprep.subr.mxu0 0.0
    %3188 = vmatpush2.msra.mxu0 0.0
    %3189 = vmatprep.subr.mxu0 0.0
    %3190 = vmatpush2.msra.mxu0 0.0
    %3191 = vmatprep.subr.mxu0 0.0
    %3192 = vmatpush2.msra.mxu0 0.0
    %3193 = vmatprep.subr.mxu0 0.0
    %3194 = vmatpush2.msra.mxu0 0.0
    %3195 = vmatprep.subr.mxu0 0.0
    %3196 = vmatpush2.msra.mxu0 0.0
    %3197 = vmatprep.subr.mxu0 0.0
    %3198 = vmatpush2.msra.mxu0 0.0
    %3199 = vmatprep.subr.mxu0 0.0
    %3200 = vmatpush2.msra.mxu0 0.0
    %3201 = vmatprep.mubr.f32.mxu0 0.0
    %3202 = vmatmul.mubr.f32.gmra.mxu0 %v2946
    %v3203 = vpop.f32.mrf.mxu0
    %v3204 = vadd.f32 %v3133, %v3203
    %v3205 = vpop.f32.mrf.mxu0
    %v3206 = vadd.f32 %v3134, %v3205
    %3207 = vdwg.mxu0
    %3208 = vmatprep.subr.mxu0 %v123
    %3209 = vmatpush1.msra.mxu0 %v122
    %3210 = vmatprep.subr.mxu0 %v119
    %3211 = vmatpush1.msra.mxu0 %v118
    %3212 = vmatprep.subr.mxu0 %v115
    %3213 = vmatpush1.msra.mxu0 %v114
    %3214 = vmatprep.subr.mxu0 %v111
    %3215 = vmatpush1.msra.mxu0 %v110
    %3216 = vmatprep.subr.mxu0 %v107
    %3217 = vmatpush1.msra.mxu0 %v106
    %3218 = vmatprep.subr.mxu0 %v103
    %3219 = vmatpush1.msra.mxu0 %v102
    %3220 = vmatprep.subr.mxu0 %v99
    %3221 = vmatpush1.msra.mxu0 %v98
    %3222 = vmatprep.subr.mxu0 %v95
    %3223 = vmatpush1.msra.mxu0 %v94
    %3224 = vmatprep.subr.mxu0 %v91
    %3225 = vmatpush1.msra.mxu0 %v90
    %3226 = vmatprep.subr.mxu0 %v87
    %3227 = vmatpush1.msra.mxu0 %v86
    %3228 = vmatprep.subr.mxu0 %v83
    %3229 = vmatpush1.msra.mxu0 %v82
    %3230 = vmatprep.subr.mxu0 %v79
    %3231 = vmatpush1.msra.mxu0 %v78
    %3232 = vmatprep.subr.mxu0 %v75
    %3233 = vmatpush1.msra.mxu0 %v74
    %3234 = vmatprep.subr.mxu0 %v71
    %3235 = vmatpush1.msra.mxu0 %v70
    %3236 = vmatprep.subr.mxu0 %v67
    %3237 = vmatpush1.msra.mxu0 %v66
    %3238 = vmatprep.subr.mxu0 %v63
    %3239 = vmatpush1.msra.mxu0 %v62
    %3240 = vmatprep.subr.mxu0 0.0
    %3241 = vmatpush2.msra.mxu0 0.0
    %3242 = vmatprep.subr.mxu0 0.0
    %3243 = vmatpush2.msra.mxu0 0.0
    %3244 = vmatprep.subr.mxu0 0.0
    %3245 = vmatpush2.msra.mxu0 0.0
    %3246 = vmatprep.subr.mxu0 0.0
    %3247 = vmatpush2.msra.mxu0 0.0
    %3248 = vmatprep.subr.mxu0 0.0
    %3249 = vmatpush2.msra.mxu0 0.0
    %3250 = vmatprep.subr.mxu0 0.0
    %3251 = vmatpush2.msra.mxu0 0.0
    %3252 = vmatprep.subr.mxu0 0.0
    %3253 = vmatpush2.msra.mxu0 0.0
    %3254 = vmatprep.subr.mxu0 0.0
    %3255 = vmatpush2.msra.mxu0 0.0
    %3256 = vmatprep.subr.mxu0 0.0
    %3257 = vmatpush2.msra.mxu0 0.0
    %3258 = vmatprep.subr.mxu0 0.0
    %3259 = vmatpush2.msra.mxu0 0.0
    %3260 = vmatprep.subr.mxu0 0.0
    %3261 = vmatpush2.msra.mxu0 0.0
    %3262 = vmatprep.subr.mxu0 0.0
    %3263 = vmatpush2.msra.mxu0 0.0
    %3264 = vmatprep.subr.mxu0 0.0
    %3265 = vmatpush2.msra.mxu0 0.0
    %3266 = vmatprep.subr.mxu0 0.0
    %3267 = vmatpush2.msra.mxu0 0.0
    %3268 = vmatprep.subr.mxu0 0.0
    %3269 = vmatpush2.msra.mxu0 0.0
    %3270 = vmatprep.subr.mxu0 0.0
    %3271 = vmatpush2.msra.mxu0 0.0
    %3272 = vmatprep.mubr.f32.mxu0 0.0
    %3273 = vmatmul.mubr.f32.gmra.mxu0 %v2946
    %v3274 = vpop.f32.mrf.mxu0
    %v3275 = vadd.f32 %v3135, %v3274
    %v3276 = vpop.f32.mrf.mxu0
    %v3277 = vadd.f32 %v3136, %v3276
    %3278 = vdwg.mxu0
    %v3279 = vadd.f32 %v3204, %v369
    %v3280 = vadd.f32 %v3206, %v373
    %v3281 = vadd.f32 %v3275, %v377
    %v3282 = vadd.f32 %v3277, %v381
    %v3283 = vxor.u32 %v3279, 2147483648
    %v3284 = vxor.u32 %v3280, 2147483648
    %v3285 = vxor.u32 %v3281, 2147483648
    %v3286 = vmul.f32 %v3283, 1.442695
    %v3287 = vpow.pop %v3286
    %v3288 = vmul.f32 %v3284, 1.442695
    %v3289 = vpow.pop %v3288
    %v3290 = vmul.f32 %v3285, 1.442695
    %v3291 = vpow.pop %v3290
    %v3292 = vadd.f32 %v3287, 1.0
    %v3293 = vadd.f32 %v3289, 1.0
    %v3294 = vadd.f32 %v3291, 1.0
    %v3295 = vrcp.pop %v3292
    %v3296 = vmul.f32 1.0, %v3295
    %v3297 = vrcp.pop %v3293
    %v3298 = vmul.f32 1.0, %v3297
    %v3299 = vrcp.pop %v3294
    %v3300 = vmul.f32 1.0, %v3299
    %v3301 = vtanh.pop %v3282
    %v3302 = vmul.f32 %v3298, %v2944
    %v3303 = vmul.f32 %v3296, %v3301
    %v3304 = vadd.f32 %v3302, %v3303
    %v3305 = vtanh.pop %v3304
    %v3306 = vmul.f32 %v3300, %v3305
    %3307 = vrot.lane.b32.xlu0 %v3115, 64
    %v3308 = vpop.permute.xlu0 %3307
    %v3309 = vadd.f32 %v3306, %v3308
    %3310 = vmatprep.subr.mxu0 %v186
    %3311 = vmatpush1.msra.mxu0 %v185
    %3312 = vmatprep.subr.mxu0 %v182
    %3313 = vmatpush1.msra.mxu0 %v181
    %3314 = vmatprep.subr.mxu0 %v178
    %3315 = vmatpush1.msra.mxu0 %v177
    %3316 = vmatprep.subr.mxu0 %v174
    %3317 = vmatpush1.msra.mxu0 %v173
    %3318 = vmatprep.subr.mxu0 %v170
    %3319 = vmatpush1.msra.mxu0 %v169
    %3320 = vmatprep.subr.mxu0 %v166
    %3321 = vmatpush1.msra.mxu0 %v165
    %3322 = vmatprep.subr.mxu0 %v162
    %3323 = vmatpush1.msra.mxu0 %v161
    %3324 = vmatprep.subr.mxu0 %v158
    %3325 = vmatpush1.msra.mxu0 %v157
    %3326 = vmatprep.subr.mxu0 %v154
    %3327 = vmatpush1.msra.mxu0 %v153
    %3328 = vmatprep.subr.mxu0 %v150
    %3329 = vmatpush1.msra.mxu0 %v149
    %3330 = vmatprep.subr.mxu0 %v146
    %3331 = vmatpush1.msra.mxu0 %v145
    %3332 = vmatprep.subr.mxu0 %v142
    %3333 = vmatpush1.msra.mxu0 %v141
    %3334 = vmatprep.subr.mxu0 %v138
    %3335 = vmatpush1.msra.mxu0 %v137
    %3336 = vmatprep.subr.mxu0 %v134
    %3337 = vmatpush1.msra.mxu0 %v133
    %3338 = vmatprep.subr.mxu0 %v130
    %3339 = vmatpush1.msra.mxu0 %v129
    %3340 = vmatprep.subr.mxu0 %v126
    %3341 = vmatpush1.msra.mxu0 %v125
    %3342 = vmatprep.subr.mxu0 0.0
    %3343 = vmatpush2.msra.mxu0 0.0
    %3344 = vmatprep.subr.mxu0 0.0
    %3345 = vmatpush2.msra.mxu0 0.0
    %3346 = vmatprep.subr.mxu0 0.0
    %3347 = vmatpush2.msra.mxu0 0.0
    %3348 = vmatprep.subr.mxu0 0.0
    %3349 = vmatpush2.msra.mxu0 0.0
    %3350 = vmatprep.subr.mxu0 0.0
    %3351 = vmatpush2.msra.mxu0 0.0
    %3352 = vmatprep.subr.mxu0 0.0
    %3353 = vmatpush2.msra.mxu0 0.0
    %3354 = vmatprep.subr.mxu0 0.0
    %3355 = vmatpush2.msra.mxu0 0.0
    %3356 = vmatprep.subr.mxu0 0.0
    %3357 = vmatpush2.msra.mxu0 0.0
    %3358 = vmatprep.subr.mxu0 0.0
    %3359 = vmatpush2.msra.mxu0 0.0
    %3360 = vmatprep.subr.mxu0 0.0
    %3361 = vmatpush2.msra.mxu0 0.0
    %3362 = vmatprep.subr.mxu0 0.0
    %3363 = vmatpush2.msra.mxu0 0.0
    %3364 = vmatprep.subr.mxu0 0.0
    %3365 = vmatpush2.msra.mxu0 0.0
    %3366 = vmatprep.subr.mxu0 0.0
    %3367 = vmatpush2.msra.mxu0 0.0
    %3368 = vmatprep.subr.mxu0 0.0
    %3369 = vmatpush2.msra.mxu0 0.0
    %3370 = vmatprep.subr.mxu0 0.0
    %3371 = vmatpush2.msra.mxu0 0.0
    %3372 = vmatprep.subr.mxu0 0.0
    %3373 = vmatpush2.msra.mxu0 0.0
    %3374 = vmatprep.mubr.f32.mxu0 0.0
    %3375 = vmatmul.mubr.f32.gmra.mxu0 %v3309
    %v3376 = vpop.f32.mrf.mxu0
    %v3377 = vadd.f32 %v421, %v3376
    %v3378 = vpop.f32.mrf.mxu0
    %v3379 = vadd.f32 %v425, %v3378
    %3380 = vdwg.mxu0
    %3381 = vmatprep.subr.mxu0 %v188
    %3382 = vmatpush1.msra.mxu0 %v187
    %3383 = vmatprep.subr.mxu0 %v184
    %3384 = vmatpush1.msra.mxu0 %v183
    %3385 = vmatprep.subr.mxu0 %v180
    %3386 = vmatpush1.msra.mxu0 %v179
    %3387 = vmatprep.subr.mxu0 %v176
    %3388 = vmatpush1.msra.mxu0 %v175
    %3389 = vmatprep.subr.mxu0 %v172
    %3390 = vmatpush1.msra.mxu0 %v171
    %3391 = vmatprep.subr.mxu0 %v168
    %3392 = vmatpush1.msra.mxu0 %v167
    %3393 = vmatprep.subr.mxu0 %v164
    %3394 = vmatpush1.msra.mxu0 %v163
    %3395 = vmatprep.subr.mxu0 %v160
    %3396 = vmatpush1.msra.mxu0 %v159
    %3397 = vmatprep.subr.mxu0 %v156
    %3398 = vmatpush1.msra.mxu0 %v155
    %3399 = vmatprep.subr.mxu0 %v152
    %3400 = vmatpush1.msra.mxu0 %v151
    %3401 = vmatprep.subr.mxu0 %v148
    %3402 = vmatpush1.msra.mxu0 %v147
    %3403 = vmatprep.subr.mxu0 %v144
    %3404 = vmatpush1.msra.mxu0 %v143
    %3405 = vmatprep.subr.mxu0 %v140
    %3406 = vmatpush1.msra.mxu0 %v139
    %3407 = vmatprep.subr.mxu0 %v136
    %3408 = vmatpush1.msra.mxu0 %v135
    %3409 = vmatprep.subr.mxu0 %v132
    %3410 = vmatpush1.msra.mxu0 %v131
    %3411 = vmatprep.subr.mxu0 %v128
    %3412 = vmatpush1.msra.mxu0 %v127
    %3413 = vmatprep.subr.mxu0 0.0
    %3414 = vmatpush2.msra.mxu0 0.0
    %3415 = vmatprep.subr.mxu0 0.0
    %3416 = vmatpush2.msra.mxu0 0.0
    %3417 = vmatprep.subr.mxu0 0.0
    %3418 = vmatpush2.msra.mxu0 0.0
    %3419 = vmatprep.subr.mxu0 0.0
    %3420 = vmatpush2.msra.mxu0 0.0
    %3421 = vmatprep.subr.mxu0 0.0
    %3422 = vmatpush2.msra.mxu0 0.0
    %3423 = vmatprep.subr.mxu0 0.0
    %3424 = vmatpush2.msra.mxu0 0.0
    %3425 = vmatprep.subr.mxu0 0.0
    %3426 = vmatpush2.msra.mxu0 0.0
    %3427 = vmatprep.subr.mxu0 0.0
    %3428 = vmatpush2.msra.mxu0 0.0
    %3429 = vmatprep.subr.mxu0 0.0
    %3430 = vmatpush2.msra.mxu0 0.0
    %3431 = vmatprep.subr.mxu0 0.0
    %3432 = vmatpush2.msra.mxu0 0.0
    %3433 = vmatprep.subr.mxu0 0.0
    %3434 = vmatpush2.msra.mxu0 0.0
    %3435 = vmatprep.subr.mxu0 0.0
    %3436 = vmatpush2.msra.mxu0 0.0
    %3437 = vmatprep.subr.mxu0 0.0
    %3438 = vmatpush2.msra.mxu0 0.0
    %3439 = vmatprep.subr.mxu0 0.0
    %3440 = vmatpush2.msra.mxu0 0.0
    %3441 = vmatprep.subr.mxu0 0.0
    %3442 = vmatpush2.msra.mxu0 0.0
    %3443 = vmatprep.subr.mxu0 0.0
    %3444 = vmatpush2.msra.mxu0 0.0
    %3445 = vmatprep.mubr.f32.mxu0 0.0
    %3446 = vmatmul.mubr.f32.gmra.mxu0 %v3309
    %v3447 = vpop.f32.mrf.mxu0
    %v3448 = vadd.f32 %v429, %v3447
    %v3449 = vpop.f32.mrf.mxu0
    %v3450 = vadd.f32 %v433, %v3449
    %3451 = vdwg.mxu0
    %v3452 = vxor.u32 %v3377, 2147483648
    %v3453 = vxor.u32 %v3379, 2147483648
    %v3454 = vxor.u32 %v3448, 2147483648
    %v3455 = vmul.f32 %v3452, 1.442695
    %v3456 = vpow.pop %v3455
    %v3457 = vmul.f32 %v3453, 1.442695
    %v3458 = vpow.pop %v3457
    %v3459 = vmul.f32 %v3454, 1.442695
    %v3460 = vpow.pop %v3459
    %v3461 = vadd.f32 %v3456, 1.0
    %v3462 = vadd.f32 %v3458, 1.0
    %v3463 = vadd.f32 %v3460, 1.0
    %v3464 = vrcp.pop %v3461
    %v3465 = vmul.f32 1.0, %v3464
    %v3466 = vrcp.pop %v3462
    %v3467 = vmul.f32 1.0, %v3466
    %v3468 = vrcp.pop %v3463
    %v3469 = vmul.f32 1.0, %v3468
    %v3470 = vtanh.pop %v3450
    %v3471 = vmul.f32 %v3467, %v3113
    %v3472 = vmul.f32 %v3465, %v3470
    %v3473 = vadd.f32 %v3471, %v3472
    %v3474 = vtanh.pop %v3473
    %v3475 = vmul.f32 %v3469, %v3474
    %v3476 = vmul.f32 %v3475, %v608
    %v3477 = vsel %vm611, %v3476, 0.0
    %3478 = vadd.xlane.f32.xlu0 %v3477
    %v3479 = vpop.xlane.xlu0 %3478
    %v3480 = vadd.f32 %v3479, %v619
    %s3481 = scalar_lea.vmem %s8, 32
    %3482 = vst.msk [vmem:[%s3481] sm:$0xf] %vm622, %v3480
    %3484 = vset.pattern.permute.xlu0 0
    %3485 = vperm.xlu0 %3484, %v3480
    %v3486 = vpop.permute.xlu0 %3485
    %v3488 = vmul.f32 %v3486, %v202
    %v3489 = vmul.f32 %v3486, %v206
    %v3490 = vmul.f32 %v3486, %v210
    %v3491 = vmul.f32 %v3486, %v214
    %3492 = vmatprep.subr.mxu0 %v121
    %3493 = vmatpush1.msra.mxu0 %v120
    %3494 = vmatprep.subr.mxu0 %v117
    %3495 = vmatpush1.msra.mxu0 %v116
    %3496 = vmatprep.subr.mxu0 %v113
    %3497 = vmatpush1.msra.mxu0 %v112
    %3498 = vmatprep.subr.mxu0 %v109
    %3499 = vmatpush1.msra.mxu0 %v108
    %3500 = vmatprep.subr.mxu0 %v105
    %3501 = vmatpush1.msra.mxu0 %v104
    %3502 = vmatprep.subr.mxu0 %v101
    %3503 = vmatpush1.msra.mxu0 %v100
    %3504 = vmatprep.subr.mxu0 %v97
    %3505 = vmatpush1.msra.mxu0 %v96
    %3506 = vmatprep.subr.mxu0 %v93
    %3507 = vmatpush1.msra.mxu0 %v92
    %3508 = vmatprep.subr.mxu0 %v89
    %3509 = vmatpush1.msra.mxu0 %v88
    %3510 = vmatprep.subr.mxu0 %v85
    %3511 = vmatpush1.msra.mxu0 %v84
    %3512 = vmatprep.subr.mxu0 %v81
    %3513 = vmatpush1.msra.mxu0 %v80
    %3514 = vmatprep.subr.mxu0 %v77
    %3515 = vmatpush1.msra.mxu0 %v76
    %3516 = vmatprep.subr.mxu0 %v73
    %3517 = vmatpush1.msra.mxu0 %v72
    %3518 = vmatprep.subr.mxu0 %v69
    %3519 = vmatpush1.msra.mxu0 %v68
    %3520 = vmatprep.subr.mxu0 %v65
    %3521 = vmatpush1.msra.mxu0 %v64
    %3522 = vmatprep.subr.mxu0 %v61
    %3523 = vmatpush1.msra.mxu0 %v60
    %3524 = vmatprep.subr.mxu0 0.0
    %3525 = vmatpush2.msra.mxu0 0.0
    %3526 = vmatprep.subr.mxu0 0.0
    %3527 = vmatpush2.msra.mxu0 0.0
    %3528 = vmatprep.subr.mxu0 0.0
    %3529 = vmatpush2.msra.mxu0 0.0
    %3530 = vmatprep.subr.mxu0 0.0
    %3531 = vmatpush2.msra.mxu0 0.0
    %3532 = vmatprep.subr.mxu0 0.0
    %3533 = vmatpush2.msra.mxu0 0.0
    %3534 = vmatprep.subr.mxu0 0.0
    %3535 = vmatpush2.msra.mxu0 0.0
    %3536 = vmatprep.subr.mxu0 0.0
    %3537 = vmatpush2.msra.mxu0 0.0
    %3538 = vmatprep.subr.mxu0 0.0
    %3539 = vmatpush2.msra.mxu0 0.0
    %3540 = vmatprep.subr.mxu0 0.0
    %3541 = vmatpush2.msra.mxu0 0.0
    %3542 = vmatprep.subr.mxu0 0.0
    %3543 = vmatpush2.msra.mxu0 0.0
    %3544 = vmatprep.subr.mxu0 0.0
    %3545 = vmatpush2.msra.mxu0 0.0
    %3546 = vmatprep.subr.mxu0 0.0
    %3547 = vmatpush2.msra.mxu0 0.0
    %3548 = vmatprep.subr.mxu0 0.0
    %3549 = vmatpush2.msra.mxu0 0.0
    %3550 = vmatprep.subr.mxu0 0.0
    %3551 = vmatpush2.msra.mxu0 0.0
    %3552 = vmatprep.subr.mxu0 0.0
    %3553 = vmatpush2.msra.mxu0 0.0
    %3554 = vmatprep.subr.mxu0 0.0
    %3555 = vmatpush2.msra.mxu0 0.0
    %3556 = vmatprep.mubr.f32.mxu0 0.0
    %3557 = vmatmul.mubr.f32.gmra.mxu0 %v3306
    %v3558 = vpop.f32.mrf.mxu0
    %v3559 = vadd.f32 %v3488, %v3558
    %v3560 = vpop.f32.mrf.mxu0
    %v3561 = vadd.f32 %v3489, %v3560
    %3562 = vdwg.mxu0
    %3563 = vmatprep.subr.mxu0 %v123
    %3564 = vmatpush1.msra.mxu0 %v122
    %3565 = vmatprep.subr.mxu0 %v119
    %3566 = vmatpush1.msra.mxu0 %v118
    %3567 = vmatprep.subr.mxu0 %v115
    %3568 = vmatpush1.msra.mxu0 %v114
    %3569 = vmatprep.subr.mxu0 %v111
    %3570 = vmatpush1.msra.mxu0 %v110
    %3571 = vmatprep.subr.mxu0 %v107
    %3572 = vmatpush1.msra.mxu0 %v106
    %3573 = vmatprep.subr.mxu0 %v103
    %3574 = vmatpush1.msra.mxu0 %v102
    %3575 = vmatprep.subr.mxu0 %v99
    %3576 = vmatpush1.msra.mxu0 %v98
    %3577 = vmatprep.subr.mxu0 %v95
    %3578 = vmatpush1.msra.mxu0 %v94
    %3579 = vmatprep.subr.mxu0 %v91
    %3580 = vmatpush1.msra.mxu0 %v90
    %3581 = vmatprep.subr.mxu0 %v87
    %3582 = vmatpush1.msra.mxu0 %v86
    %3583 = vmatprep.subr.mxu0 %v83
    %3584 = vmatpush1.msra.mxu0 %v82
    %3585 = vmatprep.subr.mxu0 %v79
    %3586 = vmatpush1.msra.mxu0 %v78
    %3587 = vmatprep.subr.mxu0 %v75
    %3588 = vmatpush1.msra.mxu0 %v74
    %3589 = vmatprep.subr.mxu0 %v71
    %3590 = vmatpush1.msra.mxu0 %v70
    %3591 = vmatprep.subr.mxu0 %v67
    %3592 = vmatpush1.msra.mxu0 %v66
    %3593 = vmatprep.subr.mxu0 %v63
    %3594 = vmatpush1.msra.mxu0 %v62
    %3595 = vmatprep.subr.mxu0 0.0
    %3596 = vmatpush2.msra.mxu0 0.0
    %3597 = vmatprep.subr.mxu0 0.0
    %3598 = vmatpush2.msra.mxu0 0.0
    %3599 = vmatprep.subr.mxu0 0.0
    %3600 = vmatpush2.msra.mxu0 0.0
    %3601 = vmatprep.subr.mxu0 0.0
    %3602 = vmatpush2.msra.mxu0 0.0
    %3603 = vmatprep.subr.mxu0 0.0
    %3604 = vmatpush2.msra.mxu0 0.0
    %3605 = vmatprep.subr.mxu0 0.0
    %3606 = vmatpush2.msra.mxu0 0.0
    %3607 = vmatprep.subr.mxu0 0.0
    %3608 = vmatpush2.msra.mxu0 0.0
    %3609 = vmatprep.subr.mxu0 0.0
    %3610 = vmatpush2.msra.mxu0 0.0
    %3611 = vmatprep.subr.mxu0 0.0
    %3612 = vmatpush2.msra.mxu0 0.0
    %3613 = vmatprep.subr.mxu0 0.0
    %3614 = vmatpush2.msra.mxu0 0.0
    %3615 = vmatprep.subr.mxu0 0.0
    %3616 = vmatpush2.msra.mxu0 0.0
    %3617 = vmatprep.subr.mxu0 0.0
    %3618 = vmatpush2.msra.mxu0 0.0
    %3619 = vmatprep.subr.mxu0 0.0
    %3620 = vmatpush2.msra.mxu0 0.0
    %3621 = vmatprep.subr.mxu0 0.0
    %3622 = vmatpush2.msra.mxu0 0.0
    %3623 = vmatprep.subr.mxu0 0.0
    %3624 = vmatpush2.msra.mxu0 0.0
    %3625 = vmatprep.subr.mxu0 0.0
    %3626 = vmatpush2.msra.mxu0 0.0
    %3627 = vmatprep.mubr.f32.mxu0 0.0
    %3628 = vmatmul.mubr.f32.gmra.mxu0 %v3306
    %v3629 = vpop.f32.mrf.mxu0
    %v3630 = vadd.f32 %v3490, %v3629
    %v3631 = vpop.f32.mrf.mxu0
    %v3632 = vadd.f32 %v3491, %v3631
    %3633 = vdwg.mxu0
    %v3634 = vadd.f32 %v3559, %v369
    %v3635 = vadd.f32 %v3561, %v373
    %v3636 = vadd.f32 %v3630, %v377
    %v3637 = vadd.f32 %v3632, %v381
    %v3638 = vxor.u32 %v3634, 2147483648
    %v3639 = vxor.u32 %v3635, 2147483648
    %v3640 = vxor.u32 %v3636, 2147483648
    %v3641 = vmul.f32 %v3638, 1.442695
    %v3642 = vpow.pop %v3641
    %v3643 = vmul.f32 %v3639, 1.442695
    %v3644 = vpow.pop %v3643
    %v3645 = vmul.f32 %v3640, 1.442695
    %v3646 = vpow.pop %v3645
    %v3647 = vadd.f32 %v3642, 1.0
    %v3648 = vadd.f32 %v3644, 1.0
    %v3649 = vadd.f32 %v3646, 1.0
    %v3650 = vrcp.pop %v3647
    %v3651 = vmul.f32 1.0, %v3650
    %v3652 = vrcp.pop %v3648
    %v3653 = vmul.f32 1.0, %v3652
    %v3654 = vrcp.pop %v3649
    %v3655 = vmul.f32 1.0, %v3654
    %v3656 = vtanh.pop %v3637
    %v3657 = vmul.f32 %v3653, %v3304
    %v3658 = vmul.f32 %v3651, %v3656
    %v3659 = vadd.f32 %v3657, %v3658
    %v3660 = vtanh.pop %v3659
    %v3661 = vmul.f32 %v3655, %v3660
    %3662 = vrot.lane.b32.xlu0 %v3475, 64
    %v3663 = vpop.permute.xlu0 %3662
    %v3664 = vadd.f32 %v3661, %v3663
    %3665 = vmatprep.subr.mxu0 %v186
    %3666 = vmatpush1.msra.mxu0 %v185
    %3667 = vmatprep.subr.mxu0 %v182
    %3668 = vmatpush1.msra.mxu0 %v181
    %3669 = vmatprep.subr.mxu0 %v178
    %3670 = vmatpush1.msra.mxu0 %v177
    %3671 = vmatprep.subr.mxu0 %v174
    %3672 = vmatpush1.msra.mxu0 %v173
    %3673 = vmatprep.subr.mxu0 %v170
    %3674 = vmatpush1.msra.mxu0 %v169
    %3675 = vmatprep.subr.mxu0 %v166
    %3676 = vmatpush1.msra.mxu0 %v165
    %3677 = vmatprep.subr.mxu0 %v162
    %3678 = vmatpush1.msra.mxu0 %v161
    %3679 = vmatprep.subr.mxu0 %v158
    %3680 = vmatpush1.msra.mxu0 %v157
    %3681 = vmatprep.subr.mxu0 %v154
    %3682 = vmatpush1.msra.mxu0 %v153
    %3683 = vmatprep.subr.mxu0 %v150
    %3684 = vmatpush1.msra.mxu0 %v149
    %3685 = vmatprep.subr.mxu0 %v146
    %3686 = vmatpush1.msra.mxu0 %v145
    %3687 = vmatprep.subr.mxu0 %v142
    %3688 = vmatpush1.msra.mxu0 %v141
    %3689 = vmatprep.subr.mxu0 %v138
    %3690 = vmatpush1.msra.mxu0 %v137
    %3691 = vmatprep.subr.mxu0 %v134
    %3692 = vmatpush1.msra.mxu0 %v133
    %3693 = vmatprep.subr.mxu0 %v130
    %3694 = vmatpush1.msra.mxu0 %v129
    %3695 = vmatprep.subr.mxu0 %v126
    %3696 = vmatpush1.msra.mxu0 %v125
    %3697 = vmatprep.subr.mxu0 0.0
    %3698 = vmatpush2.msra.mxu0 0.0
    %3699 = vmatprep.subr.mxu0 0.0
    %3700 = vmatpush2.msra.mxu0 0.0
    %3701 = vmatprep.subr.mxu0 0.0
    %3702 = vmatpush2.msra.mxu0 0.0
    %3703 = vmatprep.subr.mxu0 0.0
    %3704 = vmatpush2.msra.mxu0 0.0
    %3705 = vmatprep.subr.mxu0 0.0
    %3706 = vmatpush2.msra.mxu0 0.0
    %3707 = vmatprep.subr.mxu0 0.0
    %3708 = vmatpush2.msra.mxu0 0.0
    %3709 = vmatprep.subr.mxu0 0.0
    %3710 = vmatpush2.msra.mxu0 0.0
    %3711 = vmatprep.subr.mxu0 0.0
    %3712 = vmatpush2.msra.mxu0 0.0
    %3713 = vmatprep.subr.mxu0 0.0
    %3714 = vmatpush2.msra.mxu0 0.0
    %3715 = vmatprep.subr.mxu0 0.0
    %3716 = vmatpush2.msra.mxu0 0.0
    %3717 = vmatprep.subr.mxu0 0.0
    %3718 = vmatpush2.msra.mxu0 0.0
    %3719 = vmatprep.subr.mxu0 0.0
    %3720 = vmatpush2.msra.mxu0 0.0
    %3721 = vmatprep.subr.mxu0 0.0
    %3722 = vmatpush2.msra.mxu0 0.0
    %3723 = vmatprep.subr.mxu0 0.0
    %3724 = vmatpush2.msra.mxu0 0.0
    %3725 = vmatprep.subr.mxu0 0.0
    %3726 = vmatpush2.msra.mxu0 0.0
    %3727 = vmatprep.subr.mxu0 0.0
    %3728 = vmatpush2.msra.mxu0 0.0
    %3729 = vmatprep.mubr.f32.mxu0 0.0
    %3730 = vmatmul.mubr.f32.gmra.mxu0 %v3664
    %v3731 = vpop.f32.mrf.mxu0
    %v3732 = vadd.f32 %v421, %v3731
    %v3733 = vpop.f32.mrf.mxu0
    %v3734 = vadd.f32 %v425, %v3733
    %3735 = vdwg.mxu0
    %3736 = vmatprep.subr.mxu0 %v188
    %3737 = vmatpush1.msra.mxu0 %v187
    %3738 = vmatprep.subr.mxu0 %v184
    %3739 = vmatpush1.msra.mxu0 %v183
    %3740 = vmatprep.subr.mxu0 %v180
    %3741 = vmatpush1.msra.mxu0 %v179
    %3742 = vmatprep.subr.mxu0 %v176
    %3743 = vmatpush1.msra.mxu0 %v175
    %3744 = vmatprep.subr.mxu0 %v172
    %3745 = vmatpush1.msra.mxu0 %v171
    %3746 = vmatprep.subr.mxu0 %v168
    %3747 = vmatpush1.msra.mxu0 %v167
    %3748 = vmatprep.subr.mxu0 %v164
    %3749 = vmatpush1.msra.mxu0 %v163
    %3750 = vmatprep.subr.mxu0 %v160
    %3751 = vmatpush1.msra.mxu0 %v159
    %3752 = vmatprep.subr.mxu0 %v156
    %3753 = vmatpush1.msra.mxu0 %v155
    %3754 = vmatprep.subr.mxu0 %v152
    %3755 = vmatpush1.msra.mxu0 %v151
    %3756 = vmatprep.subr.mxu0 %v148
    %3757 = vmatpush1.msra.mxu0 %v147
    %3758 = vmatprep.subr.mxu0 %v144
    %3759 = vmatpush1.msra.mxu0 %v143
    %3760 = vmatprep.subr.mxu0 %v140
    %3761 = vmatpush1.msra.mxu0 %v139
    %3762 = vmatprep.subr.mxu0 %v136
    %3763 = vmatpush1.msra.mxu0 %v135
    %3764 = vmatprep.subr.mxu0 %v132
    %3765 = vmatpush1.msra.mxu0 %v131
    %3766 = vmatprep.subr.mxu0 %v128
    %3767 = vmatpush1.msra.mxu0 %v127
    %3768 = vmatprep.subr.mxu0 0.0
    %3769 = vmatpush2.msra.mxu0 0.0
    %3770 = vmatprep.subr.mxu0 0.0
    %3771 = vmatpush2.msra.mxu0 0.0
    %3772 = vmatprep.subr.mxu0 0.0
    %3773 = vmatpush2.msra.mxu0 0.0
    %3774 = vmatprep.subr.mxu0 0.0
    %3775 = vmatpush2.msra.mxu0 0.0
    %3776 = vmatprep.subr.mxu0 0.0
    %3777 = vmatpush2.msra.mxu0 0.0
    %3778 = vmatprep.subr.mxu0 0.0
    %3779 = vmatpush2.msra.mxu0 0.0
    %3780 = vmatprep.subr.mxu0 0.0
    %3781 = vmatpush2.msra.mxu0 0.0
    %3782 = vmatprep.subr.mxu0 0.0
    %3783 = vmatpush2.msra.mxu0 0.0
    %3784 = vmatprep.subr.mxu0 0.0
    %3785 = vmatpush2.msra.mxu0 0.0
    %3786 = vmatprep.subr.mxu0 0.0
    %3787 = vmatpush2.msra.mxu0 0.0
    %3788 = vmatprep.subr.mxu0 0.0
    %3789 = vmatpush2.msra.mxu0 0.0
    %3790 = vmatprep.subr.mxu0 0.0
    %3791 = vmatpush2.msra.mxu0 0.0
    %3792 = vmatprep.subr.mxu0 0.0
    %3793 = vmatpush2.msra.mxu0 0.0
    %3794 = vmatprep.subr.mxu0 0.0
    %3795 = vmatpush2.msra.mxu0 0.0
    %3796 = vmatprep.subr.mxu0 0.0
    %3797 = vmatpush2.msra.mxu0 0.0
    %3798 = vmatprep.subr.mxu0 0.0
    %3799 = vmatpush2.msra.mxu0 0.0
    %3800 = vmatprep.mubr.f32.mxu0 0.0
    %3801 = vmatmul.mubr.f32.gmra.mxu0 %v3664
    %v3802 = vpop.f32.mrf.mxu0
    %v3803 = vadd.f32 %v429, %v3802
    %v3804 = vpop.f32.mrf.mxu0
    %v3805 = vadd.f32 %v433, %v3804
    %3806 = vdwg.mxu0
    %v3807 = vxor.u32 %v3732, 2147483648
    %v3808 = vxor.u32 %v3734, 2147483648
    %v3809 = vxor.u32 %v3803, 2147483648
    %v3810 = vmul.f32 %v3807, 1.442695
    %v3811 = vpow.pop %v3810
    %v3812 = vmul.f32 %v3808, 1.442695
    %v3813 = vpow.pop %v3812
    %v3814 = vmul.f32 %v3809, 1.442695
    %v3815 = vpow.pop %v3814
    %v3816 = vadd.f32 %v3811, 1.0
    %v3817 = vadd.f32 %v3813, 1.0
    %v3818 = vadd.f32 %v3815, 1.0
    %v3819 = vrcp.pop %v3816
    %v3820 = vmul.f32 1.0, %v3819
    %v3821 = vrcp.pop %v3817
    %v3822 = vmul.f32 1.0, %v3821
    %v3823 = vrcp.pop %v3818
    %v3824 = vmul.f32 1.0, %v3823
    %v3825 = vtanh.pop %v3805
    %v3826 = vmul.f32 %v3822, %v3473
    %v3827 = vmul.f32 %v3820, %v3825
    %v3828 = vadd.f32 %v3826, %v3827
    %v3829 = vtanh.pop %v3828
    %v3830 = vmul.f32 %v3824, %v3829
    %v3831 = vmul.f32 %v3830, %v608
    %v3832 = vsel %vm611, %v3831, 0.0
    %3833 = vadd.xlane.f32.xlu0 %v3832
    %v3834 = vpop.xlane.xlu0 %3833
    %v3835 = vadd.f32 %v3834, %v619
    %s3836 = scalar_lea.vmem %s8, 36
    %3837 = vst.msk [vmem:[%s3836] sm:$0xf] %vm622, %v3835
    %3839 = vset.pattern.permute.xlu0 0
    %3840 = vperm.xlu0 %3839, %v3835
    %v3841 = vpop.permute.xlu0 %3840
    %v3843 = vmul.f32 %v3841, %v202
    %v3844 = vmul.f32 %v3841, %v206
    %v3845 = vmul.f32 %v3841, %v210
    %v3846 = vmul.f32 %v3841, %v214
    %3847 = vmatprep.subr.mxu0 %v121
    %3848 = vmatpush1.msra.mxu0 %v120
    %3849 = vmatprep.subr.mxu0 %v117
    %3850 = vmatpush1.msra.mxu0 %v116
    %3851 = vmatprep.subr.mxu0 %v113
    %3852 = vmatpush1.msra.mxu0 %v112
    %3853 = vmatprep.subr.mxu0 %v109
    %3854 = vmatpush1.msra.mxu0 %v108
    %3855 = vmatprep.subr.mxu0 %v105
    %3856 = vmatpush1.msra.mxu0 %v104
    %3857 = vmatprep.subr.mxu0 %v101
    %3858 = vmatpush1.msra.mxu0 %v100
    %3859 = vmatprep.subr.mxu0 %v97
    %3860 = vmatpush1.msra.mxu0 %v96
    %3861 = vmatprep.subr.mxu0 %v93
    %3862 = vmatpush1.msra.mxu0 %v92
    %3863 = vmatprep.subr.mxu0 %v89
    %3864 = vmatpush1.msra.mxu0 %v88
    %3865 = vmatprep.subr.mxu0 %v85
    %3866 = vmatpush1.msra.mxu0 %v84
    %3867 = vmatprep.subr.mxu0 %v81
    %3868 = vmatpush1.msra.mxu0 %v80
    %3869 = vmatprep.subr.mxu0 %v77
    %3870 = vmatpush1.msra.mxu0 %v76
    %3871 = vmatprep.subr.mxu0 %v73
    %3872 = vmatpush1.msra.mxu0 %v72
    %3873 = vmatprep.subr.mxu0 %v69
    %3874 = vmatpush1.msra.mxu0 %v68
    %3875 = vmatprep.subr.mxu0 %v65
    %3876 = vmatpush1.msra.mxu0 %v64
    %3877 = vmatprep.subr.mxu0 %v61
    %3878 = vmatpush1.msra.mxu0 %v60
    %3879 = vmatprep.subr.mxu0 0.0
    %3880 = vmatpush2.msra.mxu0 0.0
    %3881 = vmatprep.subr.mxu0 0.0
    %3882 = vmatpush2.msra.mxu0 0.0
    %3883 = vmatprep.subr.mxu0 0.0
    %3884 = vmatpush2.msra.mxu0 0.0
    %3885 = vmatprep.subr.mxu0 0.0
    %3886 = vmatpush2.msra.mxu0 0.0
    %3887 = vmatprep.subr.mxu0 0.0
    %3888 = vmatpush2.msra.mxu0 0.0
    %3889 = vmatprep.subr.mxu0 0.0
    %3890 = vmatpush2.msra.mxu0 0.0
    %3891 = vmatprep.subr.mxu0 0.0
    %3892 = vmatpush2.msra.mxu0 0.0
    %3893 = vmatprep.subr.mxu0 0.0
    %3894 = vmatpush2.msra.mxu0 0.0
    %3895 = vmatprep.subr.mxu0 0.0
    %3896 = vmatpush2.msra.mxu0 0.0
    %3897 = vmatprep.subr.mxu0 0.0
    %3898 = vmatpush2.msra.mxu0 0.0
    %3899 = vmatprep.subr.mxu0 0.0
    %3900 = vmatpush2.msra.mxu0 0.0
    %3901 = vmatprep.subr.mxu0 0.0
    %3902 = vmatpush2.msra.mxu0 0.0
    %3903 = vmatprep.subr.mxu0 0.0
    %3904 = vmatpush2.msra.mxu0 0.0
    %3905 = vmatprep.subr.mxu0 0.0
    %3906 = vmatpush2.msra.mxu0 0.0
    %3907 = vmatprep.subr.mxu0 0.0
    %3908 = vmatpush2.msra.mxu0 0.0
    %3909 = vmatprep.subr.mxu0 0.0
    %3910 = vmatpush2.msra.mxu0 0.0
    %3911 = vmatprep.mubr.f32.mxu0 0.0
    %3912 = vmatmul.mubr.f32.gmra.mxu0 %v3661
    %v3913 = vpop.f32.mrf.mxu0
    %v3914 = vadd.f32 %v3843, %v3913
    %v3915 = vpop.f32.mrf.mxu0
    %v3916 = vadd.f32 %v3844, %v3915
    %3917 = vdwg.mxu0
    %3918 = vmatprep.subr.mxu0 %v123
    %3919 = vmatpush1.msra.mxu0 %v122
    %3920 = vmatprep.subr.mxu0 %v119
    %3921 = vmatpush1.msra.mxu0 %v118
    %3922 = vmatprep.subr.mxu0 %v115
    %3923 = vmatpush1.msra.mxu0 %v114
    %3924 = vmatprep.subr.mxu0 %v111
    %3925 = vmatpush1.msra.mxu0 %v110
    %3926 = vmatprep.subr.mxu0 %v107
    %3927 = vmatpush1.msra.mxu0 %v106
    %3928 = vmatprep.subr.mxu0 %v103
    %3929 = vmatpush1.msra.mxu0 %v102
    %3930 = vmatprep.subr.mxu0 %v99
    %3931 = vmatpush1.msra.mxu0 %v98
    %3932 = vmatprep.subr.mxu0 %v95
    %3933 = vmatpush1.msra.mxu0 %v94
    %3934 = vmatprep.subr.mxu0 %v91
    %3935 = vmatpush1.msra.mxu0 %v90
    %3936 = vmatprep.subr.mxu0 %v87
    %3937 = vmatpush1.msra.mxu0 %v86
    %3938 = vmatprep.subr.mxu0 %v83
    %3939 = vmatpush1.msra.mxu0 %v82
    %3940 = vmatprep.subr.mxu0 %v79
    %3941 = vmatpush1.msra.mxu0 %v78
    %3942 = vmatprep.subr.mxu0 %v75
    %3943 = vmatpush1.msra.mxu0 %v74
    %3944 = vmatprep.subr.mxu0 %v71
    %3945 = vmatpush1.msra.mxu0 %v70
    %3946 = vmatprep.subr.mxu0 %v67
    %3947 = vmatpush1.msra.mxu0 %v66
    %3948 = vmatprep.subr.mxu0 %v63
    %3949 = vmatpush1.msra.mxu0 %v62
    %3950 = vmatprep.subr.mxu0 0.0
    %3951 = vmatpush2.msra.mxu0 0.0
    %3952 = vmatprep.subr.mxu0 0.0
    %3953 = vmatpush2.msra.mxu0 0.0
    %3954 = vmatprep.subr.mxu0 0.0
    %3955 = vmatpush2.msra.mxu0 0.0
    %3956 = vmatprep.subr.mxu0 0.0
    %3957 = vmatpush2.msra.mxu0 0.0
    %3958 = vmatprep.subr.mxu0 0.0
    %3959 = vmatpush2.msra.mxu0 0.0
    %3960 = vmatprep.subr.mxu0 0.0
    %3961 = vmatpush2.msra.mxu0 0.0
    %3962 = vmatprep.subr.mxu0 0.0
    %3963 = vmatpush2.msra.mxu0 0.0
    %3964 = vmatprep.subr.mxu0 0.0
    %3965 = vmatpush2.msra.mxu0 0.0
    %3966 = vmatprep.subr.mxu0 0.0
    %3967 = vmatpush2.msra.mxu0 0.0
    %3968 = vmatprep.subr.mxu0 0.0
    %3969 = vmatpush2.msra.mxu0 0.0
    %3970 = vmatprep.subr.mxu0 0.0
    %3971 = vmatpush2.msra.mxu0 0.0
    %3972 = vmatprep.subr.mxu0 0.0
    %3973 = vmatpush2.msra.mxu0 0.0
    %3974 = vmatprep.subr.mxu0 0.0
    %3975 = vmatpush2.msra.mxu0 0.0
    %3976 = vmatprep.subr.mxu0 0.0
    %3977 = vmatpush2.msra.mxu0 0.0
    %3978 = vmatprep.subr.mxu0 0.0
    %3979 = vmatpush2.msra.mxu0 0.0
    %3980 = vmatprep.subr.mxu0 0.0
    %3981 = vmatpush2.msra.mxu0 0.0
    %3982 = vmatprep.mubr.f32.mxu0 0.0
    %3983 = vmatmul.mubr.f32.gmra.mxu0 %v3661
    %v3984 = vpop.f32.mrf.mxu0
    %v3985 = vadd.f32 %v3845, %v3984
    %v3986 = vpop.f32.mrf.mxu0
    %v3987 = vadd.f32 %v3846, %v3986
    %3988 = vdwg.mxu0
    %v3989 = vadd.f32 %v3914, %v369
    %v3990 = vadd.f32 %v3916, %v373
    %v3991 = vadd.f32 %v3985, %v377
    %v3992 = vadd.f32 %v3987, %v381
    %v3993 = vxor.u32 %v3989, 2147483648
    %v3994 = vxor.u32 %v3990, 2147483648
    %v3995 = vxor.u32 %v3991, 2147483648
    %v3996 = vmul.f32 %v3993, 1.442695
    %v3997 = vpow.pop %v3996
    %v3998 = vmul.f32 %v3994, 1.442695
    %v3999 = vpow.pop %v3998
    %v4000 = vmul.f32 %v3995, 1.442695
    %v4001 = vpow.pop %v4000
    %v4002 = vadd.f32 %v3997, 1.0
    %v4003 = vadd.f32 %v3999, 1.0
    %v4004 = vadd.f32 %v4001, 1.0
    %v4005 = vrcp.pop %v4002
    %v4006 = vmul.f32 1.0, %v4005
    %v4007 = vrcp.pop %v4003
    %v4008 = vmul.f32 1.0, %v4007
    %v4009 = vrcp.pop %v4004
    %v4010 = vmul.f32 1.0, %v4009
    %v4011 = vtanh.pop %v3992
    %v4012 = vmul.f32 %v4008, %v3659
    %v4013 = vmul.f32 %v4006, %v4011
    %v4014 = vadd.f32 %v4012, %v4013
    %v4015 = vtanh.pop %v4014
    %v4016 = vmul.f32 %v4010, %v4015
    %4017 = vrot.lane.b32.xlu0 %v3830, 64
    %v4018 = vpop.permute.xlu0 %4017
    %v4019 = vadd.f32 %v4016, %v4018
    %4020 = vmatprep.subr.mxu0 %v186
    %4021 = vmatpush1.msra.mxu0 %v185
    %4022 = vmatprep.subr.mxu0 %v182
    %4023 = vmatpush1.msra.mxu0 %v181
    %4024 = vmatprep.subr.mxu0 %v178
    %4025 = vmatpush1.msra.mxu0 %v177
    %4026 = vmatprep.subr.mxu0 %v174
    %4027 = vmatpush1.msra.mxu0 %v173
    %4028 = vmatprep.subr.mxu0 %v170
    %4029 = vmatpush1.msra.mxu0 %v169
    %4030 = vmatprep.subr.mxu0 %v166
    %4031 = vmatpush1.msra.mxu0 %v165
    %4032 = vmatprep.subr.mxu0 %v162
    %4033 = vmatpush1.msra.mxu0 %v161
    %4034 = vmatprep.subr.mxu0 %v158
    %4035 = vmatpush1.msra.mxu0 %v157
    %4036 = vmatprep.subr.mxu0 %v154
    %4037 = vmatpush1.msra.mxu0 %v153
    %4038 = vmatprep.subr.mxu0 %v150
    %4039 = vmatpush1.msra.mxu0 %v149
    %4040 = vmatprep.subr.mxu0 %v146
    %4041 = vmatpush1.msra.mxu0 %v145
    %4042 = vmatprep.subr.mxu0 %v142
    %4043 = vmatpush1.msra.mxu0 %v141
    %4044 = vmatprep.subr.mxu0 %v138
    %4045 = vmatpush1.msra.mxu0 %v137
    %4046 = vmatprep.subr.mxu0 %v134
    %4047 = vmatpush1.msra.mxu0 %v133
    %4048 = vmatprep.subr.mxu0 %v130
    %4049 = vmatpush1.msra.mxu0 %v129
    %4050 = vmatprep.subr.mxu0 %v126
    %4051 = vmatpush1.msra.mxu0 %v125
    %4052 = vmatprep.subr.mxu0 0.0
    %4053 = vmatpush2.msra.mxu0 0.0
    %4054 = vmatprep.subr.mxu0 0.0
    %4055 = vmatpush2.msra.mxu0 0.0
    %4056 = vmatprep.subr.mxu0 0.0
    %4057 = vmatpush2.msra.mxu0 0.0
    %4058 = vmatprep.subr.mxu0 0.0
    %4059 = vmatpush2.msra.mxu0 0.0
    %4060 = vmatprep.subr.mxu0 0.0
    %4061 = vmatpush2.msra.mxu0 0.0
    %4062 = vmatprep.subr.mxu0 0.0
    %4063 = vmatpush2.msra.mxu0 0.0
    %4064 = vmatprep.subr.mxu0 0.0
    %4065 = vmatpush2.msra.mxu0 0.0
    %4066 = vmatprep.subr.mxu0 0.0
    %4067 = vmatpush2.msra.mxu0 0.0
    %4068 = vmatprep.subr.mxu0 0.0
    %4069 = vmatpush2.msra.mxu0 0.0
    %4070 = vmatprep.subr.mxu0 0.0
    %4071 = vmatpush2.msra.mxu0 0.0
    %4072 = vmatprep.subr.mxu0 0.0
    %4073 = vmatpush2.msra.mxu0 0.0
    %4074 = vmatprep.subr.mxu0 0.0
    %4075 = vmatpush2.msra.mxu0 0.0
    %4076 = vmatprep.subr.mxu0 0.0
    %4077 = vmatpush2.msra.mxu0 0.0
    %4078 = vmatprep.subr.mxu0 0.0
    %4079 = vmatpush2.msra.mxu0 0.0
    %4080 = vmatprep.subr.mxu0 0.0
    %4081 = vmatpush2.msra.mxu0 0.0
    %4082 = vmatprep.subr.mxu0 0.0
    %4083 = vmatpush2.msra.mxu0 0.0
    %4084 = vmatprep.mubr.f32.mxu0 0.0
    %4085 = vmatmul.mubr.f32.gmra.mxu0 %v4019
    %v4086 = vpop.f32.mrf.mxu0
    %v4087 = vadd.f32 %v421, %v4086
    %v4088 = vpop.f32.mrf.mxu0
    %v4089 = vadd.f32 %v425, %v4088
    %4090 = vdwg.mxu0
    %4091 = vmatprep.subr.mxu0 %v188
    %4092 = vmatpush1.msra.mxu0 %v187
    %4093 = vmatprep.subr.mxu0 %v184
    %4094 = vmatpush1.msra.mxu0 %v183
    %4095 = vmatprep.subr.mxu0 %v180
    %4096 = vmatpush1.msra.mxu0 %v179
    %4097 = vmatprep.subr.mxu0 %v176
    %4098 = vmatpush1.msra.mxu0 %v175
    %4099 = vmatprep.subr.mxu0 %v172
    %4100 = vmatpush1.msra.mxu0 %v171
    %4101 = vmatprep.subr.mxu0 %v168
    %4102 = vmatpush1.msra.mxu0 %v167
    %4103 = vmatprep.subr.mxu0 %v164
    %4104 = vmatpush1.msra.mxu0 %v163
    %4105 = vmatprep.subr.mxu0 %v160
    %4106 = vmatpush1.msra.mxu0 %v159
    %4107 = vmatprep.subr.mxu0 %v156
    %4108 = vmatpush1.msra.mxu0 %v155
    %4109 = vmatprep.subr.mxu0 %v152
    %4110 = vmatpush1.msra.mxu0 %v151
    %4111 = vmatprep.subr.mxu0 %v148
    %4112 = vmatpush1.msra.mxu0 %v147
    %4113 = vmatprep.subr.mxu0 %v144
    %4114 = vmatpush1.msra.mxu0 %v143
    %4115 = vmatprep.subr.mxu0 %v140
    %4116 = vmatpush1.msra.mxu0 %v139
    %4117 = vmatprep.subr.mxu0 %v136
    %4118 = vmatpush1.msra.mxu0 %v135
    %4119 = vmatprep.subr.mxu0 %v132
    %4120 = vmatpush1.msra.mxu0 %v131
    %4121 = vmatprep.subr.mxu0 %v128
    %4122 = vmatpush1.msra.mxu0 %v127
    %4123 = vmatprep.subr.mxu0 0.0
    %4124 = vmatpush2.msra.mxu0 0.0
    %4125 = vmatprep.subr.mxu0 0.0
    %4126 = vmatpush2.msra.mxu0 0.0
    %4127 = vmatprep.subr.mxu0 0.0
    %4128 = vmatpush2.msra.mxu0 0.0
    %4129 = vmatprep.subr.mxu0 0.0
    %4130 = vmatpush2.msra.mxu0 0.0
    %4131 = vmatprep.subr.mxu0 0.0
    %4132 = vmatpush2.msra.mxu0 0.0
    %4133 = vmatprep.subr.mxu0 0.0
    %4134 = vmatpush2.msra.mxu0 0.0
    %4135 = vmatprep.subr.mxu0 0.0
    %4136 = vmatpush2.msra.mxu0 0.0
    %4137 = vmatprep.subr.mxu0 0.0
    %4138 = vmatpush2.msra.mxu0 0.0
    %4139 = vmatprep.subr.mxu0 0.0
    %4140 = vmatpush2.msra.mxu0 0.0
    %4141 = vmatprep.subr.mxu0 0.0
    %4142 = vmatpush2.msra.mxu0 0.0
    %4143 = vmatprep.subr.mxu0 0.0
    %4144 = vmatpush2.msra.mxu0 0.0
    %4145 = vmatprep.subr.mxu0 0.0
    %4146 = vmatpush2.msra.mxu0 0.0
    %4147 = vmatprep.subr.mxu0 0.0
    %4148 = vmatpush2.msra.mxu0 0.0
    %4149 = vmatprep.subr.mxu0 0.0
    %4150 = vmatpush2.msra.mxu0 0.0
    %4151 = vmatprep.subr.mxu0 0.0
    %4152 = vmatpush2.msra.mxu0 0.0
    %4153 = vmatprep.subr.mxu0 0.0
    %4154 = vmatpush2.msra.mxu0 0.0
    %4155 = vmatprep.mubr.f32.mxu0 0.0
    %4156 = vmatmul.mubr.f32.gmra.mxu0 %v4019
    %v4157 = vpop.f32.mrf.mxu0
    %v4158 = vadd.f32 %v429, %v4157
    %v4159 = vpop.f32.mrf.mxu0
    %v4160 = vadd.f32 %v433, %v4159
    %4161 = vdwg.mxu0
    %v4162 = vxor.u32 %v4087, 2147483648
    %v4163 = vxor.u32 %v4089, 2147483648
    %v4164 = vxor.u32 %v4158, 2147483648
    %v4165 = vmul.f32 %v4162, 1.442695
    %v4166 = vpow.pop %v4165
    %v4167 = vmul.f32 %v4163, 1.442695
    %v4168 = vpow.pop %v4167
    %v4169 = vmul.f32 %v4164, 1.442695
    %v4170 = vpow.pop %v4169
    %v4171 = vadd.f32 %v4166, 1.0
    %v4172 = vadd.f32 %v4168, 1.0
    %v4173 = vadd.f32 %v4170, 1.0
    %v4174 = vrcp.pop %v4171
    %v4175 = vmul.f32 1.0, %v4174
    %v4176 = vrcp.pop %v4172
    %v4177 = vmul.f32 1.0, %v4176
    %v4178 = vrcp.pop %v4173
    %v4179 = vmul.f32 1.0, %v4178
    %v4180 = vtanh.pop %v4160
    %v4181 = vmul.f32 %v4177, %v3828
    %v4182 = vmul.f32 %v4175, %v4180
    %v4183 = vadd.f32 %v4181, %v4182
    %v4184 = vtanh.pop %v4183
    %v4185 = vmul.f32 %v4179, %v4184
    %v4186 = vmul.f32 %v4185, %v608
    %v4187 = vsel %vm611, %v4186, 0.0
    %4188 = vadd.xlane.f32.xlu0 %v4187
    %v4189 = vpop.xlane.xlu0 %4188
    %v4190 = vadd.f32 %v4189, %v619
    %s4191 = scalar_lea.vmem %s8, 40
    %4192 = vst.msk [vmem:[%s4191] sm:$0xf] %vm622, %v4190
    %4194 = vset.pattern.permute.xlu0 0
    %4195 = vperm.xlu0 %4194, %v4190
    %v4196 = vpop.permute.xlu0 %4195
    %v4198 = vmul.f32 %v4196, %v202
    %v4199 = vmul.f32 %v4196, %v206
    %v4200 = vmul.f32 %v4196, %v210
    %v4201 = vmul.f32 %v4196, %v214
    %4202 = vmatprep.subr.mxu0 %v121
    %4203 = vmatpush1.msra.mxu0 %v120
    %4204 = vmatprep.subr.mxu0 %v117
    %4205 = vmatpush1.msra.mxu0 %v116
    %4206 = vmatprep.subr.mxu0 %v113
    %4207 = vmatpush1.msra.mxu0 %v112
    %4208 = vmatprep.subr.mxu0 %v109
    %4209 = vmatpush1.msra.mxu0 %v108
    %4210 = vmatprep.subr.mxu0 %v105
    %4211 = vmatpush1.msra.mxu0 %v104
    %4212 = vmatprep.subr.mxu0 %v101
    %4213 = vmatpush1.msra.mxu0 %v100
    %4214 = vmatprep.subr.mxu0 %v97
    %4215 = vmatpush1.msra.mxu0 %v96
    %4216 = vmatprep.subr.mxu0 %v93
    %4217 = vmatpush1.msra.mxu0 %v92
    %4218 = vmatprep.subr.mxu0 %v89
    %4219 = vmatpush1.msra.mxu0 %v88
    %4220 = vmatprep.subr.mxu0 %v85
    %4221 = vmatpush1.msra.mxu0 %v84
    %4222 = vmatprep.subr.mxu0 %v81
    %4223 = vmatpush1.msra.mxu0 %v80
    %4224 = vmatprep.subr.mxu0 %v77
    %4225 = vmatpush1.msra.mxu0 %v76
    %4226 = vmatprep.subr.mxu0 %v73
    %4227 = vmatpush1.msra.mxu0 %v72
    %4228 = vmatprep.subr.mxu0 %v69
    %4229 = vmatpush1.msra.mxu0 %v68
    %4230 = vmatprep.subr.mxu0 %v65
    %4231 = vmatpush1.msra.mxu0 %v64
    %4232 = vmatprep.subr.mxu0 %v61
    %4233 = vmatpush1.msra.mxu0 %v60
    %4234 = vmatprep.subr.mxu0 0.0
    %4235 = vmatpush2.msra.mxu0 0.0
    %4236 = vmatprep.subr.mxu0 0.0
    %4237 = vmatpush2.msra.mxu0 0.0
    %4238 = vmatprep.subr.mxu0 0.0
    %4239 = vmatpush2.msra.mxu0 0.0
    %4240 = vmatprep.subr.mxu0 0.0
    %4241 = vmatpush2.msra.mxu0 0.0
    %4242 = vmatprep.subr.mxu0 0.0
    %4243 = vmatpush2.msra.mxu0 0.0
    %4244 = vmatprep.subr.mxu0 0.0
    %4245 = vmatpush2.msra.mxu0 0.0
    %4246 = vmatprep.subr.mxu0 0.0
    %4247 = vmatpush2.msra.mxu0 0.0
    %4248 = vmatprep.subr.mxu0 0.0
    %4249 = vmatpush2.msra.mxu0 0.0
    %4250 = vmatprep.subr.mxu0 0.0
    %4251 = vmatpush2.msra.mxu0 0.0
    %4252 = vmatprep.subr.mxu0 0.0
    %4253 = vmatpush2.msra.mxu0 0.0
    %4254 = vmatprep.subr.mxu0 0.0
    %4255 = vmatpush2.msra.mxu0 0.0
    %4256 = vmatprep.subr.mxu0 0.0
    %4257 = vmatpush2.msra.mxu0 0.0
    %4258 = vmatprep.subr.mxu0 0.0
    %4259 = vmatpush2.msra.mxu0 0.0
    %4260 = vmatprep.subr.mxu0 0.0
    %4261 = vmatpush2.msra.mxu0 0.0
    %4262 = vmatprep.subr.mxu0 0.0
    %4263 = vmatpush2.msra.mxu0 0.0
    %4264 = vmatprep.subr.mxu0 0.0
    %4265 = vmatpush2.msra.mxu0 0.0
    %4266 = vmatprep.mubr.f32.mxu0 0.0
    %4267 = vmatmul.mubr.f32.gmra.mxu0 %v4016
    %v4268 = vpop.f32.mrf.mxu0
    %v4269 = vadd.f32 %v4198, %v4268
    %v4270 = vpop.f32.mrf.mxu0
    %v4271 = vadd.f32 %v4199, %v4270
    %4272 = vdwg.mxu0
    %4273 = vmatprep.subr.mxu0 %v123
    %4274 = vmatpush1.msra.mxu0 %v122
    %4275 = vmatprep.subr.mxu0 %v119
    %4276 = vmatpush1.msra.mxu0 %v118
    %4277 = vmatprep.subr.mxu0 %v115
    %4278 = vmatpush1.msra.mxu0 %v114
    %4279 = vmatprep.subr.mxu0 %v111
    %4280 = vmatpush1.msra.mxu0 %v110
    %4281 = vmatprep.subr.mxu0 %v107
    %4282 = vmatpush1.msra.mxu0 %v106
    %4283 = vmatprep.subr.mxu0 %v103
    %4284 = vmatpush1.msra.mxu0 %v102
    %4285 = vmatprep.subr.mxu0 %v99
    %4286 = vmatpush1.msra.mxu0 %v98
    %4287 = vmatprep.subr.mxu0 %v95
    %4288 = vmatpush1.msra.mxu0 %v94
    %4289 = vmatprep.subr.mxu0 %v91
    %4290 = vmatpush1.msra.mxu0 %v90
    %4291 = vmatprep.subr.mxu0 %v87
    %4292 = vmatpush1.msra.mxu0 %v86
    %4293 = vmatprep.subr.mxu0 %v83
    %4294 = vmatpush1.msra.mxu0 %v82
    %4295 = vmatprep.subr.mxu0 %v79
    %4296 = vmatpush1.msra.mxu0 %v78
    %4297 = vmatprep.subr.mxu0 %v75
    %4298 = vmatpush1.msra.mxu0 %v74
    %4299 = vmatprep.subr.mxu0 %v71
    %4300 = vmatpush1.msra.mxu0 %v70
    %4301 = vmatprep.subr.mxu0 %v67
    %4302 = vmatpush1.msra.mxu0 %v66
    %4303 = vmatprep.subr.mxu0 %v63
    %4304 = vmatpush1.msra.mxu0 %v62
    %4305 = vmatprep.subr.mxu0 0.0
    %4306 = vmatpush2.msra.mxu0 0.0
    %4307 = vmatprep.subr.mxu0 0.0
    %4308 = vmatpush2.msra.mxu0 0.0
    %4309 = vmatprep.subr.mxu0 0.0
    %4310 = vmatpush2.msra.mxu0 0.0
    %4311 = vmatprep.subr.mxu0 0.0
    %4312 = vmatpush2.msra.mxu0 0.0
    %4313 = vmatprep.subr.mxu0 0.0
    %4314 = vmatpush2.msra.mxu0 0.0
    %4315 = vmatprep.subr.mxu0 0.0
    %4316 = vmatpush2.msra.mxu0 0.0
    %4317 = vmatprep.subr.mxu0 0.0
    %4318 = vmatpush2.msra.mxu0 0.0
    %4319 = vmatprep.subr.mxu0 0.0
    %4320 = vmatpush2.msra.mxu0 0.0
    %4321 = vmatprep.subr.mxu0 0.0
    %4322 = vmatpush2.msra.mxu0 0.0
    %4323 = vmatprep.subr.mxu0 0.0
    %4324 = vmatpush2.msra.mxu0 0.0
    %4325 = vmatprep.subr.mxu0 0.0
    %4326 = vmatpush2.msra.mxu0 0.0
    %4327 = vmatprep.subr.mxu0 0.0
    %4328 = vmatpush2.msra.mxu0 0.0
    %4329 = vmatprep.subr.mxu0 0.0
    %4330 = vmatpush2.msra.mxu0 0.0
    %4331 = vmatprep.subr.mxu0 0.0
    %4332 = vmatpush2.msra.mxu0 0.0
    %4333 = vmatprep.subr.mxu0 0.0
    %4334 = vmatpush2.msra.mxu0 0.0
    %4335 = vmatprep.subr.mxu0 0.0
    %4336 = vmatpush2.msra.mxu0 0.0
    %4337 = vmatprep.mubr.f32.mxu0 0.0
    %4338 = vmatmul.mubr.f32.gmra.mxu0 %v4016
    %v4339 = vpop.f32.mrf.mxu0
    %v4340 = vadd.f32 %v4200, %v4339
    %v4341 = vpop.f32.mrf.mxu0
    %v4342 = vadd.f32 %v4201, %v4341
    %4343 = vdwg.mxu0
    %v4344 = vadd.f32 %v4269, %v369
    %v4345 = vadd.f32 %v4271, %v373
    %v4346 = vadd.f32 %v4340, %v377
    %v4347 = vadd.f32 %v4342, %v381
    %v4348 = vxor.u32 %v4344, 2147483648
    %v4349 = vxor.u32 %v4345, 2147483648
    %v4350 = vxor.u32 %v4346, 2147483648
    %v4351 = vmul.f32 %v4348, 1.442695
    %v4352 = vpow.pop %v4351
    %v4353 = vmul.f32 %v4349, 1.442695
    %v4354 = vpow.pop %v4353
    %v4355 = vmul.f32 %v4350, 1.442695
    %v4356 = vpow.pop %v4355
    %v4357 = vadd.f32 %v4352, 1.0
    %v4358 = vadd.f32 %v4354, 1.0
    %v4359 = vadd.f32 %v4356, 1.0
    %v4360 = vrcp.pop %v4357
    %v4361 = vmul.f32 1.0, %v4360
    %v4362 = vrcp.pop %v4358
    %v4363 = vmul.f32 1.0, %v4362
    %v4364 = vrcp.pop %v4359
    %v4365 = vmul.f32 1.0, %v4364
    %v4366 = vtanh.pop %v4347
    %v4367 = vmul.f32 %v4363, %v4014
    %v4368 = vmul.f32 %v4361, %v4366
    %v4369 = vadd.f32 %v4367, %v4368
    %v4370 = vtanh.pop %v4369
    %v4371 = vmul.f32 %v4365, %v4370
    %4372 = vrot.lane.b32.xlu0 %v4185, 64
    %v4373 = vpop.permute.xlu0 %4372
    %v4374 = vadd.f32 %v4371, %v4373
    %4375 = vmatprep.subr.mxu0 %v186
    %4376 = vmatpush1.msra.mxu0 %v185
    %4377 = vmatprep.subr.mxu0 %v182
    %4378 = vmatpush1.msra.mxu0 %v181
    %4379 = vmatprep.subr.mxu0 %v178
    %4380 = vmatpush1.msra.mxu0 %v177
    %4381 = vmatprep.subr.mxu0 %v174
    %4382 = vmatpush1.msra.mxu0 %v173
    %4383 = vmatprep.subr.mxu0 %v170
    %4384 = vmatpush1.msra.mxu0 %v169
    %4385 = vmatprep.subr.mxu0 %v166
    %4386 = vmatpush1.msra.mxu0 %v165
    %4387 = vmatprep.subr.mxu0 %v162
    %4388 = vmatpush1.msra.mxu0 %v161
    %4389 = vmatprep.subr.mxu0 %v158
    %4390 = vmatpush1.msra.mxu0 %v157
    %4391 = vmatprep.subr.mxu0 %v154
    %4392 = vmatpush1.msra.mxu0 %v153
    %4393 = vmatprep.subr.mxu0 %v150
    %4394 = vmatpush1.msra.mxu0 %v149
    %4395 = vmatprep.subr.mxu0 %v146
    %4396 = vmatpush1.msra.mxu0 %v145
    %4397 = vmatprep.subr.mxu0 %v142
    %4398 = vmatpush1.msra.mxu0 %v141
    %4399 = vmatprep.subr.mxu0 %v138
    %4400 = vmatpush1.msra.mxu0 %v137
    %4401 = vmatprep.subr.mxu0 %v134
    %4402 = vmatpush1.msra.mxu0 %v133
    %4403 = vmatprep.subr.mxu0 %v130
    %4404 = vmatpush1.msra.mxu0 %v129
    %4405 = vmatprep.subr.mxu0 %v126
    %4406 = vmatpush1.msra.mxu0 %v125
    %4407 = vmatprep.subr.mxu0 0.0
    %4408 = vmatpush2.msra.mxu0 0.0
    %4409 = vmatprep.subr.mxu0 0.0
    %4410 = vmatpush2.msra.mxu0 0.0
    %4411 = vmatprep.subr.mxu0 0.0
    %4412 = vmatpush2.msra.mxu0 0.0
    %4413 = vmatprep.subr.mxu0 0.0
    %4414 = vmatpush2.msra.mxu0 0.0
    %4415 = vmatprep.subr.mxu0 0.0
    %4416 = vmatpush2.msra.mxu0 0.0
    %4417 = vmatprep.subr.mxu0 0.0
    %4418 = vmatpush2.msra.mxu0 0.0
    %4419 = vmatprep.subr.mxu0 0.0
    %4420 = vmatpush2.msra.mxu0 0.0
    %4421 = vmatprep.subr.mxu0 0.0
    %4422 = vmatpush2.msra.mxu0 0.0
    %4423 = vmatprep.subr.mxu0 0.0
    %4424 = vmatpush2.msra.mxu0 0.0
    %4425 = vmatprep.subr.mxu0 0.0
    %4426 = vmatpush2.msra.mxu0 0.0
    %4427 = vmatprep.subr.mxu0 0.0
    %4428 = vmatpush2.msra.mxu0 0.0
    %4429 = vmatprep.subr.mxu0 0.0
    %4430 = vmatpush2.msra.mxu0 0.0
    %4431 = vmatprep.subr.mxu0 0.0
    %4432 = vmatpush2.msra.mxu0 0.0
    %4433 = vmatprep.subr.mxu0 0.0
    %4434 = vmatpush2.msra.mxu0 0.0
    %4435 = vmatprep.subr.mxu0 0.0
    %4436 = vmatpush2.msra.mxu0 0.0
    %4437 = vmatprep.subr.mxu0 0.0
    %4438 = vmatpush2.msra.mxu0 0.0
    %4439 = vmatprep.mubr.f32.mxu0 0.0
    %4440 = vmatmul.mubr.f32.gmra.mxu0 %v4374
    %v4441 = vpop.f32.mrf.mxu0
    %v4442 = vadd.f32 %v421, %v4441
    %v4443 = vpop.f32.mrf.mxu0
    %v4444 = vadd.f32 %v425, %v4443
    %4445 = vdwg.mxu0
    %4446 = vmatprep.subr.mxu0 %v188
    %4447 = vmatpush1.msra.mxu0 %v187
    %4448 = vmatprep.subr.mxu0 %v184
    %4449 = vmatpush1.msra.mxu0 %v183
    %4450 = vmatprep.subr.mxu0 %v180
    %4451 = vmatpush1.msra.mxu0 %v179
    %4452 = vmatprep.subr.mxu0 %v176
    %4453 = vmatpush1.msra.mxu0 %v175
    %4454 = vmatprep.subr.mxu0 %v172
    %4455 = vmatpush1.msra.mxu0 %v171
    %4456 = vmatprep.subr.mxu0 %v168
    %4457 = vmatpush1.msra.mxu0 %v167
    %4458 = vmatprep.subr.mxu0 %v164
    %4459 = vmatpush1.msra.mxu0 %v163
    %4460 = vmatprep.subr.mxu0 %v160
    %4461 = vmatpush1.msra.mxu0 %v159
    %4462 = vmatprep.subr.mxu0 %v156
    %4463 = vmatpush1.msra.mxu0 %v155
    %4464 = vmatprep.subr.mxu0 %v152
    %4465 = vmatpush1.msra.mxu0 %v151
    %4466 = vmatprep.subr.mxu0 %v148
    %4467 = vmatpush1.msra.mxu0 %v147
    %4468 = vmatprep.subr.mxu0 %v144
    %4469 = vmatpush1.msra.mxu0 %v143
    %4470 = vmatprep.subr.mxu0 %v140
    %4471 = vmatpush1.msra.mxu0 %v139
    %4472 = vmatprep.subr.mxu0 %v136
    %4473 = vmatpush1.msra.mxu0 %v135
    %4474 = vmatprep.subr.mxu0 %v132
    %4475 = vmatpush1.msra.mxu0 %v131
    %4476 = vmatprep.subr.mxu0 %v128
    %4477 = vmatpush1.msra.mxu0 %v127
    %4478 = vmatprep.subr.mxu0 0.0
    %4479 = vmatpush2.msra.mxu0 0.0
    %4480 = vmatprep.subr.mxu0 0.0
    %4481 = vmatpush2.msra.mxu0 0.0
    %4482 = vmatprep.subr.mxu0 0.0
    %4483 = vmatpush2.msra.mxu0 0.0
    %4484 = vmatprep.subr.mxu0 0.0
    %4485 = vmatpush2.msra.mxu0 0.0
    %4486 = vmatprep.subr.mxu0 0.0
    %4487 = vmatpush2.msra.mxu0 0.0
    %4488 = vmatprep.subr.mxu0 0.0
    %4489 = vmatpush2.msra.mxu0 0.0
    %4490 = vmatprep.subr.mxu0 0.0
    %4491 = vmatpush2.msra.mxu0 0.0
    %4492 = vmatprep.subr.mxu0 0.0
    %4493 = vmatpush2.msra.mxu0 0.0
    %4494 = vmatprep.subr.mxu0 0.0
    %4495 = vmatpush2.msra.mxu0 0.0
    %4496 = vmatprep.subr.mxu0 0.0
    %4497 = vmatpush2.msra.mxu0 0.0
    %4498 = vmatprep.subr.mxu0 0.0
    %4499 = vmatpush2.msra.mxu0 0.0
    %4500 = vmatprep.subr.mxu0 0.0
    %4501 = vmatpush2.msra.mxu0 0.0
    %4502 = vmatprep.subr.mxu0 0.0
    %4503 = vmatpush2.msra.mxu0 0.0
    %4504 = vmatprep.subr.mxu0 0.0
    %4505 = vmatpush2.msra.mxu0 0.0
    %4506 = vmatprep.subr.mxu0 0.0
    %4507 = vmatpush2.msra.mxu0 0.0
    %4508 = vmatprep.subr.mxu0 0.0
    %4509 = vmatpush2.msra.mxu0 0.0
    %4510 = vmatprep.mubr.f32.mxu0 0.0
    %4511 = vmatmul.mubr.f32.gmra.mxu0 %v4374
    %v4512 = vpop.f32.mrf.mxu0
    %v4513 = vadd.f32 %v429, %v4512
    %v4514 = vpop.f32.mrf.mxu0
    %v4515 = vadd.f32 %v433, %v4514
    %4516 = vdwg.mxu0
    %v4517 = vxor.u32 %v4442, 2147483648
    %v4518 = vxor.u32 %v4444, 2147483648
    %v4519 = vxor.u32 %v4513, 2147483648
    %v4520 = vmul.f32 %v4517, 1.442695
    %v4521 = vpow.pop %v4520
    %v4522 = vmul.f32 %v4518, 1.442695
    %v4523 = vpow.pop %v4522
    %v4524 = vmul.f32 %v4519, 1.442695
    %v4525 = vpow.pop %v4524
    %v4526 = vadd.f32 %v4521, 1.0
    %v4527 = vadd.f32 %v4523, 1.0
    %v4528 = vadd.f32 %v4525, 1.0
    %v4529 = vrcp.pop %v4526
    %v4530 = vmul.f32 1.0, %v4529
    %v4531 = vrcp.pop %v4527
    %v4532 = vmul.f32 1.0, %v4531
    %v4533 = vrcp.pop %v4528
    %v4534 = vmul.f32 1.0, %v4533
    %v4535 = vtanh.pop %v4515
    %v4536 = vmul.f32 %v4532, %v4183
    %v4537 = vmul.f32 %v4530, %v4535
    %v4538 = vadd.f32 %v4536, %v4537
    %v4539 = vtanh.pop %v4538
    %v4540 = vmul.f32 %v4534, %v4539
    %v4541 = vmul.f32 %v4540, %v608
    %v4542 = vsel %vm611, %v4541, 0.0
    %4543 = vadd.xlane.f32.xlu0 %v4542
    %v4544 = vpop.xlane.xlu0 %4543
    %v4545 = vadd.f32 %v4544, %v619
    %s4546 = scalar_lea.vmem %s8, 44
    %4547 = vst.msk [vmem:[%s4546] sm:$0xf] %vm622, %v4545
    // Predicated region
    $region42: #{tpu_custom_call.1} parent=1 // pred_check
      _
    $region43: #{tpu_custom_call.1} parent=1 // pred_check_branch
      %4549 = sbr.rel (0) target = $region45
    $region44: #{tpu_custom_call.1} parent=1 // pred_region
      _
    $region45: #{tpu_custom_call.1} parent=1 // pred_fallthru
      _
    // Predicated region
    $region46: #{tpu_custom_call.1} parent=1 // pred_check
      _
    $region47: #{tpu_custom_call.1} parent=1 // pred_check_branch
      %4551 = sbr.rel (0) target = $region49
    $region48: #{tpu_custom_call.1} parent=1 // pred_region
      _
    $region49: #{tpu_custom_call.1} parent=1 // pred_fallthru
      _
    %4552 = vsyncpa [#allocation4], 1
    %4553 = vsyncpa [#allocation6], 1

</llo_original>
